<compile_context>
chip_gen: v7x
topology: tpu7x:2x2x1
jax: 0.10.0
libtpu: 0.0.40
codegen_flags: <defaults>
</compile_context>

<pallas_src>
import functools

import jax
import jax.numpy as jnp
from jax.experimental import pallas as pl
from jax.experimental.pallas import tpu as pltpu


def _round_up(x, m):
    return (x + m - 1) // m * m


# ------------------------------ fused kernel -------------------------------

def _tasnet_kernel(
    # inputs
    patch_ref,              # (1, F, L)        f32   framed audio, one sample
    enc_w_ref,              # (L, N)           bf16  encoder conv weight^T
    ign_g_ref, ign_b_ref,   # (1, N)           f32   input GroupNorm affine
    inw_ref, inb_ref,       # (N, Bf) bf16 / (1, Bf) f32
    w1_ref, b1_ref,         # (nblk, Bf, H) bf16 / (nblk, 1, H) f32
    a1_ref,                 # (nblk,)          f32   SMEM  PReLU slopes
    g1_ref, be1_ref,        # (nblk, 1, H)     f32   block GroupNorm affine
    w2_ref, b2_ref,         # (nblk, P, H) f32 / (nblk, 1, H) f32  depthwise
    w3_ref, b3_ref,         # (nblk, H, Bf) bf16 / (nblk, 1, Bf) f32
    wr_ref, br_ref,         # (nblk, Bf, Bf) bf16 / (nblk, 1, Bf) f32  residual
    ws_ref, bs_ref,         # (nblk, Bf, Bf) bf16 / (nblk, 1, Bf) f32  skip
    outa_ref,               # (1,)             f32   SMEM  output PReLU slope
    outw_ref, outb_ref,     # (S, Bf, N) bf16 / (S, 1, N) f32
    dec_w_ref,              # (N, L)           bf16  decoder weight
    # outputs
    out_ref,                # (1, S, F-1, stride) f32
    # scratch
    dw_ref,                 # (pad0 + F, H)    f32   causal depthwise staging
    *, dilations, no_residual, P, S, N, stride, eps):
    F = patch_ref.shape[1]
    H = dw_ref.shape[1]
    pad0 = dw_ref.shape[0] - F            # sublane-aligned causal left pad

    # Zero the causal-pad rows; only rows [pad0:] are rewritten per block.
    # (Done every grid step: with "parallel" megacore sharding a core may never
    #  see program_id==0, so a one-time init cannot be gated on it.)
    if pad0 > 0:
        dw_ref[0:pad0, :] = jnp.zeros((pad0, H), jnp.float32)

    def mm(a_f32, w_bf16):
        # bf16 MXU matmul with f32 accumulation.
        return jnp.dot(a_f32.astype(jnp.bfloat16), w_bf16,
                       preferred_element_type=jnp.float32)

    def gnorm(v, gamma, beta):
        # GroupNorm(num_groups=1): stats over all (time, channel) elements.
        mean = jnp.mean(v)
        var = jnp.mean(jnp.square(v - mean))
        return (v - mean) * jax.lax.rsqrt(var + eps) * gamma + beta

    # ---- encoder: Conv1d(1, N, L, stride=L/2, bias=False) == framed matmul --
    feats = mm(patch_ref[0], enc_w_ref[...])                       # (F, N)

    # ---- mask generator: input norm + input 1x1 conv -------------------------
    x = gnorm(feats, ign_g_ref[...], ign_b_ref[...])
    x = mm(x, inw_ref[...]) + inb_ref[...]                         # (F, Bf)

    skip_sum = jnp.zeros_like(x)
    for i, dil in enumerate(dilations):
        # 1x1 conv -> PReLU -> GroupNorm
        c = mm(x, w1_ref[i]) + b1_ref[i]                           # (F, H)
        a1 = a1_ref[i]
        c = jnp.where(c >= 0, c, a1 * c)
        c = gnorm(c, g1_ref[i], be1_ref[i])

        # causal depthwise conv (kernel P, dilation dil), unrolled over taps.
        # Tap k reads c[t - (P-1-k)*dil]; shifts read into the zeroed pad rows.
        dw_ref[pad0:pad0 + F, :] = c
        w2 = w2_ref[i]                                             # (P, H)
        acc = c * w2[P - 1:P, :]
        for k in range(P - 1):
            shift = (P - 1 - k) * dil
            acc = acc + dw_ref[pad0 - shift:pad0 - shift + F, :] * w2[k:k + 1, :]
        c = acc + b2_ref[i]

        # 1x1 conv back to Bf, then residual / skip 1x1 convs
        c = mm(c, w3_ref[i]) + b3_ref[i]                           # (F, Bf)
        if not no_residual[i]:
            x = x + mm(c, wr_ref[i]) + br_ref[i]
        skip_sum = skip_sum + mm(c, ws_ref[i]) + bs_ref[i]

    # ---- output PReLU -> 1x1 conv -> sigmoid -> per-source decoder ----------
    oa = outa_ref[0]
    y = jnp.where(skip_sum >= 0, skip_sum, oa * skip_sum)
    y16 = y.astype(jnp.bfloat16)
    dec_w = dec_w_ref[...]                                         # (N, L) bf16
    for s in range(S):
        mask_s = jax.nn.sigmoid(
            jnp.dot(y16, outw_ref[s], preferred_element_type=jnp.float32)
            + outb_ref[s])                                         # (F, N)
        # ConvTranspose1d(N,1,L,stride,padding=stride): frame matmul + overlap-add;
        # cropping `stride` samples at both ends == dropping the edge hop blocks.
        z = mm(mask_s, dec_w)                                      # (F, L)
        out_ref[0, s] = (z[1:, 0:stride] + z[:-1, stride:]).astype(out_ref.dtype)


def _fused_forward(patches, params, cfg):
    S = cfg["num_sources"]
    L = cfg["enc_kernel_size"]
    N = cfg["enc_num_feats"]
    P = cfg["msk_kernel_size"]
    H = cfg["msk_num_hidden_feats"]
    X = cfg["msk_num_layers"]
    R = cfg["msk_num_stacks"]
    stride = L // 2
    b, f, _ = patches.shape
    assert f >= 2, "decoder needs at least two encoder frames"

    dilations = tuple(2 ** l for _ in range(R) for l in range(X))
    no_residual = tuple((l == X - 1) and (s == R - 1)
                        for s in range(R) for l in range(X))
    pad0 = _round_up((P - 1) * max(dilations), 8)

    kernel = functools.partial(
        _tasnet_kernel, dilations=dilations, no_residual=no_residual,
        P=P, S=S, N=N, stride=stride, eps=1e-8)

    vmem = pl.BlockSpec(memory_space=pltpu.MemorySpace.VMEM)   # whole array, resident
    smem = pl.BlockSpec(memory_space=pltpu.MemorySpace.SMEM)   # scalar tables
    grid_spec = pltpu.PrefetchScalarGridSpec(
        num_scalar_prefetch=0,
        grid=(b,),
        in_specs=([pl.BlockSpec((1, f, L), lambda i: (i, 0, 0))]
                  + [vmem] * 7       # enc_w, in_gn_g, in_gn_b, in_w, in_b, W1, B1
                  + [smem]           # A1
                  + [vmem] * 10      # GNG, GNB, W2, B2, W3, B3, WR, BR, WS, BS
                  + [smem]           # out_alpha
                  + [vmem] * 3),     # out_w, out_b, dec_w
        out_specs=pl.BlockSpec((1, S, f - 1, stride), lambda i: (i, 0, 0, 0)),
        scratch_shapes=[pltpu.VMEM((pad0 + f, H), jnp.float32)],
    )
    return pl.pallas_call(
        kernel,
        out_shape=jax.ShapeDtypeStruct((b, S, f - 1, stride), jnp.float32),
        grid_spec=grid_spec,
        compiler_params=pltpu.CompilerParams(
            dimension_semantics=("parallel",),        # shard batch across TCs (v7x)
            vmem_limit_bytes=48 * 1024 * 1024),       # fits v5e/v6e/v7x VMEM
    )(patches,
      params["enc_w"], params["in_gn_g"], params["in_gn_b"],
      params["in_w"], params["in_b"],
      params["W1"], params["B1"], params["A1"], params["GNG"], params["GNB"],
      params["W2"], params["B2"], params["W3"], params["B3"],
      params["WR"], params["BR"], params["WS"], params["BS"],
      params["out_alpha"], params["out_w"], params["out_b"], params["dec_w"])


# ------------------------------ model (glue) -------------------------------

def init_params(key, cfg):
    S = cfg["num_sources"]
    L = cfg["enc_kernel_size"]
    N = cfg["enc_num_feats"]
    P = cfg["msk_kernel_size"]
    Bf = cfg["msk_num_feats"]
    H = cfg["msk_num_hidden_feats"]
    nblk = cfg["msk_num_stacks"] * cfg["msk_num_layers"]
    bf16 = jnp.bfloat16
    state = [key]

    def w(shape, scale=0.1, dtype=jnp.float32):
        state[0], sub = jax.random.split(state[0])
        return (scale * jax.random.normal(sub, shape, jnp.float32)).astype(dtype)

    return {
        "enc_w": w((L, N), dtype=bf16),                 # Conv1d(1, N, L).weight^T
        "dec_w": w((N, L), dtype=bf16),                 # ConvTranspose1d(N, 1, L)
        "in_gn_g": jnp.ones((1, N), jnp.float32),
        "in_gn_b": jnp.zeros((1, N), jnp.float32),
        "in_w": w((N, Bf), dtype=bf16),
        "in_b": w((1, Bf)),
        # stacked TCN block weights (leading dim = block index)
        "W1": w((nblk, Bf, H), dtype=bf16), "B1": w((nblk, 1, H)),
        "A1": jnp.full((nblk,), 0.25, jnp.float32),
        "GNG": jnp.ones((nblk, 1, H), jnp.float32),
        "GNB": jnp.zeros((nblk, 1, H), jnp.float32),
        "W2": w((nblk, P, H)), "B2": w((nblk, 1, H)),   # depthwise (K, H)
        "W3": w((nblk, H, Bf), dtype=bf16), "B3": w((nblk, 1, Bf)),
        "WR": w((nblk, Bf, Bf), dtype=bf16), "BR": w((nblk, 1, Bf)),
        "WS": w((nblk, Bf, Bf), dtype=bf16), "BS": w((nblk, 1, Bf)),
        "out_alpha": jnp.full((1,), 0.25, jnp.float32),
        # per-source output 1x1 conv, leading source axis (avoids lane slicing)
        "out_w": w((S, Bf, N), dtype=bf16),
        "out_b": w((S, 1, N)),
    }


def conv_tasnet_forward(x, params, cfg):
    """x: (batch, 1, frames) float32, same convention as the PyTorch module."""
    S = cfg["num_sources"]
    L = cfg["enc_kernel_size"]
    assert L % 2 == 0, "requires even encoder kernel (L == 2 * stride)"
    stride = L // 2
    b, c, t = x.shape
    assert c == 1
    # _align_num_frames_with_strides (static python arithmetic on known shapes)
    is_odd = L % 2
    num_strides = (t - is_odd) // stride
    num_rem = t - (is_odd + num_strides * stride)
    num_pads = 0 if num_rem == 0 else stride - num_rem
    tp = t + num_pads
    xp = jnp.pad(x[:, 0, :], ((0, 0), (0, num_pads)))
    # Encoder framing: pad `stride` on both sides; since stride == L/2, the F
    # overlapping length-L frames are just a concat of two shifted stride-sized
    # reshapes (two HLOs instead of O(F) dynamic slices).
    xe = jnp.pad(xp, ((0, 0), (stride, stride)))          # (B, tp + 2*stride)
    f = tp // stride + 1
    blocks = xe.reshape(b, f + 1, stride)
    patches = jnp.concatenate([blocks[:, :f, :], blocks[:, 1:, :]], axis=2)
    out = _fused_forward(patches, params, cfg)            # (B, S, F-1, stride)
    out = out.reshape(b, S, (f - 1) * stride)             # (B, S, tp)
    if num_pads > 0:
        out = out[..., :-num_pads]
    return out


if __name__ == "__main__":
    cfg = dict(
        num_sources=2,
        enc_kernel_size=16,
        enc_num_feats=32,
        msk_kernel_size=3,
        msk_num_feats=16,
        msk_num_hidden_feats=32,
        msk_num_layers=2,
        msk_num_stacks=2,
    )
    key = jax.random.PRNGKey(0)
    pkey, xkey = jax.random.split(key)
    params = init_params(pkey, cfg)
    x = jax.random.normal(xkey, (2, 1, 64), jnp.float32)  # (batch, 1, frames)
    out = conv_tasnet_forward(x, params, cfg)
    out = jax.block_until_ready(out)
    assert out.shape == (2, cfg["num_sources"], 64), out.shape
    assert bool(jnp.all(jnp.isfinite(out)))
    print("KERNEL_OK")
</pallas_src>

<mosaic_0001>
module attributes {stable_mosaic.version = 11 : i64} {
  func.func @_tasnet_kernel(%arg0: i32, %arg1: memref<1x9x16xf32, #tpu.memory_space<vmem>>, %arg2: memref<16x32xbf16, #tpu.memory_space<vmem>>, %arg3: memref<1x32xf32, #tpu.memory_space<vmem>>, %arg4: memref<1x32xf32, #tpu.memory_space<vmem>>, %arg5: memref<32x16xbf16, #tpu.memory_space<vmem>>, %arg6: memref<1x16xf32, #tpu.memory_space<vmem>>, %arg7: memref<4x16x32xbf16, #tpu.memory_space<vmem>>, %arg8: memref<4x1x32xf32, #tpu.memory_space<vmem>>, %arg9: memref<4xf32, #tpu.memory_space<smem>>, %arg10: memref<4x1x32xf32, #tpu.memory_space<vmem>>, %arg11: memref<4x1x32xf32, #tpu.memory_space<vmem>>, %arg12: memref<4x3x32xf32, #tpu.memory_space<vmem>>, %arg13: memref<4x1x32xf32, #tpu.memory_space<vmem>>, %arg14: memref<4x32x16xbf16, #tpu.memory_space<vmem>>, %arg15: memref<4x1x16xf32, #tpu.memory_space<vmem>>, %arg16: memref<4x16x16xbf16, #tpu.memory_space<vmem>>, %arg17: memref<4x1x16xf32, #tpu.memory_space<vmem>>, %arg18: memref<4x16x16xbf16, #tpu.memory_space<vmem>>, %arg19: memref<4x1x16xf32, #tpu.memory_space<vmem>>, %arg20: memref<1xf32, #tpu.memory_space<smem>>, %arg21: memref<2x16x32xbf16, #tpu.memory_space<vmem>>, %arg22: memref<2x1x32xf32, #tpu.memory_space<vmem>>, %arg23: memref<32x16xbf16, #tpu.memory_space<vmem>>, %arg24: memref<1x2x8x8xf32, #tpu.memory_space<vmem>>, %arg25: memref<17x32xf32, #tpu.memory_space<vmem>>) attributes {dimension_semantics = [#tpu.dimension_semantics<parallel>], iteration_bounds = array<i64: 2>, scalar_prefetch = 0 : i64, scratch_operands = 1 : i64, tpu.core_type = #tpu.core_type<tc>, window_params = [{transform_indices = @transform_0, window_bounds = array<i64: 1, 9, 16>}, {pipeline_mode = #tpu.pipeline_mode<synchronous>, transform_indices = @transform_1, window_bounds = array<i64: 16, 32>}, {pipeline_mode = #tpu.pipeline_mode<synchronous>, transform_indices = @transform_2, window_bounds = array<i64: 1, 32>}, {pipeline_mode = #tpu.pipeline_mode<synchronous>, transform_indices = @transform_3, window_bounds = array<i64: 1, 32>}, {pipeline_mode = #tpu.pipeline_mode<synchronous>, transform_indices = @transform_4, window_bounds = array<i64: 32, 16>}, {pipeline_mode = #tpu.pipeline_mode<synchronous>, transform_indices = @transform_5, window_bounds = array<i64: 1, 16>}, {pipeline_mode = #tpu.pipeline_mode<synchronous>, transform_indices = @transform_6, window_bounds = array<i64: 4, 16, 32>}, {pipeline_mode = #tpu.pipeline_mode<synchronous>, transform_indices = @transform_7, window_bounds = array<i64: 4, 1, 32>}, {transform_indices = @transform_8, window_bounds = array<i64: 4>}, {pipeline_mode = #tpu.pipeline_mode<synchronous>, transform_indices = @transform_9, window_bounds = array<i64: 4, 1, 32>}, {pipeline_mode = #tpu.pipeline_mode<synchronous>, transform_indices = @transform_10, window_bounds = array<i64: 4, 1, 32>}, {pipeline_mode = #tpu.pipeline_mode<synchronous>, transform_indices = @transform_11, window_bounds = array<i64: 4, 3, 32>}, {pipeline_mode = #tpu.pipeline_mode<synchronous>, transform_indices = @transform_12, window_bounds = array<i64: 4, 1, 32>}, {pipeline_mode = #tpu.pipeline_mode<synchronous>, transform_indices = @transform_13, window_bounds = array<i64: 4, 32, 16>}, {pipeline_mode = #tpu.pipeline_mode<synchronous>, transform_indices = @transform_14, window_bounds = array<i64: 4, 1, 16>}, {pipeline_mode = #tpu.pipeline_mode<synchronous>, transform_indices = @transform_15, window_bounds = array<i64: 4, 16, 16>}, {pipeline_mode = #tpu.pipeline_mode<synchronous>, transform_indices = @transform_16, window_bounds = array<i64: 4, 1, 16>}, {pipeline_mode = #tpu.pipeline_mode<synchronous>, transform_indices = @transform_17, window_bounds = array<i64: 4, 16, 16>}, {pipeline_mode = #tpu.pipeline_mode<synchronous>, transform_indices = @transform_18, window_bounds = array<i64: 4, 1, 16>}, {transform_indices = @transform_19, window_bounds = array<i64: 1>}, {pipeline_mode = #tpu.pipeline_mode<synchronous>, transform_indices = @transform_20, window_bounds = array<i64: 2, 16, 32>}, {pipeline_mode = #tpu.pipeline_mode<synchronous>, transform_indices = @transform_21, window_bounds = array<i64: 2, 1, 32>}, {pipeline_mode = #tpu.pipeline_mode<synchronous>, transform_indices = @transform_22, window_bounds = array<i64: 32, 16>}, {transform_indices = @transform_23, window_bounds = array<i64: 1, 2, 8, 8>}]} {
    %cst = arith.constant 0.000000e+00 : f32
    %0 = vector.broadcast %cst : f32 to vector<8x32xf32>
    %c0 = arith.constant 0 : index
    %c0_0 = arith.constant 0 : index
    %1 = vector.load %arg25[%c0, %c0_0] : memref<17x32xf32, #tpu.memory_space<vmem>>, vector<8x32xf32>
    tpu.vector_store %arg25[%c0, %c0_0], %0 {strides = array<i32>} : memref<17x32xf32, #tpu.memory_space<vmem>>, vector<8x32xf32>,
    %c0_1 = arith.constant 0 : index
    %c0_2 = arith.constant 0 : index
    %c0_3 = arith.constant 0 : index
    %2 = vector.load %arg1[%c0_1, %c0_2, %c0_3] : memref<1x9x16xf32, #tpu.memory_space<vmem>>, vector<1x9x16xf32>
    %3 = vector.shape_cast %2 : vector<1x9x16xf32> to vector<9x16xf32>
    %c0_4 = arith.constant 0 : index
    %c0_5 = arith.constant 0 : index
    %4 = vector.load %arg2[%c0_4, %c0_5] : memref<16x32xbf16, #tpu.memory_space<vmem>>, vector<16x32xbf16>
    %5 = arith.truncf %3 : vector<9x16xf32> to vector<9x16xbf16>
    %cst_6 = arith.constant dense<0.000000e+00> : vector<9x32xf32>
    %6 = tpu.matmul %5, %4, %cst_6 {dimension_numbers = #tpu.dot_dimension_numbers<[1], [0], [0], [1], [0, 0, 1, 1], [], []>} : vector<9x16xbf16>, vector<16x32xbf16>, vector<9x32xf32> -> vector<9x32xf32>
    %c0_7 = arith.constant 0 : index
    %c0_8 = arith.constant 0 : index
    %7 = vector.load %arg3[%c0_7, %c0_8] : memref<1x32xf32, #tpu.memory_space<vmem>>, vector<1x32xf32>
    %c0_9 = arith.constant 0 : index
    %c0_10 = arith.constant 0 : index
    %8 = vector.load %arg4[%c0_9, %c0_10] : memref<1x32xf32, #tpu.memory_space<vmem>>, vector<1x32xf32>
    %9 = vector.shape_cast %6 : vector<9x32xf32> to vector<1x9x32xf32>
    %cst_11 = arith.constant dense<0.000000e+00> : vector<1xf32>
    %10 = vector.multi_reduction <add>, %9, %cst_11 [1, 2] : vector<1x9x32xf32> to vector<1xf32>
    %11 = vector.shape_cast %10 : vector<1xf32> to vector<1x1x1xf32>
    %12 = vector.extract %11[0, 0, 0] : f32 from vector<1x1x1xf32>
    %cst_12 = arith.constant 2.880000e+02 : f32
    %13 = arith.divf %12, %cst_12 : f32
    %14 = vector.broadcast %13 : f32 to vector<9x32xf32>
    %15 = arith.subf %6, %14 : vector<9x32xf32>
    %16 = arith.mulf %15, %15 : vector<9x32xf32>
    %17 = vector.shape_cast %16 : vector<9x32xf32> to vector<1x9x32xf32>
    %cst_13 = arith.constant dense<0.000000e+00> : vector<1xf32>
    %18 = vector.multi_reduction <add>, %17, %cst_13 [1, 2] : vector<1x9x32xf32> to vector<1xf32>
    %19 = vector.shape_cast %18 : vector<1xf32> to vector<1x1x1xf32>
    %20 = vector.extract %19[0, 0, 0] : f32 from vector<1x1x1xf32>
    %cst_14 = arith.constant 2.880000e+02 : f32
    %21 = arith.divf %20, %cst_14 : f32
    %22 = vector.broadcast %13 : f32 to vector<9x32xf32>
    %23 = arith.subf %6, %22 : vector<9x32xf32>
    %cst_15 = arith.constant 9.99999993E-9 : f32
    %24 = arith.addf %21, %cst_15 : f32
    %25 = math.rsqrt %24 : f32
    %26 = vector.broadcast %25 : f32 to vector<9x32xf32>
    %27 = arith.mulf %23, %26 : vector<9x32xf32>
    %28 = vector.broadcast %7 : vector<1x32xf32> to vector<9x32xf32>
    %29 = arith.mulf %27, %28 : vector<9x32xf32>
    %30 = vector.broadcast %8 : vector<1x32xf32> to vector<9x32xf32>
    %31 = arith.addf %29, %30 : vector<9x32xf32>
    %c0_16 = arith.constant 0 : index
    %c0_17 = arith.constant 0 : index
    %32 = vector.load %arg5[%c0_16, %c0_17] : memref<32x16xbf16, #tpu.memory_space<vmem>>, vector<32x16xbf16>
    %33 = arith.truncf %31 : vector<9x32xf32> to vector<9x32xbf16>
    %cst_18 = arith.constant dense<0.000000e+00> : vector<9x16xf32>
    %34 = tpu.matmul %33, %32, %cst_18 {dimension_numbers = #tpu.dot_dimension_numbers<[1], [0], [0], [1], [0, 0, 1, 1], [], []>} : vector<9x32xbf16>, vector<32x16xbf16>, vector<9x16xf32> -> vector<9x16xf32>
    %c0_19 = arith.constant 0 : index
    %c0_20 = arith.constant 0 : index
    %35 = vector.load %arg6[%c0_19, %c0_20] : memref<1x16xf32, #tpu.memory_space<vmem>>, vector<1x16xf32>
    %36 = vector.broadcast %35 : vector<1x16xf32> to vector<9x16xf32>
    %37 = arith.addf %34, %36 : vector<9x16xf32>
    %cst_21 = arith.constant 0.000000e+00 : f32
    %38 = vector.broadcast %cst_21 : f32 to vector<9x16xf32>
    %c0_22 = arith.constant 0 : index
    %c0_23 = arith.constant 0 : index
    %c0_24 = arith.constant 0 : index
    %39 = vector.load %arg7[%c0_22, %c0_23, %c0_24] : memref<4x16x32xbf16, #tpu.memory_space<vmem>>, vector<1x16x32xbf16>
    %40 = vector.shape_cast %39 : vector<1x16x32xbf16> to vector<16x32xbf16>
    %41 = arith.truncf %37 : vector<9x16xf32> to vector<9x16xbf16>
    %cst_25 = arith.constant dense<0.000000e+00> : vector<9x32xf32>
    %42 = tpu.matmul %41, %40, %cst_25 {dimension_numbers = #tpu.dot_dimension_numbers<[1], [0], [0], [1], [0, 0, 1, 1], [], []>} : vector<9x16xbf16>, vector<16x32xbf16>, vector<9x32xf32> -> vector<9x32xf32>
    %c0_26 = arith.constant 0 : index
    %c0_27 = arith.constant 0 : index
    %c0_28 = arith.constant 0 : index
    %43 = vector.load %arg8[%c0_26, %c0_27, %c0_28] : memref<4x1x32xf32, #tpu.memory_space<vmem>>, vector<1x1x32xf32>
    %44 = vector.shape_cast %43 : vector<1x1x32xf32> to vector<1x32xf32>
    %45 = vector.broadcast %44 : vector<1x32xf32> to vector<9x32xf32>
    %46 = arith.addf %42, %45 : vector<9x32xf32>
    %c0_29 = arith.constant 0 : index
    %47 = memref.load %arg9[%c0_29] : memref<4xf32, #tpu.memory_space<smem>>
    %cst_30 = arith.constant 0.000000e+00 : f32
    %48 = vector.broadcast %cst_30 : f32 to vector<9x32xf32>
    %49 = arith.cmpf oge, %46, %48 : vector<9x32xf32>
    %50 = vector.broadcast %47 : f32 to vector<9x32xf32>
    %51 = arith.mulf %50, %46 : vector<9x32xf32>
    %52 = arith.select %49, %46, %51 : vector<9x32xi1>, vector<9x32xf32>
    %c0_31 = arith.constant 0 : index
    %c0_32 = arith.constant 0 : index
    %c0_33 = arith.constant 0 : index
    %53 = vector.load %arg10[%c0_31, %c0_32, %c0_33] : memref<4x1x32xf32, #tpu.memory_space<vmem>>, vector<1x1x32xf32>
    %54 = vector.shape_cast %53 : vector<1x1x32xf32> to vector<1x32xf32>
    %c0_34 = arith.constant 0 : index
    %c0_35 = arith.constant 0 : index
    %c0_36 = arith.constant 0 : index
    %55 = vector.load %arg11[%c0_34, %c0_35, %c0_36] : memref<4x1x32xf32, #tpu.memory_space<vmem>>, vector<1x1x32xf32>
    %56 = vector.shape_cast %55 : vector<1x1x32xf32> to vector<1x32xf32>
    %57 = vector.shape_cast %52 : vector<9x32xf32> to vector<1x9x32xf32>
    %cst_37 = arith.constant dense<0.000000e+00> : vector<1xf32>
    %58 = vector.multi_reduction <add>, %57, %cst_37 [1, 2] : vector<1x9x32xf32> to vector<1xf32>
    %59 = vector.shape_cast %58 : vector<1xf32> to vector<1x1x1xf32>
    %60 = vector.extract %59[0, 0, 0] : f32 from vector<1x1x1xf32>
    %cst_38 = arith.constant 2.880000e+02 : f32
    %61 = arith.divf %60, %cst_38 : f32
    %62 = vector.broadcast %61 : f32 to vector<9x32xf32>
    %63 = arith.subf %52, %62 : vector<9x32xf32>
    %64 = arith.mulf %63, %63 : vector<9x32xf32>
    %65 = vector.shape_cast %64 : vector<9x32xf32> to vector<1x9x32xf32>
    %cst_39 = arith.constant dense<0.000000e+00> : vector<1xf32>
    %66 = vector.multi_reduction <add>, %65, %cst_39 [1, 2] : vector<1x9x32xf32> to vector<1xf32>
    %67 = vector.shape_cast %66 : vector<1xf32> to vector<1x1x1xf32>
    %68 = vector.extract %67[0, 0, 0] : f32 from vector<1x1x1xf32>
    %cst_40 = arith.constant 2.880000e+02 : f32
    %69 = arith.divf %68, %cst_40 : f32
    %70 = vector.broadcast %61 : f32 to vector<9x32xf32>
    %71 = arith.subf %52, %70 : vector<9x32xf32>
    %cst_41 = arith.constant 9.99999993E-9 : f32
    %72 = arith.addf %69, %cst_41 : f32
    %73 = math.rsqrt %72 : f32
    %74 = vector.broadcast %73 : f32 to vector<9x32xf32>
    %75 = arith.mulf %71, %74 : vector<9x32xf32>
    %76 = vector.broadcast %54 : vector<1x32xf32> to vector<9x32xf32>
    %77 = arith.mulf %75, %76 : vector<9x32xf32>
    %78 = vector.broadcast %56 : vector<1x32xf32> to vector<9x32xf32>
    %79 = arith.addf %77, %78 : vector<9x32xf32>
    %c8 = arith.constant 8 : index
    %c0_42 = arith.constant 0 : index
    %80 = vector.load %arg25[%c8, %c0_42] : memref<17x32xf32, #tpu.memory_space<vmem>>, vector<9x32xf32>
    tpu.vector_store %arg25[%c8, %c0_42], %79 {strides = array<i32>} : memref<17x32xf32, #tpu.memory_space<vmem>>, vector<9x32xf32>,
    %c0_43 = arith.constant 0 : index
    %c0_44 = arith.constant 0 : index
    %c0_45 = arith.constant 0 : index
    %81 = vector.load %arg12[%c0_43, %c0_44, %c0_45] : memref<4x3x32xf32, #tpu.memory_space<vmem>>, vector<1x3x32xf32>
    %82 = vector.shape_cast %81 : vector<1x3x32xf32> to vector<3x32xf32>
    %83 = vector.extract_strided_slice %82 {offsets = [2, 0], sizes = [1, 32], strides = [1, 1]} : vector<3x32xf32> to vector<1x32xf32>
    %84 = vector.broadcast %83 : vector<1x32xf32> to vector<9x32xf32>
    %85 = arith.mulf %79, %84 : vector<9x32xf32>
    %c6 = arith.constant 6 : index
    %c0_46 = arith.constant 0 : index
    %86 = vector.load %arg25[%c6, %c0_46] : memref<17x32xf32, #tpu.memory_space<vmem>>, vector<9x32xf32>
    %87 = vector.extract_strided_slice %82 {offsets = [0, 0], sizes = [1, 32], strides = [1, 1]} : vector<3x32xf32> to vector<1x32xf32>
    %88 = vector.broadcast %87 : vector<1x32xf32> to vector<9x32xf32>
    %89 = arith.mulf %86, %88 : vector<9x32xf32>
    %90 = arith.addf %85, %89 : vector<9x32xf32>
    %c7 = arith.constant 7 : index
    %c0_47 = arith.constant 0 : index
    %91 = vector.load %arg25[%c7, %c0_47] : memref<17x32xf32, #tpu.memory_space<vmem>>, vector<9x32xf32>
    %92 = vector.extract_strided_slice %82 {offsets = [1, 0], sizes = [1, 32], strides = [1, 1]} : vector<3x32xf32> to vector<1x32xf32>
    %93 = vector.broadcast %92 : vector<1x32xf32> to vector<9x32xf32>
    %94 = arith.mulf %91, %93 : vector<9x32xf32>
    %95 = arith.addf %90, %94 : vector<9x32xf32>
    %c0_48 = arith.constant 0 : index
    %c0_49 = arith.constant 0 : index
    %c0_50 = arith.constant 0 : index
    %96 = vector.load %arg13[%c0_48, %c0_49, %c0_50] : memref<4x1x32xf32, #tpu.memory_space<vmem>>, vector<1x1x32xf32>
    %97 = vector.shape_cast %96 : vector<1x1x32xf32> to vector<1x32xf32>
    %98 = vector.broadcast %97 : vector<1x32xf32> to vector<9x32xf32>
    %99 = arith.addf %95, %98 : vector<9x32xf32>
    %c0_51 = arith.constant 0 : index
    %c0_52 = arith.constant 0 : index
    %c0_53 = arith.constant 0 : index
    %100 = vector.load %arg14[%c0_51, %c0_52, %c0_53] : memref<4x32x16xbf16, #tpu.memory_space<vmem>>, vector<1x32x16xbf16>
    %101 = vector.shape_cast %100 : vector<1x32x16xbf16> to vector<32x16xbf16>
    %102 = arith.truncf %99 : vector<9x32xf32> to vector<9x32xbf16>
    %cst_54 = arith.constant dense<0.000000e+00> : vector<9x16xf32>
    %103 = tpu.matmul %102, %101, %cst_54 {dimension_numbers = #tpu.dot_dimension_numbers<[1], [0], [0], [1], [0, 0, 1, 1], [], []>} : vector<9x32xbf16>, vector<32x16xbf16>, vector<9x16xf32> -> vector<9x16xf32>
    %c0_55 = arith.constant 0 : index
    %c0_56 = arith.constant 0 : index
    %c0_57 = arith.constant 0 : index
    %104 = vector.load %arg15[%c0_55, %c0_56, %c0_57] : memref<4x1x16xf32, #tpu.memory_space<vmem>>, vector<1x1x16xf32>
    %105 = vector.shape_cast %104 : vector<1x1x16xf32> to vector<1x16xf32>
    %106 = vector.broadcast %105 : vector<1x16xf32> to vector<9x16xf32>
    %107 = arith.addf %103, %106 : vector<9x16xf32>
    %c0_58 = arith.constant 0 : index
    %c0_59 = arith.constant 0 : index
    %c0_60 = arith.constant 0 : index
    %108 = vector.load %arg16[%c0_58, %c0_59, %c0_60] : memref<4x16x16xbf16, #tpu.memory_space<vmem>>, vector<1x16x16xbf16>
    %109 = vector.shape_cast %108 : vector<1x16x16xbf16> to vector<16x16xbf16>
    %110 = arith.truncf %107 : vector<9x16xf32> to vector<9x16xbf16>
    %cst_61 = arith.constant dense<0.000000e+00> : vector<9x16xf32>
    %111 = tpu.matmul %110, %109, %cst_61 {dimension_numbers = #tpu.dot_dimension_numbers<[1], [0], [0], [1], [0, 0, 1, 1], [], []>} : vector<9x16xbf16>, vector<16x16xbf16>, vector<9x16xf32> -> vector<9x16xf32>
    %112 = arith.addf %37, %111 : vector<9x16xf32>
    %c0_62 = arith.constant 0 : index
    %c0_63 = arith.constant 0 : index
    %c0_64 = arith.constant 0 : index
    %113 = vector.load %arg17[%c0_62, %c0_63, %c0_64] : memref<4x1x16xf32, #tpu.memory_space<vmem>>, vector<1x1x16xf32>
    %114 = vector.shape_cast %113 : vector<1x1x16xf32> to vector<1x16xf32>
    %115 = vector.broadcast %114 : vector<1x16xf32> to vector<9x16xf32>
    %116 = arith.addf %112, %115 : vector<9x16xf32>
    %c0_65 = arith.constant 0 : index
    %c0_66 = arith.constant 0 : index
    %c0_67 = arith.constant 0 : index
    %117 = vector.load %arg18[%c0_65, %c0_66, %c0_67] : memref<4x16x16xbf16, #tpu.memory_space<vmem>>, vector<1x16x16xbf16>
    %118 = vector.shape_cast %117 : vector<1x16x16xbf16> to vector<16x16xbf16>
    %119 = arith.truncf %107 : vector<9x16xf32> to vector<9x16xbf16>
    %cst_68 = arith.constant dense<0.000000e+00> : vector<9x16xf32>
    %120 = tpu.matmul %119, %118, %cst_68 {dimension_numbers = #tpu.dot_dimension_numbers<[1], [0], [0], [1], [0, 0, 1, 1], [], []>} : vector<9x16xbf16>, vector<16x16xbf16>, vector<9x16xf32> -> vector<9x16xf32>
    %121 = arith.addf %38, %120 : vector<9x16xf32>
    %c0_69 = arith.constant 0 : index
    %c0_70 = arith.constant 0 : index
    %c0_71 = arith.constant 0 : index
    %122 = vector.load %arg19[%c0_69, %c0_70, %c0_71] : memref<4x1x16xf32, #tpu.memory_space<vmem>>, vector<1x1x16xf32>
    %123 = vector.shape_cast %122 : vector<1x1x16xf32> to vector<1x16xf32>
    %124 = vector.broadcast %123 : vector<1x16xf32> to vector<9x16xf32>
    %125 = arith.addf %121, %124 : vector<9x16xf32>
    %c1 = arith.constant 1 : index
    %c0_72 = arith.constant 0 : index
    %c0_73 = arith.constant 0 : index
    %126 = vector.load %arg7[%c1, %c0_72, %c0_73] : memref<4x16x32xbf16, #tpu.memory_space<vmem>>, vector<1x16x32xbf16>
    %127 = vector.shape_cast %126 : vector<1x16x32xbf16> to vector<16x32xbf16>
    %128 = arith.truncf %116 : vector<9x16xf32> to vector<9x16xbf16>
    %cst_74 = arith.constant dense<0.000000e+00> : vector<9x32xf32>
    %129 = tpu.matmul %128, %127, %cst_74 {dimension_numbers = #tpu.dot_dimension_numbers<[1], [0], [0], [1], [0, 0, 1, 1], [], []>} : vector<9x16xbf16>, vector<16x32xbf16>, vector<9x32xf32> -> vector<9x32xf32>
    %c1_75 = arith.constant 1 : index
    %c0_76 = arith.constant 0 : index
    %c0_77 = arith.constant 0 : index
    %130 = vector.load %arg8[%c1_75, %c0_76, %c0_77] : memref<4x1x32xf32, #tpu.memory_space<vmem>>, vector<1x1x32xf32>
    %131 = vector.shape_cast %130 : vector<1x1x32xf32> to vector<1x32xf32>
    %132 = vector.broadcast %131 : vector<1x32xf32> to vector<9x32xf32>
    %133 = arith.addf %129, %132 : vector<9x32xf32>
    %c1_78 = arith.constant 1 : index
    %134 = memref.load %arg9[%c1_78] : memref<4xf32, #tpu.memory_space<smem>>
    %cst_79 = arith.constant 0.000000e+00 : f32
    %135 = vector.broadcast %cst_79 : f32 to vector<9x32xf32>
    %136 = arith.cmpf oge, %133, %135 : vector<9x32xf32>
    %137 = vector.broadcast %134 : f32 to vector<9x32xf32>
    %138 = arith.mulf %137, %133 : vector<9x32xf32>
    %139 = arith.select %136, %133, %138 : vector<9x32xi1>, vector<9x32xf32>
    %c1_80 = arith.constant 1 : index
    %c0_81 = arith.constant 0 : index
    %c0_82 = arith.constant 0 : index
    %140 = vector.load %arg10[%c1_80, %c0_81, %c0_82] : memref<4x1x32xf32, #tpu.memory_space<vmem>>, vector<1x1x32xf32>
    %141 = vector.shape_cast %140 : vector<1x1x32xf32> to vector<1x32xf32>
    %c1_83 = arith.constant 1 : index
    %c0_84 = arith.constant 0 : index
    %c0_85 = arith.constant 0 : index
    %142 = vector.load %arg11[%c1_83, %c0_84, %c0_85] : memref<4x1x32xf32, #tpu.memory_space<vmem>>, vector<1x1x32xf32>
    %143 = vector.shape_cast %142 : vector<1x1x32xf32> to vector<1x32xf32>
    %144 = vector.shape_cast %139 : vector<9x32xf32> to vector<1x9x32xf32>
    %cst_86 = arith.constant dense<0.000000e+00> : vector<1xf32>
    %145 = vector.multi_reduction <add>, %144, %cst_86 [1, 2] : vector<1x9x32xf32> to vector<1xf32>
    %146 = vector.shape_cast %145 : vector<1xf32> to vector<1x1x1xf32>
    %147 = vector.extract %146[0, 0, 0] : f32 from vector<1x1x1xf32>
    %cst_87 = arith.constant 2.880000e+02 : f32
    %148 = arith.divf %147, %cst_87 : f32
    %149 = vector.broadcast %148 : f32 to vector<9x32xf32>
    %150 = arith.subf %139, %149 : vector<9x32xf32>
    %151 = arith.mulf %150, %150 : vector<9x32xf32>
    %152 = vector.shape_cast %151 : vector<9x32xf32> to vector<1x9x32xf32>
    %cst_88 = arith.constant dense<0.000000e+00> : vector<1xf32>
    %153 = vector.multi_reduction <add>, %152, %cst_88 [1, 2] : vector<1x9x32xf32> to vector<1xf32>
    %154 = vector.shape_cast %153 : vector<1xf32> to vector<1x1x1xf32>
    %155 = vector.extract %154[0, 0, 0] : f32 from vector<1x1x1xf32>
    %cst_89 = arith.constant 2.880000e+02 : f32
    %156 = arith.divf %155, %cst_89 : f32
    %157 = vector.broadcast %148 : f32 to vector<9x32xf32>
    %158 = arith.subf %139, %157 : vector<9x32xf32>
    %cst_90 = arith.constant 9.99999993E-9 : f32
    %159 = arith.addf %156, %cst_90 : f32
    %160 = math.rsqrt %159 : f32
    %161 = vector.broadcast %160 : f32 to vector<9x32xf32>
    %162 = arith.mulf %158, %161 : vector<9x32xf32>
    %163 = vector.broadcast %141 : vector<1x32xf32> to vector<9x32xf32>
    %164 = arith.mulf %162, %163 : vector<9x32xf32>
    %165 = vector.broadcast %143 : vector<1x32xf32> to vector<9x32xf32>
    %166 = arith.addf %164, %165 : vector<9x32xf32>
    %c8_91 = arith.constant 8 : index
    %c0_92 = arith.constant 0 : index
    %167 = vector.load %arg25[%c8_91, %c0_92] : memref<17x32xf32, #tpu.memory_space<vmem>>, vector<9x32xf32>
    tpu.vector_store %arg25[%c8_91, %c0_92], %166 {strides = array<i32>} : memref<17x32xf32, #tpu.memory_space<vmem>>, vector<9x32xf32>,
    %c1_93 = arith.constant 1 : index
    %c0_94 = arith.constant 0 : index
    %c0_95 = arith.constant 0 : index
    %168 = vector.load %arg12[%c1_93, %c0_94, %c0_95] : memref<4x3x32xf32, #tpu.memory_space<vmem>>, vector<1x3x32xf32>
    %169 = vector.shape_cast %168 : vector<1x3x32xf32> to vector<3x32xf32>
    %170 = vector.extract_strided_slice %169 {offsets = [2, 0], sizes = [1, 32], strides = [1, 1]} : vector<3x32xf32> to vector<1x32xf32>
    %171 = vector.broadcast %170 : vector<1x32xf32> to vector<9x32xf32>
    %172 = arith.mulf %166, %171 : vector<9x32xf32>
    %c4 = arith.constant 4 : index
    %c0_96 = arith.constant 0 : index
    %173 = vector.load %arg25[%c4, %c0_96] : memref<17x32xf32, #tpu.memory_space<vmem>>, vector<9x32xf32>
    %174 = vector.extract_strided_slice %169 {offsets = [0, 0], sizes = [1, 32], strides = [1, 1]} : vector<3x32xf32> to vector<1x32xf32>
    %175 = vector.broadcast %174 : vector<1x32xf32> to vector<9x32xf32>
    %176 = arith.mulf %173, %175 : vector<9x32xf32>
    %177 = arith.addf %172, %176 : vector<9x32xf32>
    %c6_97 = arith.constant 6 : index
    %c0_98 = arith.constant 0 : index
    %178 = vector.load %arg25[%c6_97, %c0_98] : memref<17x32xf32, #tpu.memory_space<vmem>>, vector<9x32xf32>
    %179 = vector.extract_strided_slice %169 {offsets = [1, 0], sizes = [1, 32], strides = [1, 1]} : vector<3x32xf32> to vector<1x32xf32>
    %180 = vector.broadcast %179 : vector<1x32xf32> to vector<9x32xf32>
    %181 = arith.mulf %178, %180 : vector<9x32xf32>
    %182 = arith.addf %177, %181 : vector<9x32xf32>
    %c1_99 = arith.constant 1 : index
    %c0_100 = arith.constant 0 : index
    %c0_101 = arith.constant 0 : index
    %183 = vector.load %arg13[%c1_99, %c0_100, %c0_101] : memref<4x1x32xf32, #tpu.memory_space<vmem>>, vector<1x1x32xf32>
    %184 = vector.shape_cast %183 : vector<1x1x32xf32> to vector<1x32xf32>
    %185 = vector.broadcast %184 : vector<1x32xf32> to vector<9x32xf32>
    %186 = arith.addf %182, %185 : vector<9x32xf32>
    %c1_102 = arith.constant 1 : index
    %c0_103 = arith.constant 0 : index
    %c0_104 = arith.constant 0 : index
    %187 = vector.load %arg14[%c1_102, %c0_103, %c0_104] : memref<4x32x16xbf16, #tpu.memory_space<vmem>>, vector<1x32x16xbf16>
    %188 = vector.shape_cast %187 : vector<1x32x16xbf16> to vector<32x16xbf16>
    %189 = arith.truncf %186 : vector<9x32xf32> to vector<9x32xbf16>
    %cst_105 = arith.constant dense<0.000000e+00> : vector<9x16xf32>
    %190 = tpu.matmul %189, %188, %cst_105 {dimension_numbers = #tpu.dot_dimension_numbers<[1], [0], [0], [1], [0, 0, 1, 1], [], []>} : vector<9x32xbf16>, vector<32x16xbf16>, vector<9x16xf32> -> vector<9x16xf32>
    %c1_106 = arith.constant 1 : index
    %c0_107 = arith.constant 0 : index
    %c0_108 = arith.constant 0 : index
    %191 = vector.load %arg15[%c1_106, %c0_107, %c0_108] : memref<4x1x16xf32, #tpu.memory_space<vmem>>, vector<1x1x16xf32>
    %192 = vector.shape_cast %191 : vector<1x1x16xf32> to vector<1x16xf32>
    %193 = vector.broadcast %192 : vector<1x16xf32> to vector<9x16xf32>
    %194 = arith.addf %190, %193 : vector<9x16xf32>
    %c1_109 = arith.constant 1 : index
    %c0_110 = arith.constant 0 : index
    %c0_111 = arith.constant 0 : index
    %195 = vector.load %arg16[%c1_109, %c0_110, %c0_111] : memref<4x16x16xbf16, #tpu.memory_space<vmem>>, vector<1x16x16xbf16>
    %196 = vector.shape_cast %195 : vector<1x16x16xbf16> to vector<16x16xbf16>
    %197 = arith.truncf %194 : vector<9x16xf32> to vector<9x16xbf16>
    %cst_112 = arith.constant dense<0.000000e+00> : vector<9x16xf32>
    %198 = tpu.matmul %197, %196, %cst_112 {dimension_numbers = #tpu.dot_dimension_numbers<[1], [0], [0], [1], [0, 0, 1, 1], [], []>} : vector<9x16xbf16>, vector<16x16xbf16>, vector<9x16xf32> -> vector<9x16xf32>
    %199 = arith.addf %116, %198 : vector<9x16xf32>
    %c1_113 = arith.constant 1 : index
    %c0_114 = arith.constant 0 : index
    %c0_115 = arith.constant 0 : index
    %200 = vector.load %arg17[%c1_113, %c0_114, %c0_115] : memref<4x1x16xf32, #tpu.memory_space<vmem>>, vector<1x1x16xf32>
    %201 = vector.shape_cast %200 : vector<1x1x16xf32> to vector<1x16xf32>
    %202 = vector.broadcast %201 : vector<1x16xf32> to vector<9x16xf32>
    %203 = arith.addf %199, %202 : vector<9x16xf32>
    %c1_116 = arith.constant 1 : index
    %c0_117 = arith.constant 0 : index
    %c0_118 = arith.constant 0 : index
    %204 = vector.load %arg18[%c1_116, %c0_117, %c0_118] : memref<4x16x16xbf16, #tpu.memory_space<vmem>>, vector<1x16x16xbf16>
    %205 = vector.shape_cast %204 : vector<1x16x16xbf16> to vector<16x16xbf16>
    %206 = arith.truncf %194 : vector<9x16xf32> to vector<9x16xbf16>
    %cst_119 = arith.constant dense<0.000000e+00> : vector<9x16xf32>
    %207 = tpu.matmul %206, %205, %cst_119 {dimension_numbers = #tpu.dot_dimension_numbers<[1], [0], [0], [1], [0, 0, 1, 1], [], []>} : vector<9x16xbf16>, vector<16x16xbf16>, vector<9x16xf32> -> vector<9x16xf32>
    %208 = arith.addf %125, %207 : vector<9x16xf32>
    %c1_120 = arith.constant 1 : index
    %c0_121 = arith.constant 0 : index
    %c0_122 = arith.constant 0 : index
    %209 = vector.load %arg19[%c1_120, %c0_121, %c0_122] : memref<4x1x16xf32, #tpu.memory_space<vmem>>, vector<1x1x16xf32>
    %210 = vector.shape_cast %209 : vector<1x1x16xf32> to vector<1x16xf32>
    %211 = vector.broadcast %210 : vector<1x16xf32> to vector<9x16xf32>
    %212 = arith.addf %208, %211 : vector<9x16xf32>
    %c2 = arith.constant 2 : index
    %c0_123 = arith.constant 0 : index
    %c0_124 = arith.constant 0 : index
    %213 = vector.load %arg7[%c2, %c0_123, %c0_124] : memref<4x16x32xbf16, #tpu.memory_space<vmem>>, vector<1x16x32xbf16>
    %214 = vector.shape_cast %213 : vector<1x16x32xbf16> to vector<16x32xbf16>
    %215 = arith.truncf %203 : vector<9x16xf32> to vector<9x16xbf16>
    %cst_125 = arith.constant dense<0.000000e+00> : vector<9x32xf32>
    %216 = tpu.matmul %215, %214, %cst_125 {dimension_numbers = #tpu.dot_dimension_numbers<[1], [0], [0], [1], [0, 0, 1, 1], [], []>} : vector<9x16xbf16>, vector<16x32xbf16>, vector<9x32xf32> -> vector<9x32xf32>
    %c2_126 = arith.constant 2 : index
    %c0_127 = arith.constant 0 : index
    %c0_128 = arith.constant 0 : index
    %217 = vector.load %arg8[%c2_126, %c0_127, %c0_128] : memref<4x1x32xf32, #tpu.memory_space<vmem>>, vector<1x1x32xf32>
    %218 = vector.shape_cast %217 : vector<1x1x32xf32> to vector<1x32xf32>
    %219 = vector.broadcast %218 : vector<1x32xf32> to vector<9x32xf32>
    %220 = arith.addf %216, %219 : vector<9x32xf32>
    %c2_129 = arith.constant 2 : index
    %221 = memref.load %arg9[%c2_129] : memref<4xf32, #tpu.memory_space<smem>>
    %cst_130 = arith.constant 0.000000e+00 : f32
    %222 = vector.broadcast %cst_130 : f32 to vector<9x32xf32>
    %223 = arith.cmpf oge, %220, %222 : vector<9x32xf32>
    %224 = vector.broadcast %221 : f32 to vector<9x32xf32>
    %225 = arith.mulf %224, %220 : vector<9x32xf32>
    %226 = arith.select %223, %220, %225 : vector<9x32xi1>, vector<9x32xf32>
    %c2_131 = arith.constant 2 : index
    %c0_132 = arith.constant 0 : index
    %c0_133 = arith.constant 0 : index
    %227 = vector.load %arg10[%c2_131, %c0_132, %c0_133] : memref<4x1x32xf32, #tpu.memory_space<vmem>>, vector<1x1x32xf32>
    %228 = vector.shape_cast %227 : vector<1x1x32xf32> to vector<1x32xf32>
    %c2_134 = arith.constant 2 : index
    %c0_135 = arith.constant 0 : index
    %c0_136 = arith.constant 0 : index
    %229 = vector.load %arg11[%c2_134, %c0_135, %c0_136] : memref<4x1x32xf32, #tpu.memory_space<vmem>>, vector<1x1x32xf32>
    %230 = vector.shape_cast %229 : vector<1x1x32xf32> to vector<1x32xf32>
    %231 = vector.shape_cast %226 : vector<9x32xf32> to vector<1x9x32xf32>
    %cst_137 = arith.constant dense<0.000000e+00> : vector<1xf32>
    %232 = vector.multi_reduction <add>, %231, %cst_137 [1, 2] : vector<1x9x32xf32> to vector<1xf32>
    %233 = vector.shape_cast %232 : vector<1xf32> to vector<1x1x1xf32>
    %234 = vector.extract %233[0, 0, 0] : f32 from vector<1x1x1xf32>
    %cst_138 = arith.constant 2.880000e+02 : f32
    %235 = arith.divf %234, %cst_138 : f32
    %236 = vector.broadcast %235 : f32 to vector<9x32xf32>
    %237 = arith.subf %226, %236 : vector<9x32xf32>
    %238 = arith.mulf %237, %237 : vector<9x32xf32>
    %239 = vector.shape_cast %238 : vector<9x32xf32> to vector<1x9x32xf32>
    %cst_139 = arith.constant dense<0.000000e+00> : vector<1xf32>
    %240 = vector.multi_reduction <add>, %239, %cst_139 [1, 2] : vector<1x9x32xf32> to vector<1xf32>
    %241 = vector.shape_cast %240 : vector<1xf32> to vector<1x1x1xf32>
    %242 = vector.extract %241[0, 0, 0] : f32 from vector<1x1x1xf32>
    %cst_140 = arith.constant 2.880000e+02 : f32
    %243 = arith.divf %242, %cst_140 : f32
    %244 = vector.broadcast %235 : f32 to vector<9x32xf32>
    %245 = arith.subf %226, %244 : vector<9x32xf32>
    %cst_141 = arith.constant 9.99999993E-9 : f32
    %246 = arith.addf %243, %cst_141 : f32
    %247 = math.rsqrt %246 : f32
    %248 = vector.broadcast %247 : f32 to vector<9x32xf32>
    %249 = arith.mulf %245, %248 : vector<9x32xf32>
    %250 = vector.broadcast %228 : vector<1x32xf32> to vector<9x32xf32>
    %251 = arith.mulf %249, %250 : vector<9x32xf32>
    %252 = vector.broadcast %230 : vector<1x32xf32> to vector<9x32xf32>
    %253 = arith.addf %251, %252 : vector<9x32xf32>
    %c8_142 = arith.constant 8 : index
    %c0_143 = arith.constant 0 : index
    %254 = vector.load %arg25[%c8_142, %c0_143] : memref<17x32xf32, #tpu.memory_space<vmem>>, vector<9x32xf32>
    tpu.vector_store %arg25[%c8_142, %c0_143], %253 {strides = array<i32>} : memref<17x32xf32, #tpu.memory_space<vmem>>, vector<9x32xf32>,
    %c2_144 = arith.constant 2 : index
    %c0_145 = arith.constant 0 : index
    %c0_146 = arith.constant 0 : index
    %255 = vector.load %arg12[%c2_144, %c0_145, %c0_146] : memref<4x3x32xf32, #tpu.memory_space<vmem>>, vector<1x3x32xf32>
    %256 = vector.shape_cast %255 : vector<1x3x32xf32> to vector<3x32xf32>
    %257 = vector.extract_strided_slice %256 {offsets = [2, 0], sizes = [1, 32], strides = [1, 1]} : vector<3x32xf32> to vector<1x32xf32>
    %258 = vector.broadcast %257 : vector<1x32xf32> to vector<9x32xf32>
    %259 = arith.mulf %253, %258 : vector<9x32xf32>
    %c6_147 = arith.constant 6 : index
    %c0_148 = arith.constant 0 : index
    %260 = vector.load %arg25[%c6_147, %c0_148] : memref<17x32xf32, #tpu.memory_space<vmem>>, vector<9x32xf32>
    %261 = vector.extract_strided_slice %256 {offsets = [0, 0], sizes = [1, 32], strides = [1, 1]} : vector<3x32xf32> to vector<1x32xf32>
    %262 = vector.broadcast %261 : vector<1x32xf32> to vector<9x32xf32>
    %263 = arith.mulf %260, %262 : vector<9x32xf32>
    %264 = arith.addf %259, %263 : vector<9x32xf32>
    %c7_149 = arith.constant 7 : index
    %c0_150 = arith.constant 0 : index
    %265 = vector.load %arg25[%c7_149, %c0_150] : memref<17x32xf32, #tpu.memory_space<vmem>>, vector<9x32xf32>
    %266 = vector.extract_strided_slice %256 {offsets = [1, 0], sizes = [1, 32], strides = [1, 1]} : vector<3x32xf32> to vector<1x32xf32>
    %267 = vector.broadcast %266 : vector<1x32xf32> to vector<9x32xf32>
    %268 = arith.mulf %265, %267 : vector<9x32xf32>
    %269 = arith.addf %264, %268 : vector<9x32xf32>
    %c2_151 = arith.constant 2 : index
    %c0_152 = arith.constant 0 : index
    %c0_153 = arith.constant 0 : index
    %270 = vector.load %arg13[%c2_151, %c0_152, %c0_153] : memref<4x1x32xf32, #tpu.memory_space<vmem>>, vector<1x1x32xf32>
    %271 = vector.shape_cast %270 : vector<1x1x32xf32> to vector<1x32xf32>
    %272 = vector.broadcast %271 : vector<1x32xf32> to vector<9x32xf32>
    %273 = arith.addf %269, %272 : vector<9x32xf32>
    %c2_154 = arith.constant 2 : index
    %c0_155 = arith.constant 0 : index
    %c0_156 = arith.constant 0 : index
    %274 = vector.load %arg14[%c2_154, %c0_155, %c0_156] : memref<4x32x16xbf16, #tpu.memory_space<vmem>>, vector<1x32x16xbf16>
    %275 = vector.shape_cast %274 : vector<1x32x16xbf16> to vector<32x16xbf16>
    %276 = arith.truncf %273 : vector<9x32xf32> to vector<9x32xbf16>
    %cst_157 = arith.constant dense<0.000000e+00> : vector<9x16xf32>
    %277 = tpu.matmul %276, %275, %cst_157 {dimension_numbers = #tpu.dot_dimension_numbers<[1], [0], [0], [1], [0, 0, 1, 1], [], []>} : vector<9x32xbf16>, vector<32x16xbf16>, vector<9x16xf32> -> vector<9x16xf32>
    %c2_158 = arith.constant 2 : index
    %c0_159 = arith.constant 0 : index
    %c0_160 = arith.constant 0 : index
    %278 = vector.load %arg15[%c2_158, %c0_159, %c0_160] : memref<4x1x16xf32, #tpu.memory_space<vmem>>, vector<1x1x16xf32>
    %279 = vector.shape_cast %278 : vector<1x1x16xf32> to vector<1x16xf32>
    %280 = vector.broadcast %279 : vector<1x16xf32> to vector<9x16xf32>
    %281 = arith.addf %277, %280 : vector<9x16xf32>
    %c2_161 = arith.constant 2 : index
    %c0_162 = arith.constant 0 : index
    %c0_163 = arith.constant 0 : index
    %282 = vector.load %arg16[%c2_161, %c0_162, %c0_163] : memref<4x16x16xbf16, #tpu.memory_space<vmem>>, vector<1x16x16xbf16>
    %283 = vector.shape_cast %282 : vector<1x16x16xbf16> to vector<16x16xbf16>
    %284 = arith.truncf %281 : vector<9x16xf32> to vector<9x16xbf16>
    %cst_164 = arith.constant dense<0.000000e+00> : vector<9x16xf32>
    %285 = tpu.matmul %284, %283, %cst_164 {dimension_numbers = #tpu.dot_dimension_numbers<[1], [0], [0], [1], [0, 0, 1, 1], [], []>} : vector<9x16xbf16>, vector<16x16xbf16>, vector<9x16xf32> -> vector<9x16xf32>
    %286 = arith.addf %203, %285 : vector<9x16xf32>
    %c2_165 = arith.constant 2 : index
    %c0_166 = arith.constant 0 : index
    %c0_167 = arith.constant 0 : index
    %287 = vector.load %arg17[%c2_165, %c0_166, %c0_167] : memref<4x1x16xf32, #tpu.memory_space<vmem>>, vector<1x1x16xf32>
    %288 = vector.shape_cast %287 : vector<1x1x16xf32> to vector<1x16xf32>
    %289 = vector.broadcast %288 : vector<1x16xf32> to vector<9x16xf32>
    %290 = arith.addf %286, %289 : vector<9x16xf32>
    %c2_168 = arith.constant 2 : index
    %c0_169 = arith.constant 0 : index
    %c0_170 = arith.constant 0 : index
    %291 = vector.load %arg18[%c2_168, %c0_169, %c0_170] : memref<4x16x16xbf16, #tpu.memory_space<vmem>>, vector<1x16x16xbf16>
    %292 = vector.shape_cast %291 : vector<1x16x16xbf16> to vector<16x16xbf16>
    %293 = arith.truncf %281 : vector<9x16xf32> to vector<9x16xbf16>
    %cst_171 = arith.constant dense<0.000000e+00> : vector<9x16xf32>
    %294 = tpu.matmul %293, %292, %cst_171 {dimension_numbers = #tpu.dot_dimension_numbers<[1], [0], [0], [1], [0, 0, 1, 1], [], []>} : vector<9x16xbf16>, vector<16x16xbf16>, vector<9x16xf32> -> vector<9x16xf32>
    %295 = arith.addf %212, %294 : vector<9x16xf32>
    %c2_172 = arith.constant 2 : index
    %c0_173 = arith.constant 0 : index
    %c0_174 = arith.constant 0 : index
    %296 = vector.load %arg19[%c2_172, %c0_173, %c0_174] : memref<4x1x16xf32, #tpu.memory_space<vmem>>, vector<1x1x16xf32>
    %297 = vector.shape_cast %296 : vector<1x1x16xf32> to vector<1x16xf32>
    %298 = vector.broadcast %297 : vector<1x16xf32> to vector<9x16xf32>
    %299 = arith.addf %295, %298 : vector<9x16xf32>
    %c3 = arith.constant 3 : index
    %c0_175 = arith.constant 0 : index
    %c0_176 = arith.constant 0 : index
    %300 = vector.load %arg7[%c3, %c0_175, %c0_176] : memref<4x16x32xbf16, #tpu.memory_space<vmem>>, vector<1x16x32xbf16>
    %301 = vector.shape_cast %300 : vector<1x16x32xbf16> to vector<16x32xbf16>
    %302 = arith.truncf %290 : vector<9x16xf32> to vector<9x16xbf16>
    %cst_177 = arith.constant dense<0.000000e+00> : vector<9x32xf32>
    %303 = tpu.matmul %302, %301, %cst_177 {dimension_numbers = #tpu.dot_dimension_numbers<[1], [0], [0], [1], [0, 0, 1, 1], [], []>} : vector<9x16xbf16>, vector<16x32xbf16>, vector<9x32xf32> -> vector<9x32xf32>
    %c3_178 = arith.constant 3 : index
    %c0_179 = arith.constant 0 : index
    %c0_180 = arith.constant 0 : index
    %304 = vector.load %arg8[%c3_178, %c0_179, %c0_180] : memref<4x1x32xf32, #tpu.memory_space<vmem>>, vector<1x1x32xf32>
    %305 = vector.shape_cast %304 : vector<1x1x32xf32> to vector<1x32xf32>
    %306 = vector.broadcast %305 : vector<1x32xf32> to vector<9x32xf32>
    %307 = arith.addf %303, %306 : vector<9x32xf32>
    %c3_181 = arith.constant 3 : index
    %308 = memref.load %arg9[%c3_181] : memref<4xf32, #tpu.memory_space<smem>>
    %cst_182 = arith.constant 0.000000e+00 : f32
    %309 = vector.broadcast %cst_182 : f32 to vector<9x32xf32>
    %310 = arith.cmpf oge, %307, %309 : vector<9x32xf32>
    %311 = vector.broadcast %308 : f32 to vector<9x32xf32>
    %312 = arith.mulf %311, %307 : vector<9x32xf32>
    %313 = arith.select %310, %307, %312 : vector<9x32xi1>, vector<9x32xf32>
    %c3_183 = arith.constant 3 : index
    %c0_184 = arith.constant 0 : index
    %c0_185 = arith.constant 0 : index
    %314 = vector.load %arg10[%c3_183, %c0_184, %c0_185] : memref<4x1x32xf32, #tpu.memory_space<vmem>>, vector<1x1x32xf32>
    %315 = vector.shape_cast %314 : vector<1x1x32xf32> to vector<1x32xf32>
    %c3_186 = arith.constant 3 : index
    %c0_187 = arith.constant 0 : index
    %c0_188 = arith.constant 0 : index
    %316 = vector.load %arg11[%c3_186, %c0_187, %c0_188] : memref<4x1x32xf32, #tpu.memory_space<vmem>>, vector<1x1x32xf32>
    %317 = vector.shape_cast %316 : vector<1x1x32xf32> to vector<1x32xf32>
    %318 = vector.shape_cast %313 : vector<9x32xf32> to vector<1x9x32xf32>
    %cst_189 = arith.constant dense<0.000000e+00> : vector<1xf32>
    %319 = vector.multi_reduction <add>, %318, %cst_189 [1, 2] : vector<1x9x32xf32> to vector<1xf32>
    %320 = vector.shape_cast %319 : vector<1xf32> to vector<1x1x1xf32>
    %321 = vector.extract %320[0, 0, 0] : f32 from vector<1x1x1xf32>
    %cst_190 = arith.constant 2.880000e+02 : f32
    %322 = arith.divf %321, %cst_190 : f32
    %323 = vector.broadcast %322 : f32 to vector<9x32xf32>
    %324 = arith.subf %313, %323 : vector<9x32xf32>
    %325 = arith.mulf %324, %324 : vector<9x32xf32>
    %326 = vector.shape_cast %325 : vector<9x32xf32> to vector<1x9x32xf32>
    %cst_191 = arith.constant dense<0.000000e+00> : vector<1xf32>
    %327 = vector.multi_reduction <add>, %326, %cst_191 [1, 2] : vector<1x9x32xf32> to vector<1xf32>
    %328 = vector.shape_cast %327 : vector<1xf32> to vector<1x1x1xf32>
    %329 = vector.extract %328[0, 0, 0] : f32 from vector<1x1x1xf32>
    %cst_192 = arith.constant 2.880000e+02 : f32
    %330 = arith.divf %329, %cst_192 : f32
    %331 = vector.broadcast %322 : f32 to vector<9x32xf32>
    %332 = arith.subf %313, %331 : vector<9x32xf32>
    %cst_193 = arith.constant 9.99999993E-9 : f32
    %333 = arith.addf %330, %cst_193 : f32
    %334 = math.rsqrt %333 : f32
    %335 = vector.broadcast %334 : f32 to vector<9x32xf32>
    %336 = arith.mulf %332, %335 : vector<9x32xf32>
    %337 = vector.broadcast %315 : vector<1x32xf32> to vector<9x32xf32>
    %338 = arith.mulf %336, %337 : vector<9x32xf32>
    %339 = vector.broadcast %317 : vector<1x32xf32> to vector<9x32xf32>
    %340 = arith.addf %338, %339 : vector<9x32xf32>
    %c8_194 = arith.constant 8 : index
    %c0_195 = arith.constant 0 : index
    %341 = vector.load %arg25[%c8_194, %c0_195] : memref<17x32xf32, #tpu.memory_space<vmem>>, vector<9x32xf32>
    tpu.vector_store %arg25[%c8_194, %c0_195], %340 {strides = array<i32>} : memref<17x32xf32, #tpu.memory_space<vmem>>, vector<9x32xf32>,
    %c3_196 = arith.constant 3 : index
    %c0_197 = arith.constant 0 : index
    %c0_198 = arith.constant 0 : index
    %342 = vector.load %arg12[%c3_196, %c0_197, %c0_198] : memref<4x3x32xf32, #tpu.memory_space<vmem>>, vector<1x3x32xf32>
    %343 = vector.shape_cast %342 : vector<1x3x32xf32> to vector<3x32xf32>
    %344 = vector.extract_strided_slice %343 {offsets = [2, 0], sizes = [1, 32], strides = [1, 1]} : vector<3x32xf32> to vector<1x32xf32>
    %345 = vector.broadcast %344 : vector<1x32xf32> to vector<9x32xf32>
    %346 = arith.mulf %340, %345 : vector<9x32xf32>
    %c4_199 = arith.constant 4 : index
    %c0_200 = arith.constant 0 : index
    %347 = vector.load %arg25[%c4_199, %c0_200] : memref<17x32xf32, #tpu.memory_space<vmem>>, vector<9x32xf32>
    %348 = vector.extract_strided_slice %343 {offsets = [0, 0], sizes = [1, 32], strides = [1, 1]} : vector<3x32xf32> to vector<1x32xf32>
    %349 = vector.broadcast %348 : vector<1x32xf32> to vector<9x32xf32>
    %350 = arith.mulf %347, %349 : vector<9x32xf32>
    %351 = arith.addf %346, %350 : vector<9x32xf32>
    %c6_201 = arith.constant 6 : index
    %c0_202 = arith.constant 0 : index
    %352 = vector.load %arg25[%c6_201, %c0_202] : memref<17x32xf32, #tpu.memory_space<vmem>>, vector<9x32xf32>
    %353 = vector.extract_strided_slice %343 {offsets = [1, 0], sizes = [1, 32], strides = [1, 1]} : vector<3x32xf32> to vector<1x32xf32>
    %354 = vector.broadcast %353 : vector<1x32xf32> to vector<9x32xf32>
    %355 = arith.mulf %352, %354 : vector<9x32xf32>
    %356 = arith.addf %351, %355 : vector<9x32xf32>
    %c3_203 = arith.constant 3 : index
    %c0_204 = arith.constant 0 : index
    %c0_205 = arith.constant 0 : index
    %357 = vector.load %arg13[%c3_203, %c0_204, %c0_205] : memref<4x1x32xf32, #tpu.memory_space<vmem>>, vector<1x1x32xf32>
    %358 = vector.shape_cast %357 : vector<1x1x32xf32> to vector<1x32xf32>
    %359 = vector.broadcast %358 : vector<1x32xf32> to vector<9x32xf32>
    %360 = arith.addf %356, %359 : vector<9x32xf32>
    %c3_206 = arith.constant 3 : index
    %c0_207 = arith.constant 0 : index
    %c0_208 = arith.constant 0 : index
    %361 = vector.load %arg14[%c3_206, %c0_207, %c0_208] : memref<4x32x16xbf16, #tpu.memory_space<vmem>>, vector<1x32x16xbf16>
    %362 = vector.shape_cast %361 : vector<1x32x16xbf16> to vector<32x16xbf16>
    %363 = arith.truncf %360 : vector<9x32xf32> to vector<9x32xbf16>
    %cst_209 = arith.constant dense<0.000000e+00> : vector<9x16xf32>
    %364 = tpu.matmul %363, %362, %cst_209 {dimension_numbers = #tpu.dot_dimension_numbers<[1], [0], [0], [1], [0, 0, 1, 1], [], []>} : vector<9x32xbf16>, vector<32x16xbf16>, vector<9x16xf32> -> vector<9x16xf32>
    %c3_210 = arith.constant 3 : index
    %c0_211 = arith.constant 0 : index
    %c0_212 = arith.constant 0 : index
    %365 = vector.load %arg15[%c3_210, %c0_211, %c0_212] : memref<4x1x16xf32, #tpu.memory_space<vmem>>, vector<1x1x16xf32>
    %366 = vector.shape_cast %365 : vector<1x1x16xf32> to vector<1x16xf32>
    %367 = vector.broadcast %366 : vector<1x16xf32> to vector<9x16xf32>
    %368 = arith.addf %364, %367 : vector<9x16xf32>
    %c3_213 = arith.constant 3 : index
    %c0_214 = arith.constant 0 : index
    %c0_215 = arith.constant 0 : index
    %369 = vector.load %arg18[%c3_213, %c0_214, %c0_215] : memref<4x16x16xbf16, #tpu.memory_space<vmem>>, vector<1x16x16xbf16>
    %370 = vector.shape_cast %369 : vector<1x16x16xbf16> to vector<16x16xbf16>
    %371 = arith.truncf %368 : vector<9x16xf32> to vector<9x16xbf16>
    %cst_216 = arith.constant dense<0.000000e+00> : vector<9x16xf32>
    %372 = tpu.matmul %371, %370, %cst_216 {dimension_numbers = #tpu.dot_dimension_numbers<[1], [0], [0], [1], [0, 0, 1, 1], [], []>} : vector<9x16xbf16>, vector<16x16xbf16>, vector<9x16xf32> -> vector<9x16xf32>
    %373 = arith.addf %299, %372 : vector<9x16xf32>
    %c3_217 = arith.constant 3 : index
    %c0_218 = arith.constant 0 : index
    %c0_219 = arith.constant 0 : index
    %374 = vector.load %arg19[%c3_217, %c0_218, %c0_219] : memref<4x1x16xf32, #tpu.memory_space<vmem>>, vector<1x1x16xf32>
    %375 = vector.shape_cast %374 : vector<1x1x16xf32> to vector<1x16xf32>
    %376 = vector.broadcast %375 : vector<1x16xf32> to vector<9x16xf32>
    %377 = arith.addf %373, %376 : vector<9x16xf32>
    %c0_220 = arith.constant 0 : index
    %378 = memref.load %arg20[%c0_220] : memref<1xf32, #tpu.memory_space<smem>>
    %cst_221 = arith.constant 0.000000e+00 : f32
    %379 = vector.broadcast %cst_221 : f32 to vector<9x16xf32>
    %380 = arith.cmpf oge, %377, %379 : vector<9x16xf32>
    %381 = vector.broadcast %378 : f32 to vector<9x16xf32>
    %382 = arith.mulf %381, %377 : vector<9x16xf32>
    %383 = arith.select %380, %377, %382 : vector<9x16xi1>, vector<9x16xf32>
    %384 = arith.truncf %383 : vector<9x16xf32> to vector<9x16xbf16>
    %c0_222 = arith.constant 0 : index
    %c0_223 = arith.constant 0 : index
    %385 = vector.load %arg23[%c0_222, %c0_223] : memref<32x16xbf16, #tpu.memory_space<vmem>>, vector<32x16xbf16>
    %c0_224 = arith.constant 0 : index
    %c0_225 = arith.constant 0 : index
    %c0_226 = arith.constant 0 : index
    %386 = vector.load %arg21[%c0_224, %c0_225, %c0_226] : memref<2x16x32xbf16, #tpu.memory_space<vmem>>, vector<1x16x32xbf16>
    %387 = vector.shape_cast %386 : vector<1x16x32xbf16> to vector<16x32xbf16>
    %cst_227 = arith.constant dense<0.000000e+00> : vector<9x32xf32>
    %388 = tpu.matmul %384, %387, %cst_227 {dimension_numbers = #tpu.dot_dimension_numbers<[1], [0], [0], [1], [0, 0, 1, 1], [], []>} : vector<9x16xbf16>, vector<16x32xbf16>, vector<9x32xf32> -> vector<9x32xf32>
    %c0_228 = arith.constant 0 : index
    %c0_229 = arith.constant 0 : index
    %c0_230 = arith.constant 0 : index
    %389 = vector.load %arg22[%c0_228, %c0_229, %c0_230] : memref<2x1x32xf32, #tpu.memory_space<vmem>>, vector<1x1x32xf32>
    %390 = vector.shape_cast %389 : vector<1x1x32xf32> to vector<1x32xf32>
    %391 = vector.broadcast %390 : vector<1x32xf32> to vector<9x32xf32>
    %392 = arith.addf %388, %391 : vector<9x32xf32>
    %393 = arith.negf %392 : vector<9x32xf32>
    %394 = math.exp %393 : vector<9x32xf32>
    %cst_231 = arith.constant 1.000000e+00 : f32
    %395 = vector.broadcast %cst_231 : f32 to vector<9x32xf32>
    %396 = arith.addf %395, %394 : vector<9x32xf32>
    %397 = arith.divf %395, %396 : vector<9x32xf32>
    %398 = arith.truncf %397 : vector<9x32xf32> to vector<9x32xbf16>
    %cst_232 = arith.constant dense<0.000000e+00> : vector<9x16xf32>
    %399 = tpu.matmul %398, %385, %cst_232 {dimension_numbers = #tpu.dot_dimension_numbers<[1], [0], [0], [1], [0, 0, 1, 1], [], []>} : vector<9x32xbf16>, vector<32x16xbf16>, vector<9x16xf32> -> vector<9x16xf32>
    %400 = vector.extract_strided_slice %399 {offsets = [1, 0], sizes = [8, 8], strides = [1, 1]} : vector<9x16xf32> to vector<8x8xf32>
    %401 = vector.extract_strided_slice %399 {offsets = [0, 8], sizes = [8, 8], strides = [1, 1]} : vector<9x16xf32> to vector<8x8xf32>
    %402 = arith.addf %400, %401 : vector<8x8xf32>
    %c0_233 = arith.constant 0 : index
    %c0_234 = arith.constant 0 : index
    %c0_235 = arith.constant 0 : index
    %c0_236 = arith.constant 0 : index
    %403 = vector.load %arg24[%c0_233, %c0_234, %c0_235, %c0_236] : memref<1x2x8x8xf32, #tpu.memory_space<vmem>>, vector<1x1x8x8xf32>
    %404 = vector.shape_cast %403 : vector<1x1x8x8xf32> to vector<8x8xf32>
    %405 = vector.shape_cast %402 : vector<8x8xf32> to vector<1x1x8x8xf32>
    tpu.vector_store %arg24[%c0_233, %c0_234, %c0_235, %c0_236], %405 {strides = array<i32>} : memref<1x2x8x8xf32, #tpu.memory_space<vmem>>, vector<1x1x8x8xf32>,
    %c1_237 = arith.constant 1 : index
    %c0_238 = arith.constant 0 : index
    %c0_239 = arith.constant 0 : index
    %406 = vector.load %arg21[%c1_237, %c0_238, %c0_239] : memref<2x16x32xbf16, #tpu.memory_space<vmem>>, vector<1x16x32xbf16>
    %407 = vector.shape_cast %406 : vector<1x16x32xbf16> to vector<16x32xbf16>
    %cst_240 = arith.constant dense<0.000000e+00> : vector<9x32xf32>
    %408 = tpu.matmul %384, %407, %cst_240 {dimension_numbers = #tpu.dot_dimension_numbers<[1], [0], [0], [1], [0, 0, 1, 1], [], []>} : vector<9x16xbf16>, vector<16x32xbf16>, vector<9x32xf32> -> vector<9x32xf32>
    %c1_241 = arith.constant 1 : index
    %c0_242 = arith.constant 0 : index
    %c0_243 = arith.constant 0 : index
    %409 = vector.load %arg22[%c1_241, %c0_242, %c0_243] : memref<2x1x32xf32, #tpu.memory_space<vmem>>, vector<1x1x32xf32>
    %410 = vector.shape_cast %409 : vector<1x1x32xf32> to vector<1x32xf32>
    %411 = vector.broadcast %410 : vector<1x32xf32> to vector<9x32xf32>
    %412 = arith.addf %408, %411 : vector<9x32xf32>
    %413 = arith.negf %412 : vector<9x32xf32>
    %414 = math.exp %413 : vector<9x32xf32>
    %cst_244 = arith.constant 1.000000e+00 : f32
    %415 = vector.broadcast %cst_244 : f32 to vector<9x32xf32>
    %416 = arith.addf %415, %414 : vector<9x32xf32>
    %417 = arith.divf %415, %416 : vector<9x32xf32>
    %418 = arith.truncf %417 : vector<9x32xf32> to vector<9x32xbf16>
    %cst_245 = arith.constant dense<0.000000e+00> : vector<9x16xf32>
    %419 = tpu.matmul %418, %385, %cst_245 {dimension_numbers = #tpu.dot_dimension_numbers<[1], [0], [0], [1], [0, 0, 1, 1], [], []>} : vector<9x32xbf16>, vector<32x16xbf16>, vector<9x16xf32> -> vector<9x16xf32>
    %420 = vector.extract_strided_slice %419 {offsets = [1, 0], sizes = [8, 8], strides = [1, 1]} : vector<9x16xf32> to vector<8x8xf32>
    %421 = vector.extract_strided_slice %419 {offsets = [0, 8], sizes = [8, 8], strides = [1, 1]} : vector<9x16xf32> to vector<8x8xf32>
    %422 = arith.addf %420, %421 : vector<8x8xf32>
    %c0_246 = arith.constant 0 : index
    %c1_247 = arith.constant 1 : index
    %c0_248 = arith.constant 0 : index
    %c0_249 = arith.constant 0 : index
    %423 = vector.load %arg24[%c0_246, %c1_247, %c0_248, %c0_249] : memref<1x2x8x8xf32, #tpu.memory_space<vmem>>, vector<1x1x8x8xf32>
    %424 = vector.shape_cast %423 : vector<1x1x8x8xf32> to vector<8x8xf32>
    %425 = vector.shape_cast %422 : vector<8x8xf32> to vector<1x1x8x8xf32>
    tpu.vector_store %arg24[%c0_246, %c1_247, %c0_248, %c0_249], %425 {strides = array<i32>} : memref<1x2x8x8xf32, #tpu.memory_space<vmem>>, vector<1x1x8x8xf32>,
    return
  }
  func.func @transform_0(%arg0: i32) -> (i32, i32, i32) {
    %c0_i32 = arith.constant 0 : i32
    %c0_i32_0 = arith.constant 0 : i32
    %c0_i32_1 = arith.constant 0 : i32
    return %arg0, %c0_i32, %c0_i32_0 : i32, i32, i32
  }
  func.func @transform_1(%arg0: i32) -> (i32, i32) {
    %c0_i32 = arith.constant 0 : i32
    %c0_i32_0 = arith.constant 0 : i32
    %c0_i32_1 = arith.constant 0 : i32
    return %c0_i32, %c0_i32_0 : i32, i32
  }
  func.func @transform_2(%arg0: i32) -> (i32, i32) {
    %c0_i32 = arith.constant 0 : i32
    %c0_i32_0 = arith.constant 0 : i32
    %c0_i32_1 = arith.constant 0 : i32
    return %c0_i32, %c0_i32_0 : i32, i32
  }
  func.func @transform_3(%arg0: i32) -> (i32, i32) {
    %c0_i32 = arith.constant 0 : i32
    %c0_i32_0 = arith.constant 0 : i32
    %c0_i32_1 = arith.constant 0 : i32
    return %c0_i32, %c0_i32_0 : i32, i32
  }
  func.func @transform_4(%arg0: i32) -> (i32, i32) {
    %c0_i32 = arith.constant 0 : i32
    %c0_i32_0 = arith.constant 0 : i32
    %c0_i32_1 = arith.constant 0 : i32
    return %c0_i32, %c0_i32_0 : i32, i32
  }
  func.func @transform_5(%arg0: i32) -> (i32, i32) {
    %c0_i32 = arith.constant 0 : i32
    %c0_i32_0 = arith.constant 0 : i32
    %c0_i32_1 = arith.constant 0 : i32
    return %c0_i32, %c0_i32_0 : i32, i32
  }
  func.func @transform_6(%arg0: i32) -> (i32, i32, i32) {
    %c0_i32 = arith.constant 0 : i32
    %c0_i32_0 = arith.constant 0 : i32
    %c0_i32_1 = arith.constant 0 : i32
    %c0_i32_2 = arith.constant 0 : i32
    return %c0_i32, %c0_i32_0, %c0_i32_1 : i32, i32, i32
  }
  func.func @transform_7(%arg0: i32) -> (i32, i32, i32) {
    %c0_i32 = arith.constant 0 : i32
    %c0_i32_0 = arith.constant 0 : i32
    %c0_i32_1 = arith.constant 0 : i32
    %c0_i32_2 = arith.constant 0 : i32
    return %c0_i32, %c0_i32_0, %c0_i32_1 : i32, i32, i32
  }
  func.func @transform_8(%arg0: i32) -> i32 {
    %c0_i32 = arith.constant 0 : i32
    %c0_i32_0 = arith.constant 0 : i32
    return %c0_i32 : i32
  }
  func.func @transform_9(%arg0: i32) -> (i32, i32, i32) {
    %c0_i32 = arith.constant 0 : i32
    %c0_i32_0 = arith.constant 0 : i32
    %c0_i32_1 = arith.constant 0 : i32
    %c0_i32_2 = arith.constant 0 : i32
    return %c0_i32, %c0_i32_0, %c0_i32_1 : i32, i32, i32
  }
  func.func @transform_10(%arg0: i32) -> (i32, i32, i32) {
    %c0_i32 = arith.constant 0 : i32
    %c0_i32_0 = arith.constant 0 : i32
    %c0_i32_1 = arith.constant 0 : i32
    %c0_i32_2 = arith.constant 0 : i32
    return %c0_i32, %c0_i32_0, %c0_i32_1 : i32, i32, i32
  }
  func.func @transform_11(%arg0: i32) -> (i32, i32, i32) {
    %c0_i32 = arith.constant 0 : i32
    %c0_i32_0 = arith.constant 0 : i32
    %c0_i32_1 = arith.constant 0 : i32
    %c0_i32_2 = arith.constant 0 : i32
    return %c0_i32, %c0_i32_0, %c0_i32_1 : i32, i32, i32
  }
  func.func @transform_12(%arg0: i32) -> (i32, i32, i32) {
    %c0_i32 = arith.constant 0 : i32
    %c0_i32_0 = arith.constant 0 : i32
    %c0_i32_1 = arith.constant 0 : i32
    %c0_i32_2 = arith.constant 0 : i32
    return %c0_i32, %c0_i32_0, %c0_i32_1 : i32, i32, i32
  }
  func.func @transform_13(%arg0: i32) -> (i32, i32, i32) {
    %c0_i32 = arith.constant 0 : i32
    %c0_i32_0 = arith.constant 0 : i32
    %c0_i32_1 = arith.constant 0 : i32
    %c0_i32_2 = arith.constant 0 : i32
    return %c0_i32, %c0_i32_0, %c0_i32_1 : i32, i32, i32
  }
  func.func @transform_14(%arg0: i32) -> (i32, i32, i32) {
    %c0_i32 = arith.constant 0 : i32
    %c0_i32_0 = arith.constant 0 : i32
    %c0_i32_1 = arith.constant 0 : i32
    %c0_i32_2 = arith.constant 0 : i32
    return %c0_i32, %c0_i32_0, %c0_i32_1 : i32, i32, i32
  }
  func.func @transform_15(%arg0: i32) -> (i32, i32, i32) {
    %c0_i32 = arith.constant 0 : i32
    %c0_i32_0 = arith.constant 0 : i32
    %c0_i32_1 = arith.constant 0 : i32
    %c0_i32_2 = arith.constant 0 : i32
    return %c0_i32, %c0_i32_0, %c0_i32_1 : i32, i32, i32
  }
  func.func @transform_16(%arg0: i32) -> (i32, i32, i32) {
    %c0_i32 = arith.constant 0 : i32
    %c0_i32_0 = arith.constant 0 : i32
    %c0_i32_1 = arith.constant 0 : i32
    %c0_i32_2 = arith.constant 0 : i32
    return %c0_i32, %c0_i32_0, %c0_i32_1 : i32, i32, i32
  }
  func.func @transform_17(%arg0: i32) -> (i32, i32, i32) {
    %c0_i32 = arith.constant 0 : i32
    %c0_i32_0 = arith.constant 0 : i32
    %c0_i32_1 = arith.constant 0 : i32
    %c0_i32_2 = arith.constant 0 : i32
    return %c0_i32, %c0_i32_0, %c0_i32_1 : i32, i32, i32
  }
  func.func @transform_18(%arg0: i32) -> (i32, i32, i32) {
    %c0_i32 = arith.constant 0 : i32
    %c0_i32_0 = arith.constant 0 : i32
    %c0_i32_1 = arith.constant 0 : i32
    %c0_i32_2 = arith.constant 0 : i32
    return %c0_i32, %c0_i32_0, %c0_i32_1 : i32, i32, i32
  }
  func.func @transform_19(%arg0: i32) -> i32 {
    %c0_i32 = arith.constant 0 : i32
    %c0_i32_0 = arith.constant 0 : i32
    return %c0_i32 : i32
  }
  func.func @transform_20(%arg0: i32) -> (i32, i32, i32) {
    %c0_i32 = arith.constant 0 : i32
    %c0_i32_0 = arith.constant 0 : i32
    %c0_i32_1 = arith.constant 0 : i32
    %c0_i32_2 = arith.constant 0 : i32
    return %c0_i32, %c0_i32_0, %c0_i32_1 : i32, i32, i32
  }
  func.func @transform_21(%arg0: i32) -> (i32, i32, i32) {
    %c0_i32 = arith.constant 0 : i32
    %c0_i32_0 = arith.constant 0 : i32
    %c0_i32_1 = arith.constant 0 : i32
    %c0_i32_2 = arith.constant 0 : i32
    return %c0_i32, %c0_i32_0, %c0_i32_1 : i32, i32, i32
  }
  func.func @transform_22(%arg0: i32) -> (i32, i32) {
    %c0_i32 = arith.constant 0 : i32
    %c0_i32_0 = arith.constant 0 : i32
    %c0_i32_1 = arith.constant 0 : i32
    return %c0_i32, %c0_i32_0 : i32, i32
  }
  func.func @transform_23(%arg0: i32) -> (i32, i32, i32, i32) {
    %c0_i32 = arith.constant 0 : i32
    %c0_i32_0 = arith.constant 0 : i32
    %c0_i32_1 = arith.constant 0 : i32
    %c0_i32_2 = arith.constant 0 : i32
    return %arg0, %c0_i32, %c0_i32_0, %c0_i32_1 : i32, i32, i32, i32
  }
}

</mosaic_0001>

<llo_original>
// kernel: tpu_custom_call.1
$region0: #{tpu_custom_call.1}
  #allocation0 [shape = 'u32[]', space=smem, size = 0x4, offset = 0x4, fixed_abs, tag = 'smem constant byte address 0x4 - core index']
  #allocation1 [shape = 'u32[144,128]{1,0:T(1,128)}', space=vmem, size = 0x12000, scoped, tag = 'internal scratch']
  #allocation2 [shape = 'f32[17,32]{1,0:T(8,128)}', space=vmem, size = 0x3000, scoped, tag = 'scratch operand']
  #allocation3 [shape = 'f32[1]{0:T(128)S(6)}', space=smem, size = 0x200, scoped, tag = 'scoped memory for tpu_custom_call.1']
  %s0 = inlined_call_operand.vmem [shape: f32[2,9,16], index: 0, kind: input, shape index: {}]
  %s1 = inlined_call_operand.vmem [shape: bf16[16,32], index: 1, kind: input, shape index: {}]
  %s2 = inlined_call_operand.vmem [shape: f32[1,32], index: 2, kind: input, shape index: {}]
  %s3 = inlined_call_operand.vmem [shape: f32[1,32], index: 3, kind: input, shape index: {}]
  %s4 = inlined_call_operand.vmem [shape: bf16[32,16], index: 4, kind: input, shape index: {}]
  %s5 = inlined_call_operand.vmem [shape: f32[1,16], index: 5, kind: input, shape index: {}]
  %s6 = inlined_call_operand.vmem [shape: bf16[4,16,32], index: 6, kind: input, shape index: {}]
  %s7 = inlined_call_operand.vmem [shape: f32[4,1,32], index: 7, kind: input, shape index: {}]
  %s8 = inlined_call_operand.vmem [shape: f32[4], index: 8, kind: input, shape index: {}]
  %s9 = inlined_call_operand.vmem [shape: f32[4,1,32], index: 9, kind: input, shape index: {}]
  %s10 = inlined_call_operand.vmem [shape: f32[4,1,32], index: 10, kind: input, shape index: {}]
  %s11 = inlined_call_operand.vmem [shape: f32[4,3,32], index: 11, kind: input, shape index: {}]
  %s12 = inlined_call_operand.vmem [shape: f32[4,1,32], index: 12, kind: input, shape index: {}]
  %s13 = inlined_call_operand.vmem [shape: bf16[4,32,16], index: 13, kind: input, shape index: {}]
  %s14 = inlined_call_operand.vmem [shape: f32[4,1,16], index: 14, kind: input, shape index: {}]
  %s15 = inlined_call_operand.vmem [shape: bf16[4,16,16], index: 15, kind: input, shape index: {}]
  %s16 = inlined_call_operand.vmem [shape: f32[4,1,16], index: 16, kind: input, shape index: {}]
  %s17 = inlined_call_operand.vmem [shape: bf16[4,16,16], index: 17, kind: input, shape index: {}]
  %s18 = inlined_call_operand.vmem [shape: f32[4,1,16], index: 18, kind: input, shape index: {}]
  %s19 = inlined_call_operand.<no memory space> [shape: f32[1], index: 19, kind: input, shape index: {}]
  %s20 = inlined_call_operand.vmem [shape: bf16[2,16,32], index: 20, kind: input, shape index: {}]
  %s21 = inlined_call_operand.vmem [shape: f32[2,1,32], index: 21, kind: input, shape index: {}]
  %s22 = inlined_call_operand.vmem [shape: bf16[32,16], index: 22, kind: input, shape index: {}]
  %s23 = inlined_call_operand.hbm [shape: f32[2,2,8,8], index: 23, kind: output, shape index: {}]
  %s24 = sld [smem:[#allocation0]]
  $region129: #{tpu_custom_call.1} parent=0
    _
  %s26 = ssub.s32 1, %s24
  %s27 = scalar_select 0, %s26, %s24
  %28 = sst [smem:[#allocation3]] %s19
  $region1: #{tpu_custom_call.1} parent=0
    #allocation4 [shape = 'u8[512]{0}', space=smem, size = 0x200, scoped, tag = 'input window, operand 8, single buffered']
    #allocation5 [shape = 's32[2]{0}', space=sflag, size = 0x8, scoped, tag = 'scoped memory for tpu_custom_call.1']
    #allocation6 [shape = 's32[2]{0}', space=sflag, size = 0x8, scoped, tag = 'scoped memory for tpu_custom_call.1']
    #allocation7 [shape = 'u8[16384]{0}', space=vmem, size = 0x4000, scoped, tag = 'output window, operand 0']
    %29 = vsyncpa [#allocation6], 0
    %30 = vsyncpa [#allocation5], 0
    %s31 = scalar_lea.sflag [#allocation5], 1
    %32 = vsyncpa %s31, 0
    loop: start=0, step=1, limit=4
    $region2: #{tpu_custom_call.1} parent=1 // loop_pre_header
      _
    $region3: #{tpu_custom_call.1} parent=1 // loop_header
      %s34 = sphi 0, %s38
      %p35 = scmp.ge.s32.totalorder %s34, 4
      %s44 = sphi 0, %s46
      %s47 = sphi 0, %s44
      %s48 = sphi 0, %s47
      %s64 = sphi 0, %s48
      %s68 = sphi 0, %s68
      %s70 = sphi 0, %s68
      %s71 = sphi 0, %s70
      %s85 = sphi 0, %s71
      %s89 = sphi 0, %s89
      %s91 = sphi 0, %s89
      %s92 = sphi 0, %s91
      %s106 = sphi 0, %s92
      %s110 = sphi 0, %s110
      %s112 = sphi 0, %s110
      %s113 = sphi 0, %s112
      %s127 = sphi 0, %s113
      %s131 = sphi 0, %s131
      %s133 = sphi 0, %s131
      %s134 = sphi 0, %s133
      %s148 = sphi 0, %s134
      %s152 = sphi 0, %s152
      %s154 = sphi 0, %s152
      %s155 = sphi 0, %s154
      %s169 = sphi 0, %s155
      %s173 = sphi 0, %s173
      %s175 = sphi 0, %s173
      %s176 = sphi 0, %s175
      %s190 = sphi 0, %s176
      %s194 = sphi 0, %s194
      %s196 = sphi 0, %s194
      %s197 = sphi 0, %s196
      %s211 = sphi 0, %s197
      %s215 = sphi 0, %s215
      %s217 = sphi 0, %s215
      %s218 = sphi 0, %s217
      %s232 = sphi 0, %s218
      %s236 = sphi 0, %s236
      %s238 = sphi 0, %s236
      %s239 = sphi 0, %s238
      %s253 = sphi 0, %s239
      %s257 = sphi 0, %s257
      %s259 = sphi 0, %s257
      %s260 = sphi 0, %s259
      %s274 = sphi 0, %s260
      %s278 = sphi 0, %s278
      %s280 = sphi 0, %s278
      %s281 = sphi 0, %s280
      %s295 = sphi 0, %s281
      %s299 = sphi 0, %s299
      %s301 = sphi 0, %s299
      %s302 = sphi 0, %s301
      %s316 = sphi 0, %s302
      %s320 = sphi 0, %s320
      %s322 = sphi 0, %s320
      %s323 = sphi 0, %s322
      %s337 = sphi 0, %s323
      %s341 = sphi 0, %s341
      %s343 = sphi 0, %s341
      %s344 = sphi 0, %s343
      %s358 = sphi 0, %s344
      %s362 = sphi 0, %s362
      %s364 = sphi 0, %s362
      %s365 = sphi 0, %s364
      %s379 = sphi 0, %s365
      %s383 = sphi 0, %s383
      %s385 = sphi 0, %s383
      %s386 = sphi 0, %s385
      %s400 = sphi 0, %s386
      %s404 = sphi 0, %s404
      %s406 = sphi 0, %s404
      %s407 = sphi 0, %s406
      %s421 = sphi 0, %s407
      %s425 = sphi 0, %s425
      %s427 = sphi 0, %s425
      %s428 = sphi 0, %s427
      %s442 = sphi 0, %s428
      %s446 = sphi 0, %s446
      %s448 = sphi 0, %s446
      %s449 = sphi 0, %s448
      %s463 = sphi 0, %s449
      %s467 = sphi 0, %s467
      %s469 = sphi 0, %s467
      %s470 = sphi 0, %s469
      %s484 = sphi 0, %s470
      %s488 = sphi 0, %s488
      %s490 = sphi 0, %s488
      %s491 = sphi 0, %s490
      %s505 = sphi 0, %s491
      %s509 = sphi 0, %s509
      %s511 = sphi 0, %s509
      %s512 = sphi 0, %s511
      %s526 = sphi 0, %s512
      %s532 = sphi 0, %s534
      %s535 = sphi 0, %s532
      %s536 = sphi 0, %s535
      %s552 = sphi 0, %s536
    $region4: #{tpu_custom_call.1} parent=1 // loop_header_branch
      %37 = sbr.rel (%p35) target = $region8
    $region5: #{tpu_custom_call.1} parent=1 // loop_body
      %s39 = ssub.s32 %s34, 1
      %s40 = ssub.s32 %s34, 2
      %s41 = sadd.s32 %s34, 1
      %s42 = ssub.s32 %s34, %s41
      %p43 = scmp.eq.s32.totalorder %s42, 0
      %s45 = sadd.s32 %s44, 1
      %s46 = scalar_select %p43, %s44, %s45
      %p49 = pneg %p43
      %p50 = scmp.eq.s32.totalorder %s34, 1
      %p51 = por %p49, %p50
      %p52 = scmp.ne.s32.totalorder %s44, %s47
      %p53 = scmp.eq.s32.totalorder %s34, 0
      %p54 = por %p52, %p53
      %p55 = scmp.ne.s32.totalorder %s44, %s47
      %p56 = scmp.eq.s32.totalorder %s39, 1
      %p57 = por %p55, %p56
      %p58 = scmp.ne.s32.totalorder %s47, %s48
      %p59 = scmp.eq.s32.totalorder %s39, 0
      %p60 = por %p58, %p59
      %p61 = scmp.ne.s32.totalorder %s47, %s48
      %p62 = scmp.eq.s32.totalorder %s40, 1
      %p63 = por %p61, %p62
      %p65 = scmp.ne.s32.totalorder %s48, %s64
      %p66 = scmp.eq.s32.totalorder %s40, 0
      %p67 = por %p65, %p66
      %s69 = sadd.s32 %s68, 1
      %p72 = scmp.eq.s32.totalorder %s34, 1
      %p73 = scmp.ne.s32.totalorder %s68, %s70
      %p74 = scmp.eq.s32.totalorder %s34, 0
      %p75 = por %p73, %p74
      %p76 = scmp.ne.s32.totalorder %s68, %s70
      %p77 = scmp.eq.s32.totalorder %s39, 1
      %p78 = por %p76, %p77
      %p79 = scmp.ne.s32.totalorder %s70, %s71
      %p80 = scmp.eq.s32.totalorder %s39, 0
      %p81 = por %p79, %p80
      %p82 = scmp.ne.s32.totalorder %s70, %s71
      %p83 = scmp.eq.s32.totalorder %s40, 1
      %p84 = por %p82, %p83
      %p86 = scmp.ne.s32.totalorder %s71, %s85
      %p87 = scmp.eq.s32.totalorder %s40, 0
      %p88 = por %p86, %p87
      %s90 = sadd.s32 %s89, 1
      %p93 = scmp.eq.s32.totalorder %s34, 1
      %p94 = scmp.ne.s32.totalorder %s89, %s91
      %p95 = scmp.eq.s32.totalorder %s34, 0
      %p96 = por %p94, %p95
      %p97 = scmp.ne.s32.totalorder %s89, %s91
      %p98 = scmp.eq.s32.totalorder %s39, 1
      %p99 = por %p97, %p98
      %p100 = scmp.ne.s32.totalorder %s91, %s92
      %p101 = scmp.eq.s32.totalorder %s39, 0
      %p102 = por %p100, %p101
      %p103 = scmp.ne.s32.totalorder %s91, %s92
      %p104 = scmp.eq.s32.totalorder %s40, 1
      %p105 = por %p103, %p104
      %p107 = scmp.ne.s32.totalorder %s92, %s106
      %p108 = scmp.eq.s32.totalorder %s40, 0
      %p109 = por %p107, %p108
      %s111 = sadd.s32 %s110, 1
      %p114 = scmp.eq.s32.totalorder %s34, 1
      %p115 = scmp.ne.s32.totalorder %s110, %s112
      %p116 = scmp.eq.s32.totalorder %s34, 0
      %p117 = por %p115, %p116
      %p118 = scmp.ne.s32.totalorder %s110, %s112
      %p119 = scmp.eq.s32.totalorder %s39, 1
      %p120 = por %p118, %p119
      %p121 = scmp.ne.s32.totalorder %s112, %s113
      %p122 = scmp.eq.s32.totalorder %s39, 0
      %p123 = por %p121, %p122
      %p124 = scmp.ne.s32.totalorder %s112, %s113
      %p125 = scmp.eq.s32.totalorder %s40, 1
      %p126 = por %p124, %p125
      %p128 = scmp.ne.s32.totalorder %s113, %s127
      %p129 = scmp.eq.s32.totalorder %s40, 0
      %p130 = por %p128, %p129
      %s132 = sadd.s32 %s131, 1
      %p135 = scmp.eq.s32.totalorder %s34, 1
      %p136 = scmp.ne.s32.totalorder %s131, %s133
      %p137 = scmp.eq.s32.totalorder %s34, 0
      %p138 = por %p136, %p137
      %p139 = scmp.ne.s32.totalorder %s131, %s133
      %p140 = scmp.eq.s32.totalorder %s39, 1
      %p141 = por %p139, %p140
      %p142 = scmp.ne.s32.totalorder %s133, %s134
      %p143 = scmp.eq.s32.totalorder %s39, 0
      %p144 = por %p142, %p143
      %p145 = scmp.ne.s32.totalorder %s133, %s134
      %p146 = scmp.eq.s32.totalorder %s40, 1
      %p147 = por %p145, %p146
      %p149 = scmp.ne.s32.totalorder %s134, %s148
      %p150 = scmp.eq.s32.totalorder %s40, 0
      %p151 = por %p149, %p150
      %s153 = sadd.s32 %s152, 1
      %p156 = scmp.eq.s32.totalorder %s34, 1
      %p157 = scmp.ne.s32.totalorder %s152, %s154
      %p158 = scmp.eq.s32.totalorder %s34, 0
      %p159 = por %p157, %p158
      %p160 = scmp.ne.s32.totalorder %s152, %s154
      %p161 = scmp.eq.s32.totalorder %s39, 1
      %p162 = por %p160, %p161
      %p163 = scmp.ne.s32.totalorder %s154, %s155
      %p164 = scmp.eq.s32.totalorder %s39, 0
      %p165 = por %p163, %p164
      %p166 = scmp.ne.s32.totalorder %s154, %s155
      %p167 = scmp.eq.s32.totalorder %s40, 1
      %p168 = por %p166, %p167
      %p170 = scmp.ne.s32.totalorder %s155, %s169
      %p171 = scmp.eq.s32.totalorder %s40, 0
      %p172 = por %p170, %p171
      %s174 = sadd.s32 %s173, 1
      %p177 = scmp.eq.s32.totalorder %s34, 1
      %p178 = scmp.ne.s32.totalorder %s173, %s175
      %p179 = scmp.eq.s32.totalorder %s34, 0
      %p180 = por %p178, %p179
      %p181 = scmp.ne.s32.totalorder %s173, %s175
      %p182 = scmp.eq.s32.totalorder %s39, 1
      %p183 = por %p181, %p182
      %p184 = scmp.ne.s32.totalorder %s175, %s176
      %p185 = scmp.eq.s32.totalorder %s39, 0
      %p186 = por %p184, %p185
      %p187 = scmp.ne.s32.totalorder %s175, %s176
      %p188 = scmp.eq.s32.totalorder %s40, 1
      %p189 = por %p187, %p188
      %p191 = scmp.ne.s32.totalorder %s176, %s190
      %p192 = scmp.eq.s32.totalorder %s40, 0
      %p193 = por %p191, %p192
      %s195 = sadd.s32 %s194, 1
      %p198 = scmp.eq.s32.totalorder %s34, 1
      %p199 = scmp.ne.s32.totalorder %s194, %s196
      %p200 = scmp.eq.s32.totalorder %s34, 0
      %p201 = por %p199, %p200
      %p202 = scmp.ne.s32.totalorder %s194, %s196
      %p203 = scmp.eq.s32.totalorder %s39, 1
      %p204 = por %p202, %p203
      %p205 = scmp.ne.s32.totalorder %s196, %s197
      %p206 = scmp.eq.s32.totalorder %s39, 0
      %p207 = por %p205, %p206
      %p208 = scmp.ne.s32.totalorder %s196, %s197
      %p209 = scmp.eq.s32.totalorder %s40, 1
      %p210 = por %p208, %p209
      %p212 = scmp.ne.s32.totalorder %s197, %s211
      %p213 = scmp.eq.s32.totalorder %s40, 0
      %p214 = por %p212, %p213
      %s216 = sadd.s32 %s215, 1
      %p219 = scmp.eq.s32.totalorder %s34, 1
      %p220 = scmp.ne.s32.totalorder %s215, %s217
      %p221 = scmp.eq.s32.totalorder %s34, 0
      %p222 = por %p220, %p221
      %p223 = scmp.ne.s32.totalorder %s215, %s217
      %p224 = scmp.eq.s32.totalorder %s39, 1
      %p225 = por %p223, %p224
      %p226 = scmp.ne.s32.totalorder %s217, %s218
      %p227 = scmp.eq.s32.totalorder %s39, 0
      %p228 = por %p226, %p227
      %p229 = scmp.ne.s32.totalorder %s217, %s218
      %p230 = scmp.eq.s32.totalorder %s40, 1
      %p231 = por %p229, %p230
      %p233 = scmp.ne.s32.totalorder %s218, %s232
      %p234 = scmp.eq.s32.totalorder %s40, 0
      %p235 = por %p233, %p234
      %s237 = sadd.s32 %s236, 1
      %p240 = scmp.eq.s32.totalorder %s34, 1
      %p241 = scmp.ne.s32.totalorder %s236, %s238
      %p242 = scmp.eq.s32.totalorder %s34, 0
      %p243 = por %p241, %p242
      %p244 = scmp.ne.s32.totalorder %s236, %s238
      %p245 = scmp.eq.s32.totalorder %s39, 1
      %p246 = por %p244, %p245
      %p247 = scmp.ne.s32.totalorder %s238, %s239
      %p248 = scmp.eq.s32.totalorder %s39, 0
      %p249 = por %p247, %p248
      %p250 = scmp.ne.s32.totalorder %s238, %s239
      %p251 = scmp.eq.s32.totalorder %s40, 1
      %p252 = por %p250, %p251
      %p254 = scmp.ne.s32.totalorder %s239, %s253
      %p255 = scmp.eq.s32.totalorder %s40, 0
      %p256 = por %p254, %p255
      %s258 = sadd.s32 %s257, 1
      %p261 = scmp.eq.s32.totalorder %s34, 1
      %p262 = scmp.ne.s32.totalorder %s257, %s259
      %p263 = scmp.eq.s32.totalorder %s34, 0
      %p264 = por %p262, %p263
      %p265 = scmp.ne.s32.totalorder %s257, %s259
      %p266 = scmp.eq.s32.totalorder %s39, 1
      %p267 = por %p265, %p266
      %p268 = scmp.ne.s32.totalorder %s259, %s260
      %p269 = scmp.eq.s32.totalorder %s39, 0
      %p270 = por %p268, %p269
      %p271 = scmp.ne.s32.totalorder %s259, %s260
      %p272 = scmp.eq.s32.totalorder %s40, 1
      %p273 = por %p271, %p272
      %p275 = scmp.ne.s32.totalorder %s260, %s274
      %p276 = scmp.eq.s32.totalorder %s40, 0
      %p277 = por %p275, %p276
      %s279 = sadd.s32 %s278, 1
      %p282 = scmp.eq.s32.totalorder %s34, 1
      %p283 = scmp.ne.s32.totalorder %s278, %s280
      %p284 = scmp.eq.s32.totalorder %s34, 0
      %p285 = por %p283, %p284
      %p286 = scmp.ne.s32.totalorder %s278, %s280
      %p287 = scmp.eq.s32.totalorder %s39, 1
      %p288 = por %p286, %p287
      %p289 = scmp.ne.s32.totalorder %s280, %s281
      %p290 = scmp.eq.s32.totalorder %s39, 0
      %p291 = por %p289, %p290
      %p292 = scmp.ne.s32.totalorder %s280, %s281
      %p293 = scmp.eq.s32.totalorder %s40, 1
      %p294 = por %p292, %p293
      %p296 = scmp.ne.s32.totalorder %s281, %s295
      %p297 = scmp.eq.s32.totalorder %s40, 0
      %p298 = por %p296, %p297
      %s300 = sadd.s32 %s299, 1
      %p303 = scmp.eq.s32.totalorder %s34, 1
      %p304 = scmp.ne.s32.totalorder %s299, %s301
      %p305 = scmp.eq.s32.totalorder %s34, 0
      %p306 = por %p304, %p305
      %p307 = scmp.ne.s32.totalorder %s299, %s301
      %p308 = scmp.eq.s32.totalorder %s39, 1
      %p309 = por %p307, %p308
      %p310 = scmp.ne.s32.totalorder %s301, %s302
      %p311 = scmp.eq.s32.totalorder %s39, 0
      %p312 = por %p310, %p311
      %p313 = scmp.ne.s32.totalorder %s301, %s302
      %p314 = scmp.eq.s32.totalorder %s40, 1
      %p315 = por %p313, %p314
      %p317 = scmp.ne.s32.totalorder %s302, %s316
      %p318 = scmp.eq.s32.totalorder %s40, 0
      %p319 = por %p317, %p318
      %s321 = sadd.s32 %s320, 1
      %p324 = scmp.eq.s32.totalorder %s34, 1
      %p325 = scmp.ne.s32.totalorder %s320, %s322
      %p326 = scmp.eq.s32.totalorder %s34, 0
      %p327 = por %p325, %p326
      %p328 = scmp.ne.s32.totalorder %s320, %s322
      %p329 = scmp.eq.s32.totalorder %s39, 1
      %p330 = por %p328, %p329
      %p331 = scmp.ne.s32.totalorder %s322, %s323
      %p332 = scmp.eq.s32.totalorder %s39, 0
      %p333 = por %p331, %p332
      %p334 = scmp.ne.s32.totalorder %s322, %s323
      %p335 = scmp.eq.s32.totalorder %s40, 1
      %p336 = por %p334, %p335
      %p338 = scmp.ne.s32.totalorder %s323, %s337
      %p339 = scmp.eq.s32.totalorder %s40, 0
      %p340 = por %p338, %p339
      %s342 = sadd.s32 %s341, 1
      %p345 = scmp.eq.s32.totalorder %s34, 1
      %p346 = scmp.ne.s32.totalorder %s341, %s343
      %p347 = scmp.eq.s32.totalorder %s34, 0
      %p348 = por %p346, %p347
      %p349 = scmp.ne.s32.totalorder %s341, %s343
      %p350 = scmp.eq.s32.totalorder %s39, 1
      %p351 = por %p349, %p350
      %p352 = scmp.ne.s32.totalorder %s343, %s344
      %p353 = scmp.eq.s32.totalorder %s39, 0
      %p354 = por %p352, %p353
      %p355 = scmp.ne.s32.totalorder %s343, %s344
      %p356 = scmp.eq.s32.totalorder %s40, 1
      %p357 = por %p355, %p356
      %p359 = scmp.ne.s32.totalorder %s344, %s358
      %p360 = scmp.eq.s32.totalorder %s40, 0
      %p361 = por %p359, %p360
      %s363 = sadd.s32 %s362, 1
      %p366 = scmp.eq.s32.totalorder %s34, 1
      %p367 = scmp.ne.s32.totalorder %s362, %s364
      %p368 = scmp.eq.s32.totalorder %s34, 0
      %p369 = por %p367, %p368
      %p370 = scmp.ne.s32.totalorder %s362, %s364
      %p371 = scmp.eq.s32.totalorder %s39, 1
      %p372 = por %p370, %p371
      %p373 = scmp.ne.s32.totalorder %s364, %s365
      %p374 = scmp.eq.s32.totalorder %s39, 0
      %p375 = por %p373, %p374
      %p376 = scmp.ne.s32.totalorder %s364, %s365
      %p377 = scmp.eq.s32.totalorder %s40, 1
      %p378 = por %p376, %p377
      %p380 = scmp.ne.s32.totalorder %s365, %s379
      %p381 = scmp.eq.s32.totalorder %s40, 0
      %p382 = por %p380, %p381
      %s384 = sadd.s32 %s383, 1
      %p387 = scmp.eq.s32.totalorder %s34, 1
      %p388 = scmp.ne.s32.totalorder %s383, %s385
      %p389 = scmp.eq.s32.totalorder %s34, 0
      %p390 = por %p388, %p389
      %p391 = scmp.ne.s32.totalorder %s383, %s385
      %p392 = scmp.eq.s32.totalorder %s39, 1
      %p393 = por %p391, %p392
      %p394 = scmp.ne.s32.totalorder %s385, %s386
      %p395 = scmp.eq.s32.totalorder %s39, 0
      %p396 = por %p394, %p395
      %p397 = scmp.ne.s32.totalorder %s385, %s386
      %p398 = scmp.eq.s32.totalorder %s40, 1
      %p399 = por %p397, %p398
      %p401 = scmp.ne.s32.totalorder %s386, %s400
      %p402 = scmp.eq.s32.totalorder %s40, 0
      %p403 = por %p401, %p402
      %s405 = sadd.s32 %s404, 1
      %p408 = scmp.eq.s32.totalorder %s34, 1
      %p409 = scmp.ne.s32.totalorder %s404, %s406
      %p410 = scmp.eq.s32.totalorder %s34, 0
      %p411 = por %p409, %p410
      %p412 = scmp.ne.s32.totalorder %s404, %s406
      %p413 = scmp.eq.s32.totalorder %s39, 1
      %p414 = por %p412, %p413
      %p415 = scmp.ne.s32.totalorder %s406, %s407
      %p416 = scmp.eq.s32.totalorder %s39, 0
      %p417 = por %p415, %p416
      %p418 = scmp.ne.s32.totalorder %s406, %s407
      %p419 = scmp.eq.s32.totalorder %s40, 1
      %p420 = por %p418, %p419
      %p422 = scmp.ne.s32.totalorder %s407, %s421
      %p423 = scmp.eq.s32.totalorder %s40, 0
      %p424 = por %p422, %p423
      %s426 = sadd.s32 %s425, 1
      %p429 = scmp.eq.s32.totalorder %s34, 1
      %p430 = scmp.ne.s32.totalorder %s425, %s427
      %p431 = scmp.eq.s32.totalorder %s34, 0
      %p432 = por %p430, %p431
      %p433 = scmp.ne.s32.totalorder %s425, %s427
      %p434 = scmp.eq.s32.totalorder %s39, 1
      %p435 = por %p433, %p434
      %p436 = scmp.ne.s32.totalorder %s427, %s428
      %p437 = scmp.eq.s32.totalorder %s39, 0
      %p438 = por %p436, %p437
      %p439 = scmp.ne.s32.totalorder %s427, %s428
      %p440 = scmp.eq.s32.totalorder %s40, 1
      %p441 = por %p439, %p440
      %p443 = scmp.ne.s32.totalorder %s428, %s442
      %p444 = scmp.eq.s32.totalorder %s40, 0
      %p445 = por %p443, %p444
      %s447 = sadd.s32 %s446, 1
      %p450 = scmp.eq.s32.totalorder %s34, 1
      %p451 = scmp.ne.s32.totalorder %s446, %s448
      %p452 = scmp.eq.s32.totalorder %s34, 0
      %p453 = por %p451, %p452
      %p454 = scmp.ne.s32.totalorder %s446, %s448
      %p455 = scmp.eq.s32.totalorder %s39, 1
      %p456 = por %p454, %p455
      %p457 = scmp.ne.s32.totalorder %s448, %s449
      %p458 = scmp.eq.s32.totalorder %s39, 0
      %p459 = por %p457, %p458
      %p460 = scmp.ne.s32.totalorder %s448, %s449
      %p461 = scmp.eq.s32.totalorder %s40, 1
      %p462 = por %p460, %p461
      %p464 = scmp.ne.s32.totalorder %s449, %s463
      %p465 = scmp.eq.s32.totalorder %s40, 0
      %p466 = por %p464, %p465
      %s468 = sadd.s32 %s467, 1
      %p471 = scmp.eq.s32.totalorder %s34, 1
      %p472 = scmp.ne.s32.totalorder %s467, %s469
      %p473 = scmp.eq.s32.totalorder %s34, 0
      %p474 = por %p472, %p473
      %p475 = scmp.ne.s32.totalorder %s467, %s469
      %p476 = scmp.eq.s32.totalorder %s39, 1
      %p477 = por %p475, %p476
      %p478 = scmp.ne.s32.totalorder %s469, %s470
      %p479 = scmp.eq.s32.totalorder %s39, 0
      %p480 = por %p478, %p479
      %p481 = scmp.ne.s32.totalorder %s469, %s470
      %p482 = scmp.eq.s32.totalorder %s40, 1
      %p483 = por %p481, %p482
      %p485 = scmp.ne.s32.totalorder %s470, %s484
      %p486 = scmp.eq.s32.totalorder %s40, 0
      %p487 = por %p485, %p486
      %s489 = sadd.s32 %s488, 1
      %p492 = scmp.eq.s32.totalorder %s34, 1
      %p493 = scmp.ne.s32.totalorder %s488, %s490
      %p494 = scmp.eq.s32.totalorder %s34, 0
      %p495 = por %p493, %p494
      %p496 = scmp.ne.s32.totalorder %s488, %s490
      %p497 = scmp.eq.s32.totalorder %s39, 1
      %p498 = por %p496, %p497
      %p499 = scmp.ne.s32.totalorder %s490, %s491
      %p500 = scmp.eq.s32.totalorder %s39, 0
      %p501 = por %p499, %p500
      %p502 = scmp.ne.s32.totalorder %s490, %s491
      %p503 = scmp.eq.s32.totalorder %s40, 1
      %p504 = por %p502, %p503
      %p506 = scmp.ne.s32.totalorder %s491, %s505
      %p507 = scmp.eq.s32.totalorder %s40, 0
      %p508 = por %p506, %p507
      %s510 = sadd.s32 %s509, 1
      %p513 = scmp.eq.s32.totalorder %s34, 1
      %p514 = scmp.ne.s32.totalorder %s509, %s511
      %p515 = scmp.eq.s32.totalorder %s34, 0
      %p516 = por %p514, %p515
      %p517 = scmp.ne.s32.totalorder %s509, %s511
      %p518 = scmp.eq.s32.totalorder %s39, 1
      %p519 = por %p517, %p518
      %p520 = scmp.ne.s32.totalorder %s511, %s512
      %p521 = scmp.eq.s32.totalorder %s39, 0
      %p522 = por %p520, %p521
      %p523 = scmp.ne.s32.totalorder %s511, %s512
      %p524 = scmp.eq.s32.totalorder %s40, 1
      %p525 = por %p523, %p524
      %p527 = scmp.ne.s32.totalorder %s512, %s526
      %p528 = scmp.eq.s32.totalorder %s40, 0
      %p529 = por %p527, %p528
      %s530 = ssub.s32 %s34, %s41
      %p531 = scmp.eq.s32.totalorder %s530, 0
      %s533 = sadd.s32 %s532, 1
      %s534 = scalar_select %p531, %s532, %s533
      %p537 = pneg %p531
      %p538 = scmp.eq.s32.totalorder %s34, 1
      %p539 = por %p537, %p538
      %p540 = scmp.ne.s32.totalorder %s532, %s535
      %p541 = scmp.eq.s32.totalorder %s34, 0
      %p542 = por %p540, %p541
      %p543 = scmp.ne.s32.totalorder %s532, %s535
      %p544 = scmp.eq.s32.totalorder %s39, 1
      %p545 = por %p543, %p544
      %p546 = scmp.ne.s32.totalorder %s535, %s536
      %p547 = scmp.eq.s32.totalorder %s39, 0
      %p548 = por %p546, %p547
      %p549 = scmp.ne.s32.totalorder %s535, %s536
      %p550 = scmp.eq.s32.totalorder %s40, 1
      %p551 = por %p549, %p550
      %p553 = scmp.ne.s32.totalorder %s536, %s552
      %p554 = scmp.eq.s32.totalorder %s40, 0
      %p555 = por %p553, %p554
      %p556 = scmp.le.s32.totalorder 1, %s34
      %p557 = scmp.lt.s32.totalorder %s34, 3
      %p558 = pnand %p556, %p557
      %p559 = pneg %p558
      // Predicated region
      $region9: #{tpu_custom_call.1} parent=5 // pred_check
        _
      $region10: #{tpu_custom_call.1} parent=5 // pred_check_branch
        %561 = sbr.rel (%p558) target = $region12
      $region11: #{tpu_custom_call.1} parent=5 // pred_region
        %s562 = ssub.s32 %s34, 1
        // Predicated region
        $region13: #{tpu_custom_call.1} parent=11 // pred_check
          %p563 = pneg %p81
        $region14: #{tpu_custom_call.1} parent=11 // pred_check_branch
          %565 = sbr.rel (%p563) target = $region16
        $region15: #{tpu_custom_call.1} parent=11 // pred_region
          _
        $region16: #{tpu_custom_call.1} parent=11 // pred_fallthru
          _
        // Predicated region
        $region17: #{tpu_custom_call.1} parent=11 // pred_check
          %p566 = pneg %p102
        $region18: #{tpu_custom_call.1} parent=11 // pred_check_branch
          %568 = sbr.rel (%p566) target = $region20
        $region19: #{tpu_custom_call.1} parent=11 // pred_region
          _
        $region20: #{tpu_custom_call.1} parent=11 // pred_fallthru
          _
        // Predicated region
        $region21: #{tpu_custom_call.1} parent=11 // pred_check
          %p569 = pneg %p123
        $region22: #{tpu_custom_call.1} parent=11 // pred_check_branch
          %571 = sbr.rel (%p569) target = $region24
        $region23: #{tpu_custom_call.1} parent=11 // pred_region
          _
        $region24: #{tpu_custom_call.1} parent=11 // pred_fallthru
          _
        // Predicated region
        $region25: #{tpu_custom_call.1} parent=11 // pred_check
          %p572 = pneg %p144
        $region26: #{tpu_custom_call.1} parent=11 // pred_check_branch
          %574 = sbr.rel (%p572) target = $region28
        $region27: #{tpu_custom_call.1} parent=11 // pred_region
          _
        $region28: #{tpu_custom_call.1} parent=11 // pred_fallthru
          _
        // Predicated region
        $region29: #{tpu_custom_call.1} parent=11 // pred_check
          %p575 = pneg %p165
        $region30: #{tpu_custom_call.1} parent=11 // pred_check_branch
          %577 = sbr.rel (%p575) target = $region32
        $region31: #{tpu_custom_call.1} parent=11 // pred_region
          _
        $region32: #{tpu_custom_call.1} parent=11 // pred_fallthru
          _
        // Predicated region
        $region33: #{tpu_custom_call.1} parent=11 // pred_check
          %p578 = pneg %p186
        $region34: #{tpu_custom_call.1} parent=11 // pred_check_branch
          %580 = sbr.rel (%p578) target = $region36
        $region35: #{tpu_custom_call.1} parent=11 // pred_region
          _
        $region36: #{tpu_custom_call.1} parent=11 // pred_fallthru
          _
        // Predicated region
        $region37: #{tpu_custom_call.1} parent=11 // pred_check
          %p581 = pneg %p207
        $region38: #{tpu_custom_call.1} parent=11 // pred_check_branch
          %583 = sbr.rel (%p581) target = $region40
        $region39: #{tpu_custom_call.1} parent=11 // pred_region
          _
        $region40: #{tpu_custom_call.1} parent=11 // pred_fallthru
          _
        // Predicated region
        $region41: #{tpu_custom_call.1} parent=11 // pred_check
          %p584 = pneg %p228
        $region42: #{tpu_custom_call.1} parent=11 // pred_check_branch
          %586 = sbr.rel (%p584) target = $region44
        $region43: #{tpu_custom_call.1} parent=11 // pred_region
          %s588 = ssub.s32 16, 16
          %589 = vsyncadd [#allocation6], %s588
          %s591 = sshll.u32 %s8, 4
          %s592 = int_to_ptr.vmem [resolvable:$true] %s591
          %594 = dma.vmem_to_smem %s592, 16, [#allocation4], [#allocation6]
        $region44: #{tpu_custom_call.1} parent=11 // pred_fallthru
          _
        // Predicated region
        $region45: #{tpu_custom_call.1} parent=11 // pred_check
          %p595 = pneg %p249
        $region46: #{tpu_custom_call.1} parent=11 // pred_check_branch
          %597 = sbr.rel (%p595) target = $region48
        $region47: #{tpu_custom_call.1} parent=11 // pred_region
          _
        $region48: #{tpu_custom_call.1} parent=11 // pred_fallthru
          _
        // Predicated region
        $region49: #{tpu_custom_call.1} parent=11 // pred_check
          %p598 = pneg %p270
        $region50: #{tpu_custom_call.1} parent=11 // pred_check_branch
          %600 = sbr.rel (%p598) target = $region52
        $region51: #{tpu_custom_call.1} parent=11 // pred_region
          _
        $region52: #{tpu_custom_call.1} parent=11 // pred_fallthru
          _
        // Predicated region
        $region53: #{tpu_custom_call.1} parent=11 // pred_check
          %p601 = pneg %p291
        $region54: #{tpu_custom_call.1} parent=11 // pred_check_branch
          %603 = sbr.rel (%p601) target = $region56
        $region55: #{tpu_custom_call.1} parent=11 // pred_region
          _
        $region56: #{tpu_custom_call.1} parent=11 // pred_fallthru
          _
        // Predicated region
        $region57: #{tpu_custom_call.1} parent=11 // pred_check
          %p604 = pneg %p312
        $region58: #{tpu_custom_call.1} parent=11 // pred_check_branch
          %606 = sbr.rel (%p604) target = $region60
        $region59: #{tpu_custom_call.1} parent=11 // pred_region
          _
        $region60: #{tpu_custom_call.1} parent=11 // pred_fallthru
          _
        // Predicated region
        $region61: #{tpu_custom_call.1} parent=11 // pred_check
          %p607 = pneg %p333
        $region62: #{tpu_custom_call.1} parent=11 // pred_check_branch
          %609 = sbr.rel (%p607) target = $region64
        $region63: #{tpu_custom_call.1} parent=11 // pred_region
          _
        $region64: #{tpu_custom_call.1} parent=11 // pred_fallthru
          _
        // Predicated region
        $region65: #{tpu_custom_call.1} parent=11 // pred_check
          %p610 = pneg %p354
        $region66: #{tpu_custom_call.1} parent=11 // pred_check_branch
          %612 = sbr.rel (%p610) target = $region68
        $region67: #{tpu_custom_call.1} parent=11 // pred_region
          _
        $region68: #{tpu_custom_call.1} parent=11 // pred_fallthru
          _
        // Predicated region
        $region69: #{tpu_custom_call.1} parent=11 // pred_check
          %p613 = pneg %p375
        $region70: #{tpu_custom_call.1} parent=11 // pred_check_branch
          %615 = sbr.rel (%p613) target = $region72
        $region71: #{tpu_custom_call.1} parent=11 // pred_region
          _
        $region72: #{tpu_custom_call.1} parent=11 // pred_fallthru
          _
        // Predicated region
        $region73: #{tpu_custom_call.1} parent=11 // pred_check
          %p616 = pneg %p396
        $region74: #{tpu_custom_call.1} parent=11 // pred_check_branch
          %618 = sbr.rel (%p616) target = $region76
        $region75: #{tpu_custom_call.1} parent=11 // pred_region
          _
        $region76: #{tpu_custom_call.1} parent=11 // pred_fallthru
          _
        // Predicated region
        $region77: #{tpu_custom_call.1} parent=11 // pred_check
          %p619 = pneg %p417
        $region78: #{tpu_custom_call.1} parent=11 // pred_check_branch
          %621 = sbr.rel (%p619) target = $region80
        $region79: #{tpu_custom_call.1} parent=11 // pred_region
          _
        $region80: #{tpu_custom_call.1} parent=11 // pred_fallthru
          _
        // Predicated region
        $region81: #{tpu_custom_call.1} parent=11 // pred_check
          %p622 = pneg %p438
        $region82: #{tpu_custom_call.1} parent=11 // pred_check_branch
          %624 = sbr.rel (%p622) target = $region84
        $region83: #{tpu_custom_call.1} parent=11 // pred_region
          _
        $region84: #{tpu_custom_call.1} parent=11 // pred_fallthru
          _
        // Predicated region
        $region85: #{tpu_custom_call.1} parent=11 // pred_check
          %p625 = pneg %p459
        $region86: #{tpu_custom_call.1} parent=11 // pred_check_branch
          %627 = sbr.rel (%p625) target = $region88
        $region87: #{tpu_custom_call.1} parent=11 // pred_region
          _
        $region88: #{tpu_custom_call.1} parent=11 // pred_fallthru
          _
        // Predicated region
        $region89: #{tpu_custom_call.1} parent=11 // pred_check
          %p628 = pneg %p480
        $region90: #{tpu_custom_call.1} parent=11 // pred_check_branch
          %630 = sbr.rel (%p628) target = $region92
        $region91: #{tpu_custom_call.1} parent=11 // pred_region
          _
        $region92: #{tpu_custom_call.1} parent=11 // pred_fallthru
          _
        // Predicated region
        $region93: #{tpu_custom_call.1} parent=11 // pred_check
          %p631 = pneg %p501
        $region94: #{tpu_custom_call.1} parent=11 // pred_check_branch
          %633 = sbr.rel (%p631) target = $region96
        $region95: #{tpu_custom_call.1} parent=11 // pred_region
          _
        $region96: #{tpu_custom_call.1} parent=11 // pred_fallthru
          _
        // Predicated region
        $region97: #{tpu_custom_call.1} parent=11 // pred_check
          %p634 = pneg %p522
        $region98: #{tpu_custom_call.1} parent=11 // pred_check_branch
          %636 = sbr.rel (%p634) target = $region100
        $region99: #{tpu_custom_call.1} parent=11 // pred_region
          _
        $region100: #{tpu_custom_call.1} parent=11 // pred_fallthru
          _
      $region12: #{tpu_custom_call.1} parent=5 // pred_fallthru
        _
      %p637 = scmp.lt.s32.totalorder %s34, 2
      // Predicated region
      $region101: #{tpu_custom_call.1} parent=5 // pred_check
        %p638 = pneg %p637
      $region102: #{tpu_custom_call.1} parent=5 // pred_check_branch
        %640 = sbr.rel (%p638) target = $region104
      $region103: #{tpu_custom_call.1} parent=5 // pred_region
        // Predicated region
        $region105: #{tpu_custom_call.1} parent=103 // pred_check
          %p641 = pneg %p54
        $region106: #{tpu_custom_call.1} parent=103 // pred_check_branch
          %643 = sbr.rel (%p641) target = $region108
        $region107: #{tpu_custom_call.1} parent=103 // pred_region
          %p644 = scmp.lt.s32.totalorder %s34, 1
          %s645 = scalar_select %p644, %s34, 1
          %s646 = smul.addr %s645, 2
          %s647 = smul.addr %s646, 8
          %s648 = scalar_lea.vmem %s0, %s647
        $region108: #{tpu_custom_call.1} parent=103 // pred_fallthru
          _
      $region104: #{tpu_custom_call.1} parent=5 // pred_fallthru
        _
      %p649 = scmp.le.s32.totalorder 1, %s34
      %p650 = scmp.lt.s32.totalorder %s34, 3
      %p651 = pnand %p649, %p650
      %p652 = pneg %p651
      // Predicated region
      $region109: #{tpu_custom_call.1} parent=5 // pred_check
        _
      $region110: #{tpu_custom_call.1} parent=5 // pred_check_branch
        %654 = sbr.rel (%p651) target = $region112
      $region111: #{tpu_custom_call.1} parent=5 // pred_region
        %s655 = ssub.s32 %s34, 1
        // Predicated region
        $region113: #{tpu_custom_call.1} parent=111 // pred_check
          %p656 = pneg %p228
        $region114: #{tpu_custom_call.1} parent=111 // pred_check_branch
          %658 = sbr.rel (%p656) target = $region116
        $region115: #{tpu_custom_call.1} parent=111 // pred_region
          %659 = dma.done [#allocation6], 16
        $region116: #{tpu_custom_call.1} parent=111 // pred_fallthru
          _
        %660 = sfence
        %p661 = scmp.lt.s32.totalorder %s39, 1
        %s662 = scalar_select %p661, %s39, 1
        %s663 = smul.addr %s662, 2
        %s664 = smul.addr %s663, 8
        %s665 = scalar_lea.vmem %s0, %s664
        %p666 = pneg %p60
        %p667 = pneg %p57
        %p668 = pneg %p81
        %p669 = pneg %p78
        %p670 = pneg %p102
        %p671 = pneg %p99
        %p672 = pneg %p123
        %p673 = pneg %p120
        %p674 = pneg %p144
        %p675 = pneg %p141
        %p676 = pneg %p165
        %p677 = pneg %p162
        %p678 = pneg %p186
        %p679 = pneg %p183
        %p680 = pneg %p207
        %p681 = pneg %p204
        %p682 = pneg %p228
        %p683 = pneg %p225
        %p684 = pneg %p249
        %p685 = pneg %p246
        %p686 = pneg %p270
        %p687 = pneg %p267
        %p688 = pneg %p291
        %p689 = pneg %p288
        %p690 = pneg %p312
        %p691 = pneg %p309
        %p692 = pneg %p333
        %p693 = pneg %p330
        %p694 = pneg %p354
        %p695 = pneg %p351
        %p696 = pneg %p375
        %p697 = pneg %p372
        %p698 = pneg %p396
        %p699 = pneg %p393
        %p700 = pneg %p417
        %p701 = pneg %p414
        %p702 = pneg %p438
        %p703 = pneg %p435
        %p704 = pneg %p459
        %p705 = pneg %p456
        %p706 = pneg %p480
        %p707 = pneg %p477
        %p708 = pneg %p501
        %p709 = pneg %p498
        %p710 = pneg %p522
        %p711 = pneg %p519
        %p712 = pneg %p548
        %p713 = pneg %p545
        %s714 = sand.u32 %s535, 1
        %s715 = scalar_lea.sflag [#allocation5], %s714
        %s716 = sand.u32 %s535, 1
        %s717 = smul.addr %s716, 16
        %s718 = scalar_lea.vmem [#allocation7], %s717
        %p719 = scmp.lt.s32.totalorder %s39, 1
        %s720 = scalar_select %p719, %s39, 1
        %s721 = smul.addr %s720, 2
        %s722 = smul.addr %s721, 8
        %s723 = scalar_lea.vmem %s0, %s722
        %vm725 = vcmask 261120
        %726 = vst.msk [vmem:[#allocation2] sm:$0xff] %vm725, 0.0
        %v727 = vld [vmem:[%s723] sm:$0xff]
        %v728 = vld [vmem:[%s723 + $0x8] sm:$0x1]
        %v729 = vld [vmem:[%s1] sm:$0xf]
        %v730 = vld [vmem:[%s1 + $0x4] sm:$0xf]
        %v731 = vpack.c.bf16 %v728, %v727
        %v734 = vunpack.c.l.b16 %v729
        %v735 = vunpack.c.l.b16 %v730
        %v736 = vpack.c.b16 %v735, %v734
        %vm738 = vcmask 130048
        %v740 = vsel %vm738, %v731, 0
        %742 = vmatprep.subr.bf16.mxu0 0
        %743 = vmatpush1.bf16.msra.mxu0 %v736
        %744 = vmatprep.subr.bf16.mxu0 0
        %745 = vmatpush1.bf16.msra.mxu0 0
        %746 = vmatprep.subr.bf16.mxu0 0
        %747 = vmatpush1.bf16.msra.mxu0 0
        %748 = vmatprep.subr.bf16.mxu0 0
        %749 = vmatpush1.bf16.msra.mxu0 0
        %750 = vmatprep.subr.bf16.mxu0 0
        %751 = vmatpush1.bf16.msra.mxu0 0
        %752 = vmatprep.subr.bf16.mxu0 0
        %753 = vmatpush1.bf16.msra.mxu0 0
        %754 = vmatprep.subr.bf16.mxu0 0
        %755 = vmatpush1.bf16.msra.mxu0 0
        %756 = vmatprep.subr.bf16.mxu0 0
        %757 = vmatpush1.bf16.msra.mxu0 0
        %758 = vmatprep.subr.bf16.mxu0 0
        %759 = vmatpush1.bf16.msra.mxu0 0
        %760 = vmatprep.subr.bf16.mxu0 0
        %761 = vmatpush1.bf16.msra.mxu0 0
        %762 = vmatprep.subr.bf16.mxu0 0
        %763 = vmatpush1.bf16.msra.mxu0 0
        %764 = vmatprep.subr.bf16.mxu0 0
        %765 = vmatpush1.bf16.msra.mxu0 0
        %766 = vmatprep.subr.bf16.mxu0 0
        %767 = vmatpush1.bf16.msra.mxu0 0
        %768 = vmatprep.subr.bf16.mxu0 0
        %769 = vmatpush1.bf16.msra.mxu0 0
        %770 = vmatprep.subr.bf16.mxu0 0
        %771 = vmatpush1.bf16.msra.mxu0 0
        %772 = vmatprep.subr.bf16.mxu0 0
        %773 = vmatpush1.bf16.msra.mxu0 0
        %774 = vmatprep.mubr.bf16.mxu0 0
        %775 = vmatmul.mubr.bf16.gmra.mrb[0].mxu0 %v740
        %v776 = vpop.f32.mrb[0].mxu0
        %v777 = vadd.f32 0.0, %v776
        %v778 = vpop.f32.mrb[0].mxu0
        %v779 = vpop.f32.mrb[0].mxu0
        %v780 = vadd.f32 0.0, %v779
        %v781 = vpop.f32.mrb[0].mxu0
        %782 = vdwg.mxu0
        %v783 = vld [vmem:[%s2] sm:$0x1]
        %v784 = vld [vmem:[%s3] sm:$0x1]
        %v785 = vsel %vm725, %v777, 0.0
        %vm786 = vcmask 253952
        %v787 = vsel %vm786, %v780, 0.0
        %v788 = vadd.f32 %v785, %v787
        %789 = vadd.xlane.f32.xlu0 %v788
        %v790 = vpop.xlane.xlu0 %789
        %v791 = vrot.slane %v790, 4
        %v792 = vadd.f32 %v790, %v791
        %v793 = vrot.slane %v792, 2
        %v794 = vadd.f32 %v792, %v793
        %v795 = vrot.slane %v794, 1
        %v796 = vadd.f32 %v794, %v795
        %s797 = vtos %v796
        %v798 = vrcp.pop 288.0
        %s799 = vtos %v798
        %s800 = smul.f32 %s797, %s799
        %v801 = vstv %s800
        %v802 = vsub.f32 %v777, %v801
        %v803 = vsub.f32 %v780, %v801
        %v804 = vmul.f32 %v802, %v802
        %v805 = vmul.f32 %v803, %v803
        %v806 = vsel %vm725, %v804, 0.0
        %v807 = vsel %vm786, %v805, 0.0
        %v808 = vadd.f32 %v806, %v807
        %809 = vadd.xlane.f32.xlu0 %v808
        %v810 = vpop.xlane.xlu0 %809
        %v811 = vrot.slane %v810, 4
        %v812 = vadd.f32 %v810, %v811
        %v813 = vrot.slane %v812, 2
        %v814 = vadd.f32 %v812, %v813
        %v815 = vrot.slane %v814, 1
        %v816 = vadd.f32 %v814, %v815
        %s817 = vtos %v816
        %v818 = vrcp.pop 288.0
        %s819 = vtos %v818
        %s820 = smul.f32 %s817, %s819
        %s821 = sadd.f32 %s820, 1e-08
        %v822 = vstv %s821
        %v823 = vrsqrt.pop %v822
        %s824 = vtos %v823
        %v825 = vstv %s824
        %v826 = vmul.f32 %v802, %v825
        %v827 = vmul.f32 %v803, %v825
        %v829 = vlaneseq
        %v830 = vshrl.u32 %v829, 7
        %v831 = vsub.s32 0, %v830
        %v832 = vrot.slane %v783, %v831
        %v834 = vmul.f32 %v826, %v832
        %v835 = vmul.f32 %v827, %v832
        %v837 = vlaneseq
        %v838 = vshrl.u32 %v837, 7
        %v839 = vsub.s32 0, %v838
        %v840 = vrot.slane %v784, %v839
        %v842 = vadd.f32 %v834, %v840
        %v843 = vadd.f32 %v835, %v840
        %v844 = vld [vmem:[%s4] sm:$0xf]
        %v845 = vld [vmem:[%s4 + $0x4] sm:$0xf]
        %v846 = vld [vmem:[%s4 + $0x8] sm:$0xf]
        %v847 = vld [vmem:[%s4 + $0xc] sm:$0xf]
        %v848 = vpack.c.bf16 %v843, %v842
        %v849 = vld [vmem:[%s5] sm:$0x1]
        %v851 = vlaneseq
        %v852 = vshrl.u32 %v851, 7
        %v853 = vsub.s32 0, %v852
        %v854 = vrot.slane %v849, %v853
        %v860 = vunpack.c.l.b16 %v844
        %v861 = vunpack.c.l.b16 %v845
        %v862 = vunpack.c.l.b16 %v846
        %v863 = vunpack.c.l.b16 %v847
        %v864 = vpack.c.b16 %v861, %v860
        %v865 = vpack.c.b16 %v863, %v862
        %v869 = vsel %vm725, %v848, 0
        %871 = vmatprep.subr.bf16.mxu0 0
        %872 = vmatpush1.bf16.msra.mxu0 %v864
        %873 = vmatprep.subr.bf16.mxu0 0
        %874 = vmatpush1.bf16.msra.mxu0 %v865
        %875 = vmatprep.subr.bf16.mxu0 0
        %876 = vmatpush1.bf16.msra.mxu0 0
        %877 = vmatprep.subr.bf16.mxu0 0
        %878 = vmatpush1.bf16.msra.mxu0 0
        %879 = vmatprep.subr.bf16.mxu0 0
        %880 = vmatpush1.bf16.msra.mxu0 0
        %881 = vmatprep.subr.bf16.mxu0 0
        %882 = vmatpush1.bf16.msra.mxu0 0
        %883 = vmatprep.subr.bf16.mxu0 0
        %884 = vmatpush1.bf16.msra.mxu0 0
        %885 = vmatprep.subr.bf16.mxu0 0
        %886 = vmatpush1.bf16.msra.mxu0 0
        %887 = vmatprep.subr.bf16.mxu0 0
        %888 = vmatpush1.bf16.msra.mxu0 0
        %889 = vmatprep.subr.bf16.mxu0 0
        %890 = vmatpush1.bf16.msra.mxu0 0
        %891 = vmatprep.subr.bf16.mxu0 0
        %892 = vmatpush1.bf16.msra.mxu0 0
        %893 = vmatprep.subr.bf16.mxu0 0
        %894 = vmatpush1.bf16.msra.mxu0 0
        %895 = vmatprep.subr.bf16.mxu0 0
        %896 = vmatpush1.bf16.msra.mxu0 0
        %897 = vmatprep.subr.bf16.mxu0 0
        %898 = vmatpush1.bf16.msra.mxu0 0
        %899 = vmatprep.subr.bf16.mxu0 0
        %900 = vmatpush1.bf16.msra.mxu0 0
        %901 = vmatprep.subr.bf16.mxu0 0
        %902 = vmatpush1.bf16.msra.mxu0 0
        %903 = vmatprep.mubr.bf16.mxu0 0
        %904 = vmatmul.mubr.bf16.gmra.mrb[0].mxu0 %v869
        %v905 = vpop.f32.mrb[0].mxu0
        %v906 = vadd.f32 %v854, %v905
        %v907 = vpop.f32.mrb[0].mxu0
        %v908 = vpop.f32.mrb[0].mxu0
        %v909 = vadd.f32 %v854, %v908
        %v910 = vpop.f32.mrb[0].mxu0
        %911 = vdwg.mxu0
        %v912 = vld [vmem:[%s6] sm:$0xf]
        %v913 = vld [vmem:[%s6 + $0x4] sm:$0xf]
        %v914 = vpack.c.bf16 %v909, %v906
        %v915 = vld [vmem:[%s7] sm:$0x1]
        %v917 = vlaneseq
        %v918 = vshrl.u32 %v917, 7
        %v919 = vsub.s32 0, %v918
        %v920 = vrot.slane %v915, %v919
        %v924 = vunpack.c.l.b16 %v912
        %v925 = vunpack.c.l.b16 %v913
        %v926 = vpack.c.b16 %v925, %v924
        %v929 = vsel %vm738, %v914, 0
        %931 = vmatprep.subr.bf16.mxu0 0
        %932 = vmatpush1.bf16.msra.mxu0 %v926
        %933 = vmatprep.subr.bf16.mxu0 0
        %934 = vmatpush1.bf16.msra.mxu0 0
        %935 = vmatprep.subr.bf16.mxu0 0
        %936 = vmatpush1.bf16.msra.mxu0 0
        %937 = vmatprep.subr.bf16.mxu0 0
        %938 = vmatpush1.bf16.msra.mxu0 0
        %939 = vmatprep.subr.bf16.mxu0 0
        %940 = vmatpush1.bf16.msra.mxu0 0
        %941 = vmatprep.subr.bf16.mxu0 0
        %942 = vmatpush1.bf16.msra.mxu0 0
        %943 = vmatprep.subr.bf16.mxu0 0
        %944 = vmatpush1.bf16.msra.mxu0 0
        %945 = vmatprep.subr.bf16.mxu0 0
        %946 = vmatpush1.bf16.msra.mxu0 0
        %947 = vmatprep.subr.bf16.mxu0 0
        %948 = vmatpush1.bf16.msra.mxu0 0
        %949 = vmatprep.subr.bf16.mxu0 0
        %950 = vmatpush1.bf16.msra.mxu0 0
        %951 = vmatprep.subr.bf16.mxu0 0
        %952 = vmatpush1.bf16.msra.mxu0 0
        %953 = vmatprep.subr.bf16.mxu0 0
        %954 = vmatpush1.bf16.msra.mxu0 0
        %955 = vmatprep.subr.bf16.mxu0 0
        %956 = vmatpush1.bf16.msra.mxu0 0
        %957 = vmatprep.subr.bf16.mxu0 0
        %958 = vmatpush1.bf16.msra.mxu0 0
        %959 = vmatprep.subr.bf16.mxu0 0
        %960 = vmatpush1.bf16.msra.mxu0 0
        %961 = vmatprep.subr.bf16.mxu0 0
        %962 = vmatpush1.bf16.msra.mxu0 0
        %963 = vmatprep.mubr.bf16.mxu0 0
        %964 = vmatmul.mubr.bf16.gmra.mrb[0].mxu0 %v929
        %v965 = vpop.f32.mrb[0].mxu0
        %v966 = vadd.f32 %v920, %v965
        %v967 = vpop.f32.mrb[0].mxu0
        %v968 = vpop.f32.mrb[0].mxu0
        %v969 = vadd.f32 %v920, %v968
        %v970 = vpop.f32.mrb[0].mxu0
        %971 = vdwg.mxu0
        %s972 = sld [smem:[#allocation4]]
        %vm973 = vcmp.ge.f32.partialorder %v966, 0.0
        %vm974 = vcmp.ge.f32.partialorder %v969, 0.0
        %v975 = vstv %s972
        %v976 = vmul.f32 %v975, %v966
        %v977 = vmul.f32 %v975, %v969
        %v978 = vsel %vm973, %v966, %v976
        %v979 = vsel %vm974, %v969, %v977
        %v980 = vld [vmem:[%s9] sm:$0x1]
        %v981 = vld [vmem:[%s10] sm:$0x1]
        %v982 = vsel %vm725, %v978, 0.0
        %v983 = vsel %vm786, %v979, 0.0
        %v984 = vadd.f32 %v982, %v983
        %985 = vadd.xlane.f32.xlu0 %v984
        %v986 = vpop.xlane.xlu0 %985
        %v987 = vrot.slane %v986, 4
        %v988 = vadd.f32 %v986, %v987
        %v989 = vrot.slane %v988, 2
        %v990 = vadd.f32 %v988, %v989
        %v991 = vrot.slane %v990, 1
        %v992 = vadd.f32 %v990, %v991
        %s993 = vtos %v992
        %v994 = vrcp.pop 288.0
        %s995 = vtos %v994
        %s996 = smul.f32 %s993, %s995
        %v997 = vstv %s996
        %v998 = vsub.f32 %v978, %v997
        %v999 = vsub.f32 %v979, %v997
        %v1000 = vmul.f32 %v998, %v998
        %v1001 = vmul.f32 %v999, %v999
        %v1002 = vsel %vm725, %v1000, 0.0
        %v1003 = vsel %vm786, %v1001, 0.0
        %v1004 = vadd.f32 %v1002, %v1003
        %1005 = vadd.xlane.f32.xlu0 %v1004
        %v1006 = vpop.xlane.xlu0 %1005
        %v1007 = vrot.slane %v1006, 4
        %v1008 = vadd.f32 %v1006, %v1007
        %v1009 = vrot.slane %v1008, 2
        %v1010 = vadd.f32 %v1008, %v1009
        %v1011 = vrot.slane %v1010, 1
        %v1012 = vadd.f32 %v1010, %v1011
        %s1013 = vtos %v1012
        %v1014 = vrcp.pop 288.0
        %s1015 = vtos %v1014
        %s1016 = smul.f32 %s1013, %s1015
        %s1017 = sadd.f32 %s1016, 1e-08
        %v1018 = vstv %s1017
        %v1019 = vrsqrt.pop %v1018
        %s1020 = vtos %v1019
        %v1021 = vstv %s1020
        %v1022 = vmul.f32 %v998, %v1021
        %v1023 = vmul.f32 %v999, %v1021
        %v1025 = vlaneseq
        %v1026 = vshrl.u32 %v1025, 7
        %v1027 = vsub.s32 0, %v1026
        %v1028 = vrot.slane %v980, %v1027
        %v1030 = vmul.f32 %v1022, %v1028
        %v1031 = vmul.f32 %v1023, %v1028
        %v1033 = vlaneseq
        %v1034 = vshrl.u32 %v1033, 7
        %v1035 = vsub.s32 0, %v1034
        %v1036 = vrot.slane %v981, %v1035
        %v1038 = vadd.f32 %v1030, %v1036
        %v1039 = vadd.f32 %v1031, %v1036
        %1040 = vst.msk [vmem:[#allocation2 + $0x8] sm:$0xff] %vm725, %v1038
        %1041 = vst.msk [vmem:[#allocation2 + $0x10] sm:$0x1] %vm786, %v1039
        %v1042 = vld [vmem:[%s11] sm:$0x7]
        %v1043 = vlaneseq
        %v1044 = vshrl.u32 %v1043, 7
        %v1045 = vsub.s32 2, %v1044
        %v1046 = vrot.slane %v1042, %v1045
        %v1047 = vmul.f32 %v1038, %v1046
        %v1048 = vmul.f32 %v1039, %v1046
        %v1049 = vld [vmem:[#allocation2 + $0x6] sm:$0xff]
        %v1050 = vld [vmem:[#allocation2 + $0xe] sm:$0x1]
        %v1051 = vlaneseq
        %v1052 = vshrl.u32 %v1051, 7
        %v1053 = vsub.s32 0, %v1052
        %v1054 = vrot.slane %v1042, %v1053
        %v1055 = vmul.f32 %v1049, %v1054
        %v1056 = vmul.f32 %v1050, %v1054
        %v1057 = vadd.f32 %v1047, %v1055
        %v1058 = vadd.f32 %v1048, %v1056
        %v1059 = vld [vmem:[#allocation2 + $0x7] sm:$0xff]
        %v1060 = vld [vmem:[#allocation2 + $0xf] sm:$0x1]
        %v1061 = vlaneseq
        %v1062 = vshrl.u32 %v1061, 7
        %v1063 = vsub.s32 1, %v1062
        %v1064 = vrot.slane %v1042, %v1063
        %v1065 = vmul.f32 %v1059, %v1064
        %v1066 = vmul.f32 %v1060, %v1064
        %v1067 = vadd.f32 %v1057, %v1065
        %v1068 = vadd.f32 %v1058, %v1066
        %v1069 = vld [vmem:[%s12] sm:$0x1]
        %v1071 = vlaneseq
        %v1072 = vshrl.u32 %v1071, 7
        %v1073 = vsub.s32 0, %v1072
        %v1074 = vrot.slane %v1069, %v1073
        %v1076 = vadd.f32 %v1067, %v1074
        %v1077 = vadd.f32 %v1068, %v1074
        %v1078 = vld [vmem:[%s13] sm:$0xf]
        %v1079 = vld [vmem:[%s13 + $0x4] sm:$0xf]
        %v1080 = vld [vmem:[%s13 + $0x8] sm:$0xf]
        %v1081 = vld [vmem:[%s13 + $0xc] sm:$0xf]
        %v1082 = vpack.c.bf16 %v1077, %v1076
        %v1083 = vld [vmem:[%s14] sm:$0x1]
        %v1085 = vlaneseq
        %v1086 = vshrl.u32 %v1085, 7
        %v1087 = vsub.s32 0, %v1086
        %v1088 = vrot.slane %v1083, %v1087
        %v1094 = vunpack.c.l.b16 %v1078
        %v1095 = vunpack.c.l.b16 %v1079
        %v1096 = vunpack.c.l.b16 %v1080
        %v1097 = vunpack.c.l.b16 %v1081
        %v1098 = vpack.c.b16 %v1095, %v1094
        %v1099 = vpack.c.b16 %v1097, %v1096
        %v1103 = vsel %vm725, %v1082, 0
        %1105 = vmatprep.subr.bf16.mxu0 0
        %1106 = vmatpush1.bf16.msra.mxu0 %v1098
        %1107 = vmatprep.subr.bf16.mxu0 0
        %1108 = vmatpush1.bf16.msra.mxu0 %v1099
        %1109 = vmatprep.subr.bf16.mxu0 0
        %1110 = vmatpush1.bf16.msra.mxu0 0
        %1111 = vmatprep.subr.bf16.mxu0 0
        %1112 = vmatpush1.bf16.msra.mxu0 0
        %1113 = vmatprep.subr.bf16.mxu0 0
        %1114 = vmatpush1.bf16.msra.mxu0 0
        %1115 = vmatprep.subr.bf16.mxu0 0
        %1116 = vmatpush1.bf16.msra.mxu0 0
        %1117 = vmatprep.subr.bf16.mxu0 0
        %1118 = vmatpush1.bf16.msra.mxu0 0
        %1119 = vmatprep.subr.bf16.mxu0 0
        %1120 = vmatpush1.bf16.msra.mxu0 0
        %1121 = vmatprep.subr.bf16.mxu0 0
        %1122 = vmatpush1.bf16.msra.mxu0 0
        %1123 = vmatprep.subr.bf16.mxu0 0
        %1124 = vmatpush1.bf16.msra.mxu0 0
        %1125 = vmatprep.subr.bf16.mxu0 0
        %1126 = vmatpush1.bf16.msra.mxu0 0
        %1127 = vmatprep.subr.bf16.mxu0 0
        %1128 = vmatpush1.bf16.msra.mxu0 0
        %1129 = vmatprep.subr.bf16.mxu0 0
        %1130 = vmatpush1.bf16.msra.mxu0 0
        %1131 = vmatprep.subr.bf16.mxu0 0
        %1132 = vmatpush1.bf16.msra.mxu0 0
        %1133 = vmatprep.subr.bf16.mxu0 0
        %1134 = vmatpush1.bf16.msra.mxu0 0
        %1135 = vmatprep.subr.bf16.mxu0 0
        %1136 = vmatpush1.bf16.msra.mxu0 0
        %1137 = vmatprep.mubr.bf16.mxu0 0
        %1138 = vmatmul.mubr.bf16.gmra.mrb[0].mxu0 %v1103
        %v1139 = vpop.f32.mrb[0].mxu0
        %v1140 = vadd.f32 %v1088, %v1139
        %v1141 = vpop.f32.mrb[0].mxu0
        %v1142 = vpop.f32.mrb[0].mxu0
        %v1143 = vadd.f32 %v1088, %v1142
        %v1144 = vpop.f32.mrb[0].mxu0
        %1145 = vdwg.mxu0
        %v1146 = vld [vmem:[%s15] sm:$0xf]
        %v1147 = vld [vmem:[%s15 + $0x4] sm:$0xf]
        %v1148 = vpack.c.bf16 %v1143, %v1140
        %v1151 = vunpack.c.l.b16 %v1146
        %v1152 = vunpack.c.l.b16 %v1147
        %v1153 = vpack.c.b16 %v1152, %v1151
        %v1156 = vsel %vm738, %v1148, 0
        %1158 = vmatprep.subr.bf16.mxu0 0
        %1159 = vmatpush1.bf16.msra.mxu0 %v1153
        %1160 = vmatprep.subr.bf16.mxu0 0
        %1161 = vmatpush1.bf16.msra.mxu0 0
        %1162 = vmatprep.subr.bf16.mxu0 0
        %1163 = vmatpush1.bf16.msra.mxu0 0
        %1164 = vmatprep.subr.bf16.mxu0 0
        %1165 = vmatpush1.bf16.msra.mxu0 0
        %1166 = vmatprep.subr.bf16.mxu0 0
        %1167 = vmatpush1.bf16.msra.mxu0 0
        %1168 = vmatprep.subr.bf16.mxu0 0
        %1169 = vmatpush1.bf16.msra.mxu0 0
        %1170 = vmatprep.subr.bf16.mxu0 0
        %1171 = vmatpush1.bf16.msra.mxu0 0
        %1172 = vmatprep.subr.bf16.mxu0 0
        %1173 = vmatpush1.bf16.msra.mxu0 0
        %1174 = vmatprep.subr.bf16.mxu0 0
        %1175 = vmatpush1.bf16.msra.mxu0 0
        %1176 = vmatprep.subr.bf16.mxu0 0
        %1177 = vmatpush1.bf16.msra.mxu0 0
        %1178 = vmatprep.subr.bf16.mxu0 0
        %1179 = vmatpush1.bf16.msra.mxu0 0
        %1180 = vmatprep.subr.bf16.mxu0 0
        %1181 = vmatpush1.bf16.msra.mxu0 0
        %1182 = vmatprep.subr.bf16.mxu0 0
        %1183 = vmatpush1.bf16.msra.mxu0 0
        %1184 = vmatprep.subr.bf16.mxu0 0
        %1185 = vmatpush1.bf16.msra.mxu0 0
        %1186 = vmatprep.subr.bf16.mxu0 0
        %1187 = vmatpush1.bf16.msra.mxu0 0
        %1188 = vmatprep.subr.bf16.mxu0 0
        %1189 = vmatpush1.bf16.msra.mxu0 0
        %1190 = vmatprep.mubr.bf16.mxu0 0
        %1191 = vmatmul.mubr.bf16.gmra.mrb[0].mxu0 %v1156
        %v1192 = vpop.f32.mrb[0].mxu0
        %v1193 = vadd.f32 0.0, %v1192
        %v1194 = vpop.f32.mrb[0].mxu0
        %v1195 = vpop.f32.mrb[0].mxu0
        %v1196 = vadd.f32 0.0, %v1195
        %v1197 = vpop.f32.mrb[0].mxu0
        %1198 = vdwg.mxu0
        %v1199 = vadd.f32 %v906, %v1193
        %v1200 = vadd.f32 %v909, %v1196
        %v1201 = vld [vmem:[%s16] sm:$0x1]
        %v1203 = vlaneseq
        %v1204 = vshrl.u32 %v1203, 7
        %v1205 = vsub.s32 0, %v1204
        %v1206 = vrot.slane %v1201, %v1205
        %v1208 = vadd.f32 %v1199, %v1206
        %v1209 = vadd.f32 %v1200, %v1206
        %v1210 = vld [vmem:[%s17] sm:$0xf]
        %v1211 = vld [vmem:[%s17 + $0x4] sm:$0xf]
        %v1212 = vld [vmem:[%s18] sm:$0x1]
        %v1214 = vlaneseq
        %v1215 = vshrl.u32 %v1214, 7
        %v1216 = vsub.s32 0, %v1215
        %v1217 = vrot.slane %v1212, %v1216
        %v1221 = vunpack.c.l.b16 %v1210
        %v1222 = vunpack.c.l.b16 %v1211
        %v1223 = vpack.c.b16 %v1222, %v1221
        %1225 = vmatprep.subr.bf16.mxu0 0
        %1226 = vmatpush1.bf16.msra.mxu0 %v1223
        %1227 = vmatprep.subr.bf16.mxu0 0
        %1228 = vmatpush1.bf16.msra.mxu0 0
        %1229 = vmatprep.subr.bf16.mxu0 0
        %1230 = vmatpush1.bf16.msra.mxu0 0
        %1231 = vmatprep.subr.bf16.mxu0 0
        %1232 = vmatpush1.bf16.msra.mxu0 0
        %1233 = vmatprep.subr.bf16.mxu0 0
        %1234 = vmatpush1.bf16.msra.mxu0 0
        %1235 = vmatprep.subr.bf16.mxu0 0
        %1236 = vmatpush1.bf16.msra.mxu0 0
        %1237 = vmatprep.subr.bf16.mxu0 0
        %1238 = vmatpush1.bf16.msra.mxu0 0
        %1239 = vmatprep.subr.bf16.mxu0 0
        %1240 = vmatpush1.bf16.msra.mxu0 0
        %1241 = vmatprep.subr.bf16.mxu0 0
        %1242 = vmatpush1.bf16.msra.mxu0 0
        %1243 = vmatprep.subr.bf16.mxu0 0
        %1244 = vmatpush1.bf16.msra.mxu0 0
        %1245 = vmatprep.subr.bf16.mxu0 0
        %1246 = vmatpush1.bf16.msra.mxu0 0
        %1247 = vmatprep.subr.bf16.mxu0 0
        %1248 = vmatpush1.bf16.msra.mxu0 0
        %1249 = vmatprep.subr.bf16.mxu0 0
        %1250 = vmatpush1.bf16.msra.mxu0 0
        %1251 = vmatprep.subr.bf16.mxu0 0
        %1252 = vmatpush1.bf16.msra.mxu0 0
        %1253 = vmatprep.subr.bf16.mxu0 0
        %1254 = vmatpush1.bf16.msra.mxu0 0
        %1255 = vmatprep.subr.bf16.mxu0 0
        %1256 = vmatpush1.bf16.msra.mxu0 0
        %1257 = vmatprep.mubr.bf16.mxu0 0
        %1258 = vmatmul.mubr.bf16.gmra.mrb[0].mxu0 %v1156
        %v1259 = vpop.f32.mrb[0].mxu0
        %v1260 = vadd.f32 %v1217, %v1259
        %v1261 = vpop.f32.mrb[0].mxu0
        %v1262 = vpop.f32.mrb[0].mxu0
        %v1263 = vadd.f32 %v1217, %v1262
        %v1264 = vpop.f32.mrb[0].mxu0
        %1265 = vdwg.mxu0
        %s1266 = scalar_lea.vmem %s6, 8
        %v1267 = vld [vmem:[%s1266] sm:$0xf]
        %v1268 = vld [vmem:[%s1266 + $0x4] sm:$0xf]
        %v1269 = vpack.c.bf16 %v1209, %v1208
        %s1270 = scalar_lea.vmem %s7, 1
        %v1271 = vld [vmem:[%s1270] sm:$0x1]
        %v1273 = vlaneseq
        %v1274 = vshrl.u32 %v1273, 7
        %v1275 = vsub.s32 0, %v1274
        %v1276 = vrot.slane %v1271, %v1275
        %v1280 = vunpack.c.l.b16 %v1267
        %v1281 = vunpack.c.l.b16 %v1268
        %v1282 = vpack.c.b16 %v1281, %v1280
        %v1285 = vsel %vm738, %v1269, 0
        %1287 = vmatprep.subr.bf16.mxu0 0
        %1288 = vmatpush1.bf16.msra.mxu0 %v1282
        %1289 = vmatprep.subr.bf16.mxu0 0
        %1290 = vmatpush1.bf16.msra.mxu0 0
        %1291 = vmatprep.subr.bf16.mxu0 0
        %1292 = vmatpush1.bf16.msra.mxu0 0
        %1293 = vmatprep.subr.bf16.mxu0 0
        %1294 = vmatpush1.bf16.msra.mxu0 0
        %1295 = vmatprep.subr.bf16.mxu0 0
        %1296 = vmatpush1.bf16.msra.mxu0 0
        %1297 = vmatprep.subr.bf16.mxu0 0
        %1298 = vmatpush1.bf16.msra.mxu0 0
        %1299 = vmatprep.subr.bf16.mxu0 0
        %1300 = vmatpush1.bf16.msra.mxu0 0
        %1301 = vmatprep.subr.bf16.mxu0 0
        %1302 = vmatpush1.bf16.msra.mxu0 0
        %1303 = vmatprep.subr.bf16.mxu0 0
        %1304 = vmatpush1.bf16.msra.mxu0 0
        %1305 = vmatprep.subr.bf16.mxu0 0
        %1306 = vmatpush1.bf16.msra.mxu0 0
        %1307 = vmatprep.subr.bf16.mxu0 0
        %1308 = vmatpush1.bf16.msra.mxu0 0
        %1309 = vmatprep.subr.bf16.mxu0 0
        %1310 = vmatpush1.bf16.msra.mxu0 0
        %1311 = vmatprep.subr.bf16.mxu0 0
        %1312 = vmatpush1.bf16.msra.mxu0 0
        %1313 = vmatprep.subr.bf16.mxu0 0
        %1314 = vmatpush1.bf16.msra.mxu0 0
        %1315 = vmatprep.subr.bf16.mxu0 0
        %1316 = vmatpush1.bf16.msra.mxu0 0
        %1317 = vmatprep.subr.bf16.mxu0 0
        %1318 = vmatpush1.bf16.msra.mxu0 0
        %1319 = vmatprep.mubr.bf16.mxu0 0
        %1320 = vmatmul.mubr.bf16.gmra.mrb[0].mxu0 %v1285
        %v1321 = vpop.f32.mrb[0].mxu0
        %v1322 = vadd.f32 %v1276, %v1321
        %v1323 = vpop.f32.mrb[0].mxu0
        %v1324 = vpop.f32.mrb[0].mxu0
        %v1325 = vadd.f32 %v1276, %v1324
        %v1326 = vpop.f32.mrb[0].mxu0
        %1327 = vdwg.mxu0
        %s1328 = sld [smem:[#allocation4 + $0x1]]
        %vm1329 = vcmp.ge.f32.partialorder %v1322, 0.0
        %vm1330 = vcmp.ge.f32.partialorder %v1325, 0.0
        %v1331 = vstv %s1328
        %v1332 = vmul.f32 %v1331, %v1322
        %v1333 = vmul.f32 %v1331, %v1325
        %v1334 = vsel %vm1329, %v1322, %v1332
        %v1335 = vsel %vm1330, %v1325, %v1333
        %s1336 = scalar_lea.vmem %s9, 1
        %v1337 = vld [vmem:[%s1336] sm:$0x1]
        %s1338 = scalar_lea.vmem %s10, 1
        %v1339 = vld [vmem:[%s1338] sm:$0x1]
        %v1340 = vsel %vm725, %v1334, 0.0
        %v1341 = vsel %vm786, %v1335, 0.0
        %v1342 = vadd.f32 %v1340, %v1341
        %1343 = vadd.xlane.f32.xlu0 %v1342
        %v1344 = vpop.xlane.xlu0 %1343
        %v1345 = vrot.slane %v1344, 4
        %v1346 = vadd.f32 %v1344, %v1345
        %v1347 = vrot.slane %v1346, 2
        %v1348 = vadd.f32 %v1346, %v1347
        %v1349 = vrot.slane %v1348, 1
        %v1350 = vadd.f32 %v1348, %v1349
        %s1351 = vtos %v1350
        %v1352 = vrcp.pop 288.0
        %s1353 = vtos %v1352
        %s1354 = smul.f32 %s1351, %s1353
        %v1355 = vstv %s1354
        %v1356 = vsub.f32 %v1334, %v1355
        %v1357 = vsub.f32 %v1335, %v1355
        %v1358 = vmul.f32 %v1356, %v1356
        %v1359 = vmul.f32 %v1357, %v1357
        %v1360 = vsel %vm725, %v1358, 0.0
        %v1361 = vsel %vm786, %v1359, 0.0
        %v1362 = vadd.f32 %v1360, %v1361
        %1363 = vadd.xlane.f32.xlu0 %v1362
        %v1364 = vpop.xlane.xlu0 %1363
        %v1365 = vrot.slane %v1364, 4
        %v1366 = vadd.f32 %v1364, %v1365
        %v1367 = vrot.slane %v1366, 2
        %v1368 = vadd.f32 %v1366, %v1367
        %v1369 = vrot.slane %v1368, 1
        %v1370 = vadd.f32 %v1368, %v1369
        %s1371 = vtos %v1370
        %v1372 = vrcp.pop 288.0
        %s1373 = vtos %v1372
        %s1374 = smul.f32 %s1371, %s1373
        %s1375 = sadd.f32 %s1374, 1e-08
        %v1376 = vstv %s1375
        %v1377 = vrsqrt.pop %v1376
        %s1378 = vtos %v1377
        %v1379 = vstv %s1378
        %v1380 = vmul.f32 %v1356, %v1379
        %v1381 = vmul.f32 %v1357, %v1379
        %v1383 = vlaneseq
        %v1384 = vshrl.u32 %v1383, 7
        %v1385 = vsub.s32 0, %v1384
        %v1386 = vrot.slane %v1337, %v1385
        %v1388 = vmul.f32 %v1380, %v1386
        %v1389 = vmul.f32 %v1381, %v1386
        %v1391 = vlaneseq
        %v1392 = vshrl.u32 %v1391, 7
        %v1393 = vsub.s32 0, %v1392
        %v1394 = vrot.slane %v1339, %v1393
        %v1396 = vadd.f32 %v1388, %v1394
        %v1397 = vadd.f32 %v1389, %v1394
        %1398 = vst.msk [vmem:[#allocation2 + $0x8] sm:$0xff] %vm725, %v1396
        %1399 = vst.msk [vmem:[#allocation2 + $0x10] sm:$0x1] %vm786, %v1397
        %s1400 = scalar_lea.vmem %s11, 4
        %v1401 = vld [vmem:[%s1400] sm:$0x7]
        %v1402 = vlaneseq
        %v1403 = vshrl.u32 %v1402, 7
        %v1404 = vsub.s32 2, %v1403
        %v1405 = vrot.slane %v1401, %v1404
        %v1406 = vmul.f32 %v1396, %v1405
        %v1407 = vmul.f32 %v1397, %v1405
        %v1408 = vld [vmem:[#allocation2 + $0x4] sm:$0xff]
        %v1409 = vld [vmem:[#allocation2 + $0xc] sm:$0x1]
        %v1410 = vlaneseq
        %v1411 = vshrl.u32 %v1410, 7
        %v1412 = vsub.s32 0, %v1411
        %v1413 = vrot.slane %v1401, %v1412
        %v1414 = vmul.f32 %v1408, %v1413
        %v1415 = vmul.f32 %v1409, %v1413
        %v1416 = vadd.f32 %v1406, %v1414
        %v1417 = vadd.f32 %v1407, %v1415
        %v1418 = vld [vmem:[#allocation2 + $0x6] sm:$0xff]
        %v1419 = vld [vmem:[#allocation2 + $0xe] sm:$0x1]
        %v1420 = vlaneseq
        %v1421 = vshrl.u32 %v1420, 7
        %v1422 = vsub.s32 1, %v1421
        %v1423 = vrot.slane %v1401, %v1422
        %v1424 = vmul.f32 %v1418, %v1423
        %v1425 = vmul.f32 %v1419, %v1423
        %v1426 = vadd.f32 %v1416, %v1424
        %v1427 = vadd.f32 %v1417, %v1425
        %s1428 = scalar_lea.vmem %s12, 1
        %v1429 = vld [vmem:[%s1428] sm:$0x1]
        %v1431 = vlaneseq
        %v1432 = vshrl.u32 %v1431, 7
        %v1433 = vsub.s32 0, %v1432
        %v1434 = vrot.slane %v1429, %v1433
        %v1436 = vadd.f32 %v1426, %v1434
        %v1437 = vadd.f32 %v1427, %v1434
        %s1438 = scalar_lea.vmem %s13, 16
        %v1439 = vld [vmem:[%s1438] sm:$0xf]
        %v1440 = vld [vmem:[%s1438 + $0x4] sm:$0xf]
        %v1441 = vld [vmem:[%s1438 + $0x8] sm:$0xf]
        %v1442 = vld [vmem:[%s1438 + $0xc] sm:$0xf]
        %v1443 = vpack.c.bf16 %v1437, %v1436
        %s1444 = scalar_lea.vmem %s14, 1
        %v1445 = vld [vmem:[%s1444] sm:$0x1]
        %v1447 = vlaneseq
        %v1448 = vshrl.u32 %v1447, 7
        %v1449 = vsub.s32 0, %v1448
        %v1450 = vrot.slane %v1445, %v1449
        %v1456 = vunpack.c.l.b16 %v1439
        %v1457 = vunpack.c.l.b16 %v1440
        %v1458 = vunpack.c.l.b16 %v1441
        %v1459 = vunpack.c.l.b16 %v1442
        %v1460 = vpack.c.b16 %v1457, %v1456
        %v1461 = vpack.c.b16 %v1459, %v1458
        %v1465 = vsel %vm725, %v1443, 0
        %1467 = vmatprep.subr.bf16.mxu0 0
        %1468 = vmatpush1.bf16.msra.mxu0 %v1460
        %1469 = vmatprep.subr.bf16.mxu0 0
        %1470 = vmatpush1.bf16.msra.mxu0 %v1461
        %1471 = vmatprep.subr.bf16.mxu0 0
        %1472 = vmatpush1.bf16.msra.mxu0 0
        %1473 = vmatprep.subr.bf16.mxu0 0
        %1474 = vmatpush1.bf16.msra.mxu0 0
        %1475 = vmatprep.subr.bf16.mxu0 0
        %1476 = vmatpush1.bf16.msra.mxu0 0
        %1477 = vmatprep.subr.bf16.mxu0 0
        %1478 = vmatpush1.bf16.msra.mxu0 0
        %1479 = vmatprep.subr.bf16.mxu0 0
        %1480 = vmatpush1.bf16.msra.mxu0 0
        %1481 = vmatprep.subr.bf16.mxu0 0
        %1482 = vmatpush1.bf16.msra.mxu0 0
        %1483 = vmatprep.subr.bf16.mxu0 0
        %1484 = vmatpush1.bf16.msra.mxu0 0
        %1485 = vmatprep.subr.bf16.mxu0 0
        %1486 = vmatpush1.bf16.msra.mxu0 0
        %1487 = vmatprep.subr.bf16.mxu0 0
        %1488 = vmatpush1.bf16.msra.mxu0 0
        %1489 = vmatprep.subr.bf16.mxu0 0
        %1490 = vmatpush1.bf16.msra.mxu0 0
        %1491 = vmatprep.subr.bf16.mxu0 0
        %1492 = vmatpush1.bf16.msra.mxu0 0
        %1493 = vmatprep.subr.bf16.mxu0 0
        %1494 = vmatpush1.bf16.msra.mxu0 0
        %1495 = vmatprep.subr.bf16.mxu0 0
        %1496 = vmatpush1.bf16.msra.mxu0 0
        %1497 = vmatprep.subr.bf16.mxu0 0
        %1498 = vmatpush1.bf16.msra.mxu0 0
        %1499 = vmatprep.mubr.bf16.mxu0 0
        %1500 = vmatmul.mubr.bf16.gmra.mrb[0].mxu0 %v1465
        %v1501 = vpop.f32.mrb[0].mxu0
        %v1502 = vadd.f32 %v1450, %v1501
        %v1503 = vpop.f32.mrb[0].mxu0
        %v1504 = vpop.f32.mrb[0].mxu0
        %v1505 = vadd.f32 %v1450, %v1504
        %v1506 = vpop.f32.mrb[0].mxu0
        %1507 = vdwg.mxu0
        %s1508 = scalar_lea.vmem %s15, 8
        %v1509 = vld [vmem:[%s1508] sm:$0xf]
        %v1510 = vld [vmem:[%s1508 + $0x4] sm:$0xf]
        %v1511 = vpack.c.bf16 %v1505, %v1502
        %v1514 = vunpack.c.l.b16 %v1509
        %v1515 = vunpack.c.l.b16 %v1510
        %v1516 = vpack.c.b16 %v1515, %v1514
        %v1519 = vsel %vm738, %v1511, 0
        %1521 = vmatprep.subr.bf16.mxu0 0
        %1522 = vmatpush1.bf16.msra.mxu0 %v1516
        %1523 = vmatprep.subr.bf16.mxu0 0
        %1524 = vmatpush1.bf16.msra.mxu0 0
        %1525 = vmatprep.subr.bf16.mxu0 0
        %1526 = vmatpush1.bf16.msra.mxu0 0
        %1527 = vmatprep.subr.bf16.mxu0 0
        %1528 = vmatpush1.bf16.msra.mxu0 0
        %1529 = vmatprep.subr.bf16.mxu0 0
        %1530 = vmatpush1.bf16.msra.mxu0 0
        %1531 = vmatprep.subr.bf16.mxu0 0
        %1532 = vmatpush1.bf16.msra.mxu0 0
        %1533 = vmatprep.subr.bf16.mxu0 0
        %1534 = vmatpush1.bf16.msra.mxu0 0
        %1535 = vmatprep.subr.bf16.mxu0 0
        %1536 = vmatpush1.bf16.msra.mxu0 0
        %1537 = vmatprep.subr.bf16.mxu0 0
        %1538 = vmatpush1.bf16.msra.mxu0 0
        %1539 = vmatprep.subr.bf16.mxu0 0
        %1540 = vmatpush1.bf16.msra.mxu0 0
        %1541 = vmatprep.subr.bf16.mxu0 0
        %1542 = vmatpush1.bf16.msra.mxu0 0
        %1543 = vmatprep.subr.bf16.mxu0 0
        %1544 = vmatpush1.bf16.msra.mxu0 0
        %1545 = vmatprep.subr.bf16.mxu0 0
        %1546 = vmatpush1.bf16.msra.mxu0 0
        %1547 = vmatprep.subr.bf16.mxu0 0
        %1548 = vmatpush1.bf16.msra.mxu0 0
        %1549 = vmatprep.subr.bf16.mxu0 0
        %1550 = vmatpush1.bf16.msra.mxu0 0
        %1551 = vmatprep.subr.bf16.mxu0 0
        %1552 = vmatpush1.bf16.msra.mxu0 0
        %1553 = vmatprep.mubr.bf16.mxu0 0
        %1554 = vmatmul.mubr.bf16.gmra.mrb[0].mxu0 %v1519
        %v1555 = vpop.f32.mrb[0].mxu0
        %v1556 = vadd.f32 0.0, %v1555
        %v1557 = vpop.f32.mrb[0].mxu0
        %v1558 = vpop.f32.mrb[0].mxu0
        %v1559 = vadd.f32 0.0, %v1558
        %v1560 = vpop.f32.mrb[0].mxu0
        %1561 = vdwg.mxu0
        %v1562 = vadd.f32 %v1208, %v1556
        %v1563 = vadd.f32 %v1209, %v1559
        %s1564 = scalar_lea.vmem %s16, 1
        %v1565 = vld [vmem:[%s1564] sm:$0x1]
        %v1567 = vlaneseq
        %v1568 = vshrl.u32 %v1567, 7
        %v1569 = vsub.s32 0, %v1568
        %v1570 = vrot.slane %v1565, %v1569
        %v1572 = vadd.f32 %v1562, %v1570
        %v1573 = vadd.f32 %v1563, %v1570
        %s1574 = scalar_lea.vmem %s17, 8
        %v1575 = vld [vmem:[%s1574] sm:$0xf]
        %v1576 = vld [vmem:[%s1574 + $0x4] sm:$0xf]
        %v1579 = vunpack.c.l.b16 %v1575
        %v1580 = vunpack.c.l.b16 %v1576
        %v1581 = vpack.c.b16 %v1580, %v1579
        %1583 = vmatprep.subr.bf16.mxu0 0
        %1584 = vmatpush1.bf16.msra.mxu0 %v1581
        %1585 = vmatprep.subr.bf16.mxu0 0
        %1586 = vmatpush1.bf16.msra.mxu0 0
        %1587 = vmatprep.subr.bf16.mxu0 0
        %1588 = vmatpush1.bf16.msra.mxu0 0
        %1589 = vmatprep.subr.bf16.mxu0 0
        %1590 = vmatpush1.bf16.msra.mxu0 0
        %1591 = vmatprep.subr.bf16.mxu0 0
        %1592 = vmatpush1.bf16.msra.mxu0 0
        %1593 = vmatprep.subr.bf16.mxu0 0
        %1594 = vmatpush1.bf16.msra.mxu0 0
        %1595 = vmatprep.subr.bf16.mxu0 0
        %1596 = vmatpush1.bf16.msra.mxu0 0
        %1597 = vmatprep.subr.bf16.mxu0 0
        %1598 = vmatpush1.bf16.msra.mxu0 0
        %1599 = vmatprep.subr.bf16.mxu0 0
        %1600 = vmatpush1.bf16.msra.mxu0 0
        %1601 = vmatprep.subr.bf16.mxu0 0
        %1602 = vmatpush1.bf16.msra.mxu0 0
        %1603 = vmatprep.subr.bf16.mxu0 0
        %1604 = vmatpush1.bf16.msra.mxu0 0
        %1605 = vmatprep.subr.bf16.mxu0 0
        %1606 = vmatpush1.bf16.msra.mxu0 0
        %1607 = vmatprep.subr.bf16.mxu0 0
        %1608 = vmatpush1.bf16.msra.mxu0 0
        %1609 = vmatprep.subr.bf16.mxu0 0
        %1610 = vmatpush1.bf16.msra.mxu0 0
        %1611 = vmatprep.subr.bf16.mxu0 0
        %1612 = vmatpush1.bf16.msra.mxu0 0
        %1613 = vmatprep.subr.bf16.mxu0 0
        %1614 = vmatpush1.bf16.msra.mxu0 0
        %1615 = vmatprep.mubr.bf16.mxu0 0
        %1616 = vmatmul.mubr.bf16.gmra.mrb[0].mxu0 %v1519
        %v1617 = vpop.f32.mrb[0].mxu0
        %v1618 = vadd.f32 0.0, %v1617
        %v1619 = vpop.f32.mrb[0].mxu0
        %v1620 = vpop.f32.mrb[0].mxu0
        %v1621 = vadd.f32 0.0, %v1620
        %v1622 = vpop.f32.mrb[0].mxu0
        %1623 = vdwg.mxu0
        %v1624 = vadd.f32 %v1260, %v1618
        %v1625 = vadd.f32 %v1263, %v1621
        %s1626 = scalar_lea.vmem %s18, 1
        %v1627 = vld [vmem:[%s1626] sm:$0x1]
        %v1629 = vlaneseq
        %v1630 = vshrl.u32 %v1629, 7
        %v1631 = vsub.s32 0, %v1630
        %v1632 = vrot.slane %v1627, %v1631
        %v1634 = vadd.f32 %v1624, %v1632
        %v1635 = vadd.f32 %v1625, %v1632
        %s1636 = scalar_lea.vmem %s6, 16
        %v1637 = vld [vmem:[%s1636] sm:$0xf]
        %v1638 = vld [vmem:[%s1636 + $0x4] sm:$0xf]
        %v1639 = vpack.c.bf16 %v1573, %v1572
        %s1640 = scalar_lea.vmem %s7, 2
        %v1641 = vld [vmem:[%s1640] sm:$0x1]
        %v1643 = vlaneseq
        %v1644 = vshrl.u32 %v1643, 7
        %v1645 = vsub.s32 0, %v1644
        %v1646 = vrot.slane %v1641, %v1645
        %v1650 = vunpack.c.l.b16 %v1637
        %v1651 = vunpack.c.l.b16 %v1638
        %v1652 = vpack.c.b16 %v1651, %v1650
        %v1655 = vsel %vm738, %v1639, 0
        %1657 = vmatprep.subr.bf16.mxu0 0
        %1658 = vmatpush1.bf16.msra.mxu0 %v1652
        %1659 = vmatprep.subr.bf16.mxu0 0
        %1660 = vmatpush1.bf16.msra.mxu0 0
        %1661 = vmatprep.subr.bf16.mxu0 0
        %1662 = vmatpush1.bf16.msra.mxu0 0
        %1663 = vmatprep.subr.bf16.mxu0 0
        %1664 = vmatpush1.bf16.msra.mxu0 0
        %1665 = vmatprep.subr.bf16.mxu0 0
        %1666 = vmatpush1.bf16.msra.mxu0 0
        %1667 = vmatprep.subr.bf16.mxu0 0
        %1668 = vmatpush1.bf16.msra.mxu0 0
        %1669 = vmatprep.subr.bf16.mxu0 0
        %1670 = vmatpush1.bf16.msra.mxu0 0
        %1671 = vmatprep.subr.bf16.mxu0 0
        %1672 = vmatpush1.bf16.msra.mxu0 0
        %1673 = vmatprep.subr.bf16.mxu0 0
        %1674 = vmatpush1.bf16.msra.mxu0 0
        %1675 = vmatprep.subr.bf16.mxu0 0
        %1676 = vmatpush1.bf16.msra.mxu0 0
        %1677 = vmatprep.subr.bf16.mxu0 0
        %1678 = vmatpush1.bf16.msra.mxu0 0
        %1679 = vmatprep.subr.bf16.mxu0 0
        %1680 = vmatpush1.bf16.msra.mxu0 0
        %1681 = vmatprep.subr.bf16.mxu0 0
        %1682 = vmatpush1.bf16.msra.mxu0 0
        %1683 = vmatprep.subr.bf16.mxu0 0
        %1684 = vmatpush1.bf16.msra.mxu0 0
        %1685 = vmatprep.subr.bf16.mxu0 0
        %1686 = vmatpush1.bf16.msra.mxu0 0
        %1687 = vmatprep.subr.bf16.mxu0 0
        %1688 = vmatpush1.bf16.msra.mxu0 0
        %1689 = vmatprep.mubr.bf16.mxu0 0
        %1690 = vmatmul.mubr.bf16.gmra.mrb[0].mxu0 %v1655
        %v1691 = vpop.f32.mrb[0].mxu0
        %v1692 = vadd.f32 %v1646, %v1691
        %v1693 = vpop.f32.mrb[0].mxu0
        %v1694 = vpop.f32.mrb[0].mxu0
        %v1695 = vadd.f32 %v1646, %v1694
        %v1696 = vpop.f32.mrb[0].mxu0
        %1697 = vdwg.mxu0
        %s1698 = sld [smem:[#allocation4 + $0x2]]
        %vm1699 = vcmp.ge.f32.partialorder %v1692, 0.0
        %vm1700 = vcmp.ge.f32.partialorder %v1695, 0.0
        %v1701 = vstv %s1698
        %v1702 = vmul.f32 %v1701, %v1692
        %v1703 = vmul.f32 %v1701, %v1695
        %v1704 = vsel %vm1699, %v1692, %v1702
        %v1705 = vsel %vm1700, %v1695, %v1703
        %s1706 = scalar_lea.vmem %s9, 2
        %v1707 = vld [vmem:[%s1706] sm:$0x1]
        %s1708 = scalar_lea.vmem %s10, 2
        %v1709 = vld [vmem:[%s1708] sm:$0x1]
        %v1710 = vsel %vm725, %v1704, 0.0
        %v1711 = vsel %vm786, %v1705, 0.0
        %v1712 = vadd.f32 %v1710, %v1711
        %1713 = vadd.xlane.f32.xlu0 %v1712
        %v1714 = vpop.xlane.xlu0 %1713
        %v1715 = vrot.slane %v1714, 4
        %v1716 = vadd.f32 %v1714, %v1715
        %v1717 = vrot.slane %v1716, 2
        %v1718 = vadd.f32 %v1716, %v1717
        %v1719 = vrot.slane %v1718, 1
        %v1720 = vadd.f32 %v1718, %v1719
        %s1721 = vtos %v1720
        %v1722 = vrcp.pop 288.0
        %s1723 = vtos %v1722
        %s1724 = smul.f32 %s1721, %s1723
        %v1725 = vstv %s1724
        %v1726 = vsub.f32 %v1704, %v1725
        %v1727 = vsub.f32 %v1705, %v1725
        %v1728 = vmul.f32 %v1726, %v1726
        %v1729 = vmul.f32 %v1727, %v1727
        %v1730 = vsel %vm725, %v1728, 0.0
        %v1731 = vsel %vm786, %v1729, 0.0
        %v1732 = vadd.f32 %v1730, %v1731
        %1733 = vadd.xlane.f32.xlu0 %v1732
        %v1734 = vpop.xlane.xlu0 %1733
        %v1735 = vrot.slane %v1734, 4
        %v1736 = vadd.f32 %v1734, %v1735
        %v1737 = vrot.slane %v1736, 2
        %v1738 = vadd.f32 %v1736, %v1737
        %v1739 = vrot.slane %v1738, 1
        %v1740 = vadd.f32 %v1738, %v1739
        %s1741 = vtos %v1740
        %v1742 = vrcp.pop 288.0
        %s1743 = vtos %v1742
        %s1744 = smul.f32 %s1741, %s1743
        %s1745 = sadd.f32 %s1744, 1e-08
        %v1746 = vstv %s1745
        %v1747 = vrsqrt.pop %v1746
        %s1748 = vtos %v1747
        %v1749 = vstv %s1748
        %v1750 = vmul.f32 %v1726, %v1749
        %v1751 = vmul.f32 %v1727, %v1749
        %v1753 = vlaneseq
        %v1754 = vshrl.u32 %v1753, 7
        %v1755 = vsub.s32 0, %v1754
        %v1756 = vrot.slane %v1707, %v1755
        %v1758 = vmul.f32 %v1750, %v1756
        %v1759 = vmul.f32 %v1751, %v1756
        %v1761 = vlaneseq
        %v1762 = vshrl.u32 %v1761, 7
        %v1763 = vsub.s32 0, %v1762
        %v1764 = vrot.slane %v1709, %v1763
        %v1766 = vadd.f32 %v1758, %v1764
        %v1767 = vadd.f32 %v1759, %v1764
        %1768 = vst.msk [vmem:[#allocation2 + $0x8] sm:$0xff] %vm725, %v1766
        %1769 = vst.msk [vmem:[#allocation2 + $0x10] sm:$0x1] %vm786, %v1767
        %s1770 = scalar_lea.vmem %s11, 8
        %v1771 = vld [vmem:[%s1770] sm:$0x7]
        %v1772 = vlaneseq
        %v1773 = vshrl.u32 %v1772, 7
        %v1774 = vsub.s32 2, %v1773
        %v1775 = vrot.slane %v1771, %v1774
        %v1776 = vmul.f32 %v1766, %v1775
        %v1777 = vmul.f32 %v1767, %v1775
        %v1778 = vld [vmem:[#allocation2 + $0x6] sm:$0xff]
        %v1779 = vld [vmem:[#allocation2 + $0xe] sm:$0x1]
        %v1780 = vlaneseq
        %v1781 = vshrl.u32 %v1780, 7
        %v1782 = vsub.s32 0, %v1781
        %v1783 = vrot.slane %v1771, %v1782
        %v1784 = vmul.f32 %v1778, %v1783
        %v1785 = vmul.f32 %v1779, %v1783
        %v1786 = vadd.f32 %v1776, %v1784
        %v1787 = vadd.f32 %v1777, %v1785
        %v1788 = vld [vmem:[#allocation2 + $0x7] sm:$0xff]
        %v1789 = vld [vmem:[#allocation2 + $0xf] sm:$0x1]
        %v1790 = vlaneseq
        %v1791 = vshrl.u32 %v1790, 7
        %v1792 = vsub.s32 1, %v1791
        %v1793 = vrot.slane %v1771, %v1792
        %v1794 = vmul.f32 %v1788, %v1793
        %v1795 = vmul.f32 %v1789, %v1793
        %v1796 = vadd.f32 %v1786, %v1794
        %v1797 = vadd.f32 %v1787, %v1795
        %s1798 = scalar_lea.vmem %s12, 2
        %v1799 = vld [vmem:[%s1798] sm:$0x1]
        %v1801 = vlaneseq
        %v1802 = vshrl.u32 %v1801, 7
        %v1803 = vsub.s32 0, %v1802
        %v1804 = vrot.slane %v1799, %v1803
        %v1806 = vadd.f32 %v1796, %v1804
        %v1807 = vadd.f32 %v1797, %v1804
        %s1808 = scalar_lea.vmem %s13, 32
        %v1809 = vld [vmem:[%s1808] sm:$0xf]
        %v1810 = vld [vmem:[%s1808 + $0x4] sm:$0xf]
        %v1811 = vld [vmem:[%s1808 + $0x8] sm:$0xf]
        %v1812 = vld [vmem:[%s1808 + $0xc] sm:$0xf]
        %v1813 = vpack.c.bf16 %v1807, %v1806
        %s1814 = scalar_lea.vmem %s14, 2
        %v1815 = vld [vmem:[%s1814] sm:$0x1]
        %v1817 = vlaneseq
        %v1818 = vshrl.u32 %v1817, 7
        %v1819 = vsub.s32 0, %v1818
        %v1820 = vrot.slane %v1815, %v1819
        %v1826 = vunpack.c.l.b16 %v1809
        %v1827 = vunpack.c.l.b16 %v1810
        %v1828 = vunpack.c.l.b16 %v1811
        %v1829 = vunpack.c.l.b16 %v1812
        %v1830 = vpack.c.b16 %v1827, %v1826
        %v1831 = vpack.c.b16 %v1829, %v1828
        %v1835 = vsel %vm725, %v1813, 0
        %1837 = vmatprep.subr.bf16.mxu0 0
        %1838 = vmatpush1.bf16.msra.mxu0 %v1830
        %1839 = vmatprep.subr.bf16.mxu0 0
        %1840 = vmatpush1.bf16.msra.mxu0 %v1831
        %1841 = vmatprep.subr.bf16.mxu0 0
        %1842 = vmatpush1.bf16.msra.mxu0 0
        %1843 = vmatprep.subr.bf16.mxu0 0
        %1844 = vmatpush1.bf16.msra.mxu0 0
        %1845 = vmatprep.subr.bf16.mxu0 0
        %1846 = vmatpush1.bf16.msra.mxu0 0
        %1847 = vmatprep.subr.bf16.mxu0 0
        %1848 = vmatpush1.bf16.msra.mxu0 0
        %1849 = vmatprep.subr.bf16.mxu0 0
        %1850 = vmatpush1.bf16.msra.mxu0 0
        %1851 = vmatprep.subr.bf16.mxu0 0
        %1852 = vmatpush1.bf16.msra.mxu0 0
        %1853 = vmatprep.subr.bf16.mxu0 0
        %1854 = vmatpush1.bf16.msra.mxu0 0
        %1855 = vmatprep.subr.bf16.mxu0 0
        %1856 = vmatpush1.bf16.msra.mxu0 0
        %1857 = vmatprep.subr.bf16.mxu0 0
        %1858 = vmatpush1.bf16.msra.mxu0 0
        %1859 = vmatprep.subr.bf16.mxu0 0
        %1860 = vmatpush1.bf16.msra.mxu0 0
        %1861 = vmatprep.subr.bf16.mxu0 0
        %1862 = vmatpush1.bf16.msra.mxu0 0
        %1863 = vmatprep.subr.bf16.mxu0 0
        %1864 = vmatpush1.bf16.msra.mxu0 0
        %1865 = vmatprep.subr.bf16.mxu0 0
        %1866 = vmatpush1.bf16.msra.mxu0 0
        %1867 = vmatprep.subr.bf16.mxu0 0
        %1868 = vmatpush1.bf16.msra.mxu0 0
        %1869 = vmatprep.mubr.bf16.mxu0 0
        %1870 = vmatmul.mubr.bf16.gmra.mrb[0].mxu0 %v1835
        %v1871 = vpop.f32.mrb[0].mxu0
        %v1872 = vadd.f32 %v1820, %v1871
        %v1873 = vpop.f32.mrb[0].mxu0
        %v1874 = vpop.f32.mrb[0].mxu0
        %v1875 = vadd.f32 %v1820, %v1874
        %v1876 = vpop.f32.mrb[0].mxu0
        %1877 = vdwg.mxu0
        %s1878 = scalar_lea.vmem %s15, 16
        %v1879 = vld [vmem:[%s1878] sm:$0xf]
        %v1880 = vld [vmem:[%s1878 + $0x4] sm:$0xf]
        %v1881 = vpack.c.bf16 %v1875, %v1872
        %v1884 = vunpack.c.l.b16 %v1879
        %v1885 = vunpack.c.l.b16 %v1880
        %v1886 = vpack.c.b16 %v1885, %v1884
        %v1889 = vsel %vm738, %v1881, 0
        %1891 = vmatprep.subr.bf16.mxu0 0
        %1892 = vmatpush1.bf16.msra.mxu0 %v1886
        %1893 = vmatprep.subr.bf16.mxu0 0
        %1894 = vmatpush1.bf16.msra.mxu0 0
        %1895 = vmatprep.subr.bf16.mxu0 0
        %1896 = vmatpush1.bf16.msra.mxu0 0
        %1897 = vmatprep.subr.bf16.mxu0 0
        %1898 = vmatpush1.bf16.msra.mxu0 0
        %1899 = vmatprep.subr.bf16.mxu0 0
        %1900 = vmatpush1.bf16.msra.mxu0 0
        %1901 = vmatprep.subr.bf16.mxu0 0
        %1902 = vmatpush1.bf16.msra.mxu0 0
        %1903 = vmatprep.subr.bf16.mxu0 0
        %1904 = vmatpush1.bf16.msra.mxu0 0
        %1905 = vmatprep.subr.bf16.mxu0 0
        %1906 = vmatpush1.bf16.msra.mxu0 0
        %1907 = vmatprep.subr.bf16.mxu0 0
        %1908 = vmatpush1.bf16.msra.mxu0 0
        %1909 = vmatprep.subr.bf16.mxu0 0
        %1910 = vmatpush1.bf16.msra.mxu0 0
        %1911 = vmatprep.subr.bf16.mxu0 0
        %1912 = vmatpush1.bf16.msra.mxu0 0
        %1913 = vmatprep.subr.bf16.mxu0 0
        %1914 = vmatpush1.bf16.msra.mxu0 0
        %1915 = vmatprep.subr.bf16.mxu0 0
        %1916 = vmatpush1.bf16.msra.mxu0 0
        %1917 = vmatprep.subr.bf16.mxu0 0
        %1918 = vmatpush1.bf16.msra.mxu0 0
        %1919 = vmatprep.subr.bf16.mxu0 0
        %1920 = vmatpush1.bf16.msra.mxu0 0
        %1921 = vmatprep.subr.bf16.mxu0 0
        %1922 = vmatpush1.bf16.msra.mxu0 0
        %1923 = vmatprep.mubr.bf16.mxu0 0
        %1924 = vmatmul.mubr.bf16.gmra.mrb[0].mxu0 %v1889
        %v1925 = vpop.f32.mrb[0].mxu0
        %v1926 = vadd.f32 0.0, %v1925
        %v1927 = vpop.f32.mrb[0].mxu0
        %v1928 = vpop.f32.mrb[0].mxu0
        %v1929 = vadd.f32 0.0, %v1928
        %v1930 = vpop.f32.mrb[0].mxu0
        %1931 = vdwg.mxu0
        %v1932 = vadd.f32 %v1572, %v1926
        %v1933 = vadd.f32 %v1573, %v1929
        %s1934 = scalar_lea.vmem %s16, 2
        %v1935 = vld [vmem:[%s1934] sm:$0x1]
        %v1937 = vlaneseq
        %v1938 = vshrl.u32 %v1937, 7
        %v1939 = vsub.s32 0, %v1938
        %v1940 = vrot.slane %v1935, %v1939
        %v1942 = vadd.f32 %v1932, %v1940
        %v1943 = vadd.f32 %v1933, %v1940
        %s1944 = scalar_lea.vmem %s17, 16
        %v1945 = vld [vmem:[%s1944] sm:$0xf]
        %v1946 = vld [vmem:[%s1944 + $0x4] sm:$0xf]
        %v1949 = vunpack.c.l.b16 %v1945
        %v1950 = vunpack.c.l.b16 %v1946
        %v1951 = vpack.c.b16 %v1950, %v1949
        %1953 = vmatprep.subr.bf16.mxu0 0
        %1954 = vmatpush1.bf16.msra.mxu0 %v1951
        %1955 = vmatprep.subr.bf16.mxu0 0
        %1956 = vmatpush1.bf16.msra.mxu0 0
        %1957 = vmatprep.subr.bf16.mxu0 0
        %1958 = vmatpush1.bf16.msra.mxu0 0
        %1959 = vmatprep.subr.bf16.mxu0 0
        %1960 = vmatpush1.bf16.msra.mxu0 0
        %1961 = vmatprep.subr.bf16.mxu0 0
        %1962 = vmatpush1.bf16.msra.mxu0 0
        %1963 = vmatprep.subr.bf16.mxu0 0
        %1964 = vmatpush1.bf16.msra.mxu0 0
        %1965 = vmatprep.subr.bf16.mxu0 0
        %1966 = vmatpush1.bf16.msra.mxu0 0
        %1967 = vmatprep.subr.bf16.mxu0 0
        %1968 = vmatpush1.bf16.msra.mxu0 0
        %1969 = vmatprep.subr.bf16.mxu0 0
        %1970 = vmatpush1.bf16.msra.mxu0 0
        %1971 = vmatprep.subr.bf16.mxu0 0
        %1972 = vmatpush1.bf16.msra.mxu0 0
        %1973 = vmatprep.subr.bf16.mxu0 0
        %1974 = vmatpush1.bf16.msra.mxu0 0
        %1975 = vmatprep.subr.bf16.mxu0 0
        %1976 = vmatpush1.bf16.msra.mxu0 0
        %1977 = vmatprep.subr.bf16.mxu0 0
        %1978 = vmatpush1.bf16.msra.mxu0 0
        %1979 = vmatprep.subr.bf16.mxu0 0
        %1980 = vmatpush1.bf16.msra.mxu0 0
        %1981 = vmatprep.subr.bf16.mxu0 0
        %1982 = vmatpush1.bf16.msra.mxu0 0
        %1983 = vmatprep.subr.bf16.mxu0 0
        %1984 = vmatpush1.bf16.msra.mxu0 0
        %1985 = vmatprep.mubr.bf16.mxu0 0
        %1986 = vmatmul.mubr.bf16.gmra.mrb[0].mxu0 %v1889
        %v1987 = vpop.f32.mrb[0].mxu0
        %v1988 = vadd.f32 0.0, %v1987
        %v1989 = vpop.f32.mrb[0].mxu0
        %v1990 = vpop.f32.mrb[0].mxu0
        %v1991 = vadd.f32 0.0, %v1990
        %v1992 = vpop.f32.mrb[0].mxu0
        %1993 = vdwg.mxu0
        %v1994 = vadd.f32 %v1634, %v1988
        %v1995 = vadd.f32 %v1635, %v1991
        %s1996 = scalar_lea.vmem %s18, 2
        %v1997 = vld [vmem:[%s1996] sm:$0x1]
        %v1999 = vlaneseq
        %v2000 = vshrl.u32 %v1999, 7
        %v2001 = vsub.s32 0, %v2000
        %v2002 = vrot.slane %v1997, %v2001
        %v2004 = vadd.f32 %v1994, %v2002
        %v2005 = vadd.f32 %v1995, %v2002
        %s2006 = scalar_lea.vmem %s6, 24
        %v2007 = vld [vmem:[%s2006] sm:$0xf]
        %v2008 = vld [vmem:[%s2006 + $0x4] sm:$0xf]
        %v2009 = vpack.c.bf16 %v1943, %v1942
        %s2010 = scalar_lea.vmem %s7, 3
        %v2011 = vld [vmem:[%s2010] sm:$0x1]
        %v2013 = vlaneseq
        %v2014 = vshrl.u32 %v2013, 7
        %v2015 = vsub.s32 0, %v2014
        %v2016 = vrot.slane %v2011, %v2015
        %v2020 = vunpack.c.l.b16 %v2007
        %v2021 = vunpack.c.l.b16 %v2008
        %v2022 = vpack.c.b16 %v2021, %v2020
        %v2025 = vsel %vm738, %v2009, 0
        %2027 = vmatprep.subr.bf16.mxu0 0
        %2028 = vmatpush1.bf16.msra.mxu0 %v2022
        %2029 = vmatprep.subr.bf16.mxu0 0
        %2030 = vmatpush1.bf16.msra.mxu0 0
        %2031 = vmatprep.subr.bf16.mxu0 0
        %2032 = vmatpush1.bf16.msra.mxu0 0
        %2033 = vmatprep.subr.bf16.mxu0 0
        %2034 = vmatpush1.bf16.msra.mxu0 0
        %2035 = vmatprep.subr.bf16.mxu0 0
        %2036 = vmatpush1.bf16.msra.mxu0 0
        %2037 = vmatprep.subr.bf16.mxu0 0
        %2038 = vmatpush1.bf16.msra.mxu0 0
        %2039 = vmatprep.subr.bf16.mxu0 0
        %2040 = vmatpush1.bf16.msra.mxu0 0
        %2041 = vmatprep.subr.bf16.mxu0 0
        %2042 = vmatpush1.bf16.msra.mxu0 0
        %2043 = vmatprep.subr.bf16.mxu0 0
        %2044 = vmatpush1.bf16.msra.mxu0 0
        %2045 = vmatprep.subr.bf16.mxu0 0
        %2046 = vmatpush1.bf16.msra.mxu0 0
        %2047 = vmatprep.subr.bf16.mxu0 0
        %2048 = vmatpush1.bf16.msra.mxu0 0
        %2049 = vmatprep.subr.bf16.mxu0 0
        %2050 = vmatpush1.bf16.msra.mxu0 0
        %2051 = vmatprep.subr.bf16.mxu0 0
        %2052 = vmatpush1.bf16.msra.mxu0 0
        %2053 = vmatprep.subr.bf16.mxu0 0
        %2054 = vmatpush1.bf16.msra.mxu0 0
        %2055 = vmatprep.subr.bf16.mxu0 0
        %2056 = vmatpush1.bf16.msra.mxu0 0
        %2057 = vmatprep.subr.bf16.mxu0 0
        %2058 = vmatpush1.bf16.msra.mxu0 0
        %2059 = vmatprep.mubr.bf16.mxu0 0
        %2060 = vmatmul.mubr.bf16.gmra.mrb[0].mxu0 %v2025
        %v2061 = vpop.f32.mrb[0].mxu0
        %v2062 = vadd.f32 %v2016, %v2061
        %v2063 = vpop.f32.mrb[0].mxu0
        %v2064 = vpop.f32.mrb[0].mxu0
        %v2065 = vadd.f32 %v2016, %v2064
        %v2066 = vpop.f32.mrb[0].mxu0
        %2067 = vdwg.mxu0
        %s2068 = sld [smem:[#allocation4 + $0x3]]
        %vm2069 = vcmp.ge.f32.partialorder %v2062, 0.0
        %vm2070 = vcmp.ge.f32.partialorder %v2065, 0.0
        %v2071 = vstv %s2068
        %v2072 = vmul.f32 %v2071, %v2062
        %v2073 = vmul.f32 %v2071, %v2065
        %v2074 = vsel %vm2069, %v2062, %v2072
        %v2075 = vsel %vm2070, %v2065, %v2073
        %s2076 = scalar_lea.vmem %s9, 3
        %v2077 = vld [vmem:[%s2076] sm:$0x1]
        %s2078 = scalar_lea.vmem %s10, 3
        %v2079 = vld [vmem:[%s2078] sm:$0x1]
        %v2080 = vsel %vm725, %v2074, 0.0
        %v2081 = vsel %vm786, %v2075, 0.0
        %v2082 = vadd.f32 %v2080, %v2081
        %2083 = vadd.xlane.f32.xlu0 %v2082
        %v2084 = vpop.xlane.xlu0 %2083
        %v2085 = vrot.slane %v2084, 4
        %v2086 = vadd.f32 %v2084, %v2085
        %v2087 = vrot.slane %v2086, 2
        %v2088 = vadd.f32 %v2086, %v2087
        %v2089 = vrot.slane %v2088, 1
        %v2090 = vadd.f32 %v2088, %v2089
        %s2091 = vtos %v2090
        %v2092 = vrcp.pop 288.0
        %s2093 = vtos %v2092
        %s2094 = smul.f32 %s2091, %s2093
        %v2095 = vstv %s2094
        %v2096 = vsub.f32 %v2074, %v2095
        %v2097 = vsub.f32 %v2075, %v2095
        %v2098 = vmul.f32 %v2096, %v2096
        %v2099 = vmul.f32 %v2097, %v2097
        %v2100 = vsel %vm725, %v2098, 0.0
        %v2101 = vsel %vm786, %v2099, 0.0
        %v2102 = vadd.f32 %v2100, %v2101
        %2103 = vadd.xlane.f32.xlu0 %v2102
        %v2104 = vpop.xlane.xlu0 %2103
        %v2105 = vrot.slane %v2104, 4
        %v2106 = vadd.f32 %v2104, %v2105
        %v2107 = vrot.slane %v2106, 2
        %v2108 = vadd.f32 %v2106, %v2107
        %v2109 = vrot.slane %v2108, 1
        %v2110 = vadd.f32 %v2108, %v2109
        %s2111 = vtos %v2110
        %v2112 = vrcp.pop 288.0
        %s2113 = vtos %v2112
        %s2114 = smul.f32 %s2111, %s2113
        %s2115 = sadd.f32 %s2114, 1e-08
        %v2116 = vstv %s2115
        %v2117 = vrsqrt.pop %v2116
        %s2118 = vtos %v2117
        %v2119 = vstv %s2118
        %v2120 = vmul.f32 %v2096, %v2119
        %v2121 = vmul.f32 %v2097, %v2119
        %v2123 = vlaneseq
        %v2124 = vshrl.u32 %v2123, 7
        %v2125 = vsub.s32 0, %v2124
        %v2126 = vrot.slane %v2077, %v2125
        %v2128 = vmul.f32 %v2120, %v2126
        %v2129 = vmul.f32 %v2121, %v2126
        %v2131 = vlaneseq
        %v2132 = vshrl.u32 %v2131, 7
        %v2133 = vsub.s32 0, %v2132
        %v2134 = vrot.slane %v2079, %v2133
        %v2136 = vadd.f32 %v2128, %v2134
        %v2137 = vadd.f32 %v2129, %v2134
        %2138 = vst.msk [vmem:[#allocation2 + $0x8] sm:$0xff] %vm725, %v2136
        %2139 = vst.msk [vmem:[#allocation2 + $0x10] sm:$0x1] %vm786, %v2137
        %s2140 = scalar_lea.vmem %s11, 12
        %v2141 = vld [vmem:[%s2140] sm:$0x7]
        %v2142 = vlaneseq
        %v2143 = vshrl.u32 %v2142, 7
        %v2144 = vsub.s32 2, %v2143
        %v2145 = vrot.slane %v2141, %v2144
        %v2146 = vmul.f32 %v2136, %v2145
        %v2147 = vmul.f32 %v2137, %v2145
        %v2148 = vld [vmem:[#allocation2 + $0x4] sm:$0xff]
        %v2149 = vld [vmem:[#allocation2 + $0xc] sm:$0x1]
        %v2150 = vlaneseq
        %v2151 = vshrl.u32 %v2150, 7
        %v2152 = vsub.s32 0, %v2151
        %v2153 = vrot.slane %v2141, %v2152
        %v2154 = vmul.f32 %v2148, %v2153
        %v2155 = vmul.f32 %v2149, %v2153
        %v2156 = vadd.f32 %v2146, %v2154
        %v2157 = vadd.f32 %v2147, %v2155
        %v2158 = vld [vmem:[#allocation2 + $0x6] sm:$0xff]
        %v2159 = vld [vmem:[#allocation2 + $0xe] sm:$0x1]
        %v2160 = vlaneseq
        %v2161 = vshrl.u32 %v2160, 7
        %v2162 = vsub.s32 1, %v2161
        %v2163 = vrot.slane %v2141, %v2162
        %v2164 = vmul.f32 %v2158, %v2163
        %v2165 = vmul.f32 %v2159, %v2163
        %v2166 = vadd.f32 %v2156, %v2164
        %v2167 = vadd.f32 %v2157, %v2165
        %s2168 = scalar_lea.vmem %s12, 3
        %v2169 = vld [vmem:[%s2168] sm:$0x1]
        %v2171 = vlaneseq
        %v2172 = vshrl.u32 %v2171, 7
        %v2173 = vsub.s32 0, %v2172
        %v2174 = vrot.slane %v2169, %v2173
        %v2176 = vadd.f32 %v2166, %v2174
        %v2177 = vadd.f32 %v2167, %v2174
        %s2178 = scalar_lea.vmem %s13, 48
        %v2179 = vld [vmem:[%s2178] sm:$0xf]
        %v2180 = vld [vmem:[%s2178 + $0x4] sm:$0xf]
        %v2181 = vld [vmem:[%s2178 + $0x8] sm:$0xf]
        %v2182 = vld [vmem:[%s2178 + $0xc] sm:$0xf]
        %v2183 = vpack.c.bf16 %v2177, %v2176
        %s2184 = scalar_lea.vmem %s14, 3
        %v2185 = vld [vmem:[%s2184] sm:$0x1]
        %v2187 = vlaneseq
        %v2188 = vshrl.u32 %v2187, 7
        %v2189 = vsub.s32 0, %v2188
        %v2190 = vrot.slane %v2185, %v2189
        %v2196 = vunpack.c.l.b16 %v2179
        %v2197 = vunpack.c.l.b16 %v2180
        %v2198 = vunpack.c.l.b16 %v2181
        %v2199 = vunpack.c.l.b16 %v2182
        %v2200 = vpack.c.b16 %v2197, %v2196
        %v2201 = vpack.c.b16 %v2199, %v2198
        %v2205 = vsel %vm725, %v2183, 0
        %2207 = vmatprep.subr.bf16.mxu0 0
        %2208 = vmatpush1.bf16.msra.mxu0 %v2200
        %2209 = vmatprep.subr.bf16.mxu0 0
        %2210 = vmatpush1.bf16.msra.mxu0 %v2201
        %2211 = vmatprep.subr.bf16.mxu0 0
        %2212 = vmatpush1.bf16.msra.mxu0 0
        %2213 = vmatprep.subr.bf16.mxu0 0
        %2214 = vmatpush1.bf16.msra.mxu0 0
        %2215 = vmatprep.subr.bf16.mxu0 0
        %2216 = vmatpush1.bf16.msra.mxu0 0
        %2217 = vmatprep.subr.bf16.mxu0 0
        %2218 = vmatpush1.bf16.msra.mxu0 0
        %2219 = vmatprep.subr.bf16.mxu0 0
        %2220 = vmatpush1.bf16.msra.mxu0 0
        %2221 = vmatprep.subr.bf16.mxu0 0
        %2222 = vmatpush1.bf16.msra.mxu0 0
        %2223 = vmatprep.subr.bf16.mxu0 0
        %2224 = vmatpush1.bf16.msra.mxu0 0
        %2225 = vmatprep.subr.bf16.mxu0 0
        %2226 = vmatpush1.bf16.msra.mxu0 0
        %2227 = vmatprep.subr.bf16.mxu0 0
        %2228 = vmatpush1.bf16.msra.mxu0 0
        %2229 = vmatprep.subr.bf16.mxu0 0
        %2230 = vmatpush1.bf16.msra.mxu0 0
        %2231 = vmatprep.subr.bf16.mxu0 0
        %2232 = vmatpush1.bf16.msra.mxu0 0
        %2233 = vmatprep.subr.bf16.mxu0 0
        %2234 = vmatpush1.bf16.msra.mxu0 0
        %2235 = vmatprep.subr.bf16.mxu0 0
        %2236 = vmatpush1.bf16.msra.mxu0 0
        %2237 = vmatprep.subr.bf16.mxu0 0
        %2238 = vmatpush1.bf16.msra.mxu0 0
        %2239 = vmatprep.mubr.bf16.mxu0 0
        %2240 = vmatmul.mubr.bf16.gmra.mrb[0].mxu0 %v2205
        %v2241 = vpop.f32.mrb[0].mxu0
        %v2242 = vadd.f32 %v2190, %v2241
        %v2243 = vpop.f32.mrb[0].mxu0
        %v2244 = vpop.f32.mrb[0].mxu0
        %v2245 = vadd.f32 %v2190, %v2244
        %v2246 = vpop.f32.mrb[0].mxu0
        %2247 = vdwg.mxu0
        %s2248 = scalar_lea.vmem %s17, 24
        %v2249 = vld [vmem:[%s2248] sm:$0xf]
        %v2250 = vld [vmem:[%s2248 + $0x4] sm:$0xf]
        %v2251 = vpack.c.bf16 %v2245, %v2242
        %v2254 = vunpack.c.l.b16 %v2249
        %v2255 = vunpack.c.l.b16 %v2250
        %v2256 = vpack.c.b16 %v2255, %v2254
        %v2259 = vsel %vm738, %v2251, 0
        %2261 = vmatprep.subr.bf16.mxu0 0
        %2262 = vmatpush1.bf16.msra.mxu0 %v2256
        %2263 = vmatprep.subr.bf16.mxu0 0
        %2264 = vmatpush1.bf16.msra.mxu0 0
        %2265 = vmatprep.subr.bf16.mxu0 0
        %2266 = vmatpush1.bf16.msra.mxu0 0
        %2267 = vmatprep.subr.bf16.mxu0 0
        %2268 = vmatpush1.bf16.msra.mxu0 0
        %2269 = vmatprep.subr.bf16.mxu0 0
        %2270 = vmatpush1.bf16.msra.mxu0 0
        %2271 = vmatprep.subr.bf16.mxu0 0
        %2272 = vmatpush1.bf16.msra.mxu0 0
        %2273 = vmatprep.subr.bf16.mxu0 0
        %2274 = vmatpush1.bf16.msra.mxu0 0
        %2275 = vmatprep.subr.bf16.mxu0 0
        %2276 = vmatpush1.bf16.msra.mxu0 0
        %2277 = vmatprep.subr.bf16.mxu0 0
        %2278 = vmatpush1.bf16.msra.mxu0 0
        %2279 = vmatprep.subr.bf16.mxu0 0
        %2280 = vmatpush1.bf16.msra.mxu0 0
        %2281 = vmatprep.subr.bf16.mxu0 0
        %2282 = vmatpush1.bf16.msra.mxu0 0
        %2283 = vmatprep.subr.bf16.mxu0 0
        %2284 = vmatpush1.bf16.msra.mxu0 0
        %2285 = vmatprep.subr.bf16.mxu0 0
        %2286 = vmatpush1.bf16.msra.mxu0 0
        %2287 = vmatprep.subr.bf16.mxu0 0
        %2288 = vmatpush1.bf16.msra.mxu0 0
        %2289 = vmatprep.subr.bf16.mxu0 0
        %2290 = vmatpush1.bf16.msra.mxu0 0
        %2291 = vmatprep.subr.bf16.mxu0 0
        %2292 = vmatpush1.bf16.msra.mxu0 0
        %2293 = vmatprep.mubr.bf16.mxu0 0
        %2294 = vmatmul.mubr.bf16.gmra.mrb[0].mxu0 %v2259
        %v2295 = vpop.f32.mrb[0].mxu0
        %v2296 = vadd.f32 0.0, %v2295
        %v2297 = vpop.f32.mrb[0].mxu0
        %v2298 = vpop.f32.mrb[0].mxu0
        %v2299 = vadd.f32 0.0, %v2298
        %v2300 = vpop.f32.mrb[0].mxu0
        %2301 = vdwg.mxu0
        %v2302 = vadd.f32 %v2004, %v2296
        %v2303 = vadd.f32 %v2005, %v2299
        %s2304 = scalar_lea.vmem %s18, 3
        %v2305 = vld [vmem:[%s2304] sm:$0x1]
        %v2307 = vlaneseq
        %v2308 = vshrl.u32 %v2307, 7
        %v2309 = vsub.s32 0, %v2308
        %v2310 = vrot.slane %v2305, %v2309
        %v2312 = vadd.f32 %v2302, %v2310
        %v2313 = vadd.f32 %v2303, %v2310
        %s2314 = sld [smem:[#allocation3]]
        %vm2315 = vcmp.ge.f32.partialorder %v2312, 0.0
        %vm2316 = vcmp.ge.f32.partialorder %v2313, 0.0
        %v2317 = vstv %s2314
        %v2318 = vmul.f32 %v2317, %v2312
        %v2319 = vmul.f32 %v2317, %v2313
        %v2320 = vsel %vm2315, %v2312, %v2318
        %v2321 = vsel %vm2316, %v2313, %v2319
        %v2322 = vpack.c.bf16 %v2321, %v2320
        %v2323 = vld [vmem:[%s22] sm:$0xf]
        %v2324 = vld [vmem:[%s22 + $0x4] sm:$0xf]
        %v2325 = vld [vmem:[%s22 + $0x8] sm:$0xf]
        %v2326 = vld [vmem:[%s22 + $0xc] sm:$0xf]
        %v2327 = vld [vmem:[%s20] sm:$0xf]
        %v2328 = vld [vmem:[%s20 + $0x4] sm:$0xf]
        %v2329 = vld [vmem:[%s21] sm:$0x1]
        %v2331 = vlaneseq
        %v2332 = vshrl.u32 %v2331, 7
        %v2333 = vsub.s32 0, %v2332
        %v2334 = vrot.slane %v2329, %v2333
        %v2338 = vunpack.c.l.b16 %v2327
        %v2339 = vunpack.c.l.b16 %v2328
        %v2340 = vpack.c.b16 %v2339, %v2338
        %v2343 = vsel %vm738, %v2322, 0
        %2345 = vmatprep.subr.bf16.mxu0 0
        %2346 = vmatpush1.bf16.msra.mxu0 %v2340
        %2347 = vmatprep.subr.bf16.mxu0 0
        %2348 = vmatpush1.bf16.msra.mxu0 0
        %2349 = vmatprep.subr.bf16.mxu0 0
        %2350 = vmatpush1.bf16.msra.mxu0 0
        %2351 = vmatprep.subr.bf16.mxu0 0
        %2352 = vmatpush1.bf16.msra.mxu0 0
        %2353 = vmatprep.subr.bf16.mxu0 0
        %2354 = vmatpush1.bf16.msra.mxu0 0
        %2355 = vmatprep.subr.bf16.mxu0 0
        %2356 = vmatpush1.bf16.msra.mxu0 0
        %2357 = vmatprep.subr.bf16.mxu0 0
        %2358 = vmatpush1.bf16.msra.mxu0 0
        %2359 = vmatprep.subr.bf16.mxu0 0
        %2360 = vmatpush1.bf16.msra.mxu0 0
        %2361 = vmatprep.subr.bf16.mxu0 0
        %2362 = vmatpush1.bf16.msra.mxu0 0
        %2363 = vmatprep.subr.bf16.mxu0 0
        %2364 = vmatpush1.bf16.msra.mxu0 0
        %2365 = vmatprep.subr.bf16.mxu0 0
        %2366 = vmatpush1.bf16.msra.mxu0 0
        %2367 = vmatprep.subr.bf16.mxu0 0
        %2368 = vmatpush1.bf16.msra.mxu0 0
        %2369 = vmatprep.subr.bf16.mxu0 0
        %2370 = vmatpush1.bf16.msra.mxu0 0
        %2371 = vmatprep.subr.bf16.mxu0 0
        %2372 = vmatpush1.bf16.msra.mxu0 0
        %2373 = vmatprep.subr.bf16.mxu0 0
        %2374 = vmatpush1.bf16.msra.mxu0 0
        %2375 = vmatprep.subr.bf16.mxu0 0
        %2376 = vmatpush1.bf16.msra.mxu0 0
        %2377 = vmatprep.mubr.bf16.mxu0 0
        %2378 = vmatmul.mubr.bf16.gmra.mrb[0].mxu0 %v2343
        %v2379 = vpop.f32.mrb[0].mxu0
        %v2380 = vadd.f32 %v2334, %v2379
        %v2381 = vpop.f32.mrb[0].mxu0
        %v2382 = vpop.f32.mrb[0].mxu0
        %v2383 = vadd.f32 %v2334, %v2382
        %v2384 = vpop.f32.mrb[0].mxu0
        %2385 = vdwg.mxu0
        %v2386 = vxor.u32 %v2380, 2147483648
        %v2387 = vxor.u32 %v2383, 2147483648
        %v2388 = vmul.f32 %v2386, 1.442695
        %v2389 = vpow.pop %v2388
        %v2390 = vmul.f32 %v2387, 1.442695
        %v2391 = vpow.pop %v2390
        %v2392 = vadd.f32 %v2389, 1.0
        %v2393 = vadd.f32 %v2391, 1.0
        %v2394 = vrcp.pop %v2392
        %v2395 = vmul.f32 1.0, %v2394
        %v2396 = vrcp.pop %v2393
        %v2397 = vmul.f32 1.0, %v2396
        %v2398 = vpack.c.bf16 %v2397, %v2395
        %v2403 = vunpack.c.l.b16 %v2323
        %v2404 = vunpack.c.l.b16 %v2324
        %v2405 = vunpack.c.l.b16 %v2325
        %v2406 = vunpack.c.l.b16 %v2326
        %v2407 = vpack.c.b16 %v2404, %v2403
        %v2408 = vpack.c.b16 %v2406, %v2405
        %v2412 = vsel %vm725, %v2398, 0
        %2414 = vmatprep.subr.bf16.mxu0 0
        %2415 = vmatpush1.bf16.msra.mxu0 %v2407
        %2416 = vmatprep.subr.bf16.mxu0 0
        %2417 = vmatpush1.bf16.msra.mxu0 %v2408
        %2418 = vmatprep.subr.bf16.mxu0 0
        %2419 = vmatpush1.bf16.msra.mxu0 0
        %2420 = vmatprep.subr.bf16.mxu0 0
        %2421 = vmatpush1.bf16.msra.mxu0 0
        %2422 = vmatprep.subr.bf16.mxu0 0
        %2423 = vmatpush1.bf16.msra.mxu0 0
        %2424 = vmatprep.subr.bf16.mxu0 0
        %2425 = vmatpush1.bf16.msra.mxu0 0
        %2426 = vmatprep.subr.bf16.mxu0 0
        %2427 = vmatpush1.bf16.msra.mxu0 0
        %2428 = vmatprep.subr.bf16.mxu0 0
        %2429 = vmatpush1.bf16.msra.mxu0 0
        %2430 = vmatprep.subr.bf16.mxu0 0
        %2431 = vmatpush1.bf16.msra.mxu0 0
        %2432 = vmatprep.subr.bf16.mxu0 0
        %2433 = vmatpush1.bf16.msra.mxu0 0
        %2434 = vmatprep.subr.bf16.mxu0 0
        %2435 = vmatpush1.bf16.msra.mxu0 0
        %2436 = vmatprep.subr.bf16.mxu0 0
        %2437 = vmatpush1.bf16.msra.mxu0 0
        %2438 = vmatprep.subr.bf16.mxu0 0
        %2439 = vmatpush1.bf16.msra.mxu0 0
        %2440 = vmatprep.subr.bf16.mxu0 0
        %2441 = vmatpush1.bf16.msra.mxu0 0
        %2442 = vmatprep.subr.bf16.mxu0 0
        %2443 = vmatpush1.bf16.msra.mxu0 0
        %2444 = vmatprep.subr.bf16.mxu0 0
        %2445 = vmatpush1.bf16.msra.mxu0 0
        %2446 = vmatprep.mubr.bf16.mxu0 0
        %2447 = vmatmul.mubr.bf16.gmra.mrb[0].mxu0 %v2412
        %v2448 = vpop.f32.mrb[0].mxu0
        %v2449 = vadd.f32 0.0, %v2448
        %v2450 = vpop.f32.mrb[0].mxu0
        %v2451 = vpop.f32.mrb[0].mxu0
        %v2452 = vadd.f32 0.0, %v2451
        %v2453 = vpop.f32.mrb[0].mxu0
        %2454 = vdwg.mxu0
        %v2456 = vrot.slane %v2449, 7
        %2457 = vrot.lane.b32.xlu0 %v2456, 120
        %v2458 = vpop.permute.xlu0 %2457
        %v2460 = vadd.f32 %v2449, %v2458
        %v2461 = vadd.f32 %v2452, %v2458
        %vm2462 = vcmask 64513
        %2463 = vst.msk [vmem:[%s718 - $0x1] sm:$0xfe] %vm2462, %v2460
        %vm2464 = vcmask 57344
        %2465 = vst.msk [vmem:[%s718 + $0x7] sm:$0x1] %vm2464, %v2461
        %s2466 = scalar_lea.vmem %s20, 8
        %v2467 = vld [vmem:[%s2466] sm:$0xf]
        %v2468 = vld [vmem:[%s2466 + $0x4] sm:$0xf]
        %s2469 = scalar_lea.vmem %s21, 1
        %v2470 = vld [vmem:[%s2469] sm:$0x1]
        %v2472 = vlaneseq
        %v2473 = vshrl.u32 %v2472, 7
        %v2474 = vsub.s32 0, %v2473
        %v2475 = vrot.slane %v2470, %v2474
        %v2479 = vunpack.c.l.b16 %v2467
        %v2480 = vunpack.c.l.b16 %v2468
        %v2481 = vpack.c.b16 %v2480, %v2479
        %2483 = vmatprep.subr.bf16.mxu0 0
        %2484 = vmatpush1.bf16.msra.mxu0 %v2481
        %2485 = vmatprep.subr.bf16.mxu0 0
        %2486 = vmatpush1.bf16.msra.mxu0 0
        %2487 = vmatprep.subr.bf16.mxu0 0
        %2488 = vmatpush1.bf16.msra.mxu0 0
        %2489 = vmatprep.subr.bf16.mxu0 0
        %2490 = vmatpush1.bf16.msra.mxu0 0
        %2491 = vmatprep.subr.bf16.mxu0 0
        %2492 = vmatpush1.bf16.msra.mxu0 0
        %2493 = vmatprep.subr.bf16.mxu0 0
        %2494 = vmatpush1.bf16.msra.mxu0 0
        %2495 = vmatprep.subr.bf16.mxu0 0
        %2496 = vmatpush1.bf16.msra.mxu0 0
        %2497 = vmatprep.subr.bf16.mxu0 0
        %2498 = vmatpush1.bf16.msra.mxu0 0
        %2499 = vmatprep.subr.bf16.mxu0 0
        %2500 = vmatpush1.bf16.msra.mxu0 0
        %2501 = vmatprep.subr.bf16.mxu0 0
        %2502 = vmatpush1.bf16.msra.mxu0 0
        %2503 = vmatprep.subr.bf16.mxu0 0
        %2504 = vmatpush1.bf16.msra.mxu0 0
        %2505 = vmatprep.subr.bf16.mxu0 0
        %2506 = vmatpush1.bf16.msra.mxu0 0
        %2507 = vmatprep.subr.bf16.mxu0 0
        %2508 = vmatpush1.bf16.msra.mxu0 0
        %2509 = vmatprep.subr.bf16.mxu0 0
        %2510 = vmatpush1.bf16.msra.mxu0 0
        %2511 = vmatprep.subr.bf16.mxu0 0
        %2512 = vmatpush1.bf16.msra.mxu0 0
        %2513 = vmatprep.subr.bf16.mxu0 0
        %2514 = vmatpush1.bf16.msra.mxu0 0
        %2515 = vmatprep.mubr.bf16.mxu0 0
        %2516 = vmatmul.mubr.bf16.gmra.mrb[0].mxu0 %v2343
        %v2517 = vpop.f32.mrb[0].mxu0
        %v2518 = vadd.f32 %v2475, %v2517
        %v2519 = vpop.f32.mrb[0].mxu0
        %v2520 = vpop.f32.mrb[0].mxu0
        %v2521 = vadd.f32 %v2475, %v2520
        %v2522 = vpop.f32.mrb[0].mxu0
        %2523 = vdwg.mxu0
        %v2524 = vxor.u32 %v2518, 2147483648
        %v2525 = vxor.u32 %v2521, 2147483648
        %v2526 = vmul.f32 %v2524, 1.442695
        %v2527 = vpow.pop %v2526
        %v2528 = vmul.f32 %v2525, 1.442695
        %v2529 = vpow.pop %v2528
        %v2530 = vadd.f32 %v2527, 1.0
        %v2531 = vadd.f32 %v2529, 1.0
        %v2532 = vrcp.pop %v2530
        %v2533 = vmul.f32 1.0, %v2532
        %v2534 = vrcp.pop %v2531
        %v2535 = vmul.f32 1.0, %v2534
        %v2536 = vpack.c.bf16 %v2535, %v2533
        %v2538 = vsel %vm725, %v2536, 0
        %2540 = vmatprep.subr.bf16.mxu0 0
        %2541 = vmatpush1.bf16.msra.mxu0 %v2407
        %2542 = vmatprep.subr.bf16.mxu0 0
        %2543 = vmatpush1.bf16.msra.mxu0 %v2408
        %2544 = vmatprep.subr.bf16.mxu0 0
        %2545 = vmatpush1.bf16.msra.mxu0 0
        %2546 = vmatprep.subr.bf16.mxu0 0
        %2547 = vmatpush1.bf16.msra.mxu0 0
        %2548 = vmatprep.subr.bf16.mxu0 0
        %2549 = vmatpush1.bf16.msra.mxu0 0
        %2550 = vmatprep.subr.bf16.mxu0 0
        %2551 = vmatpush1.bf16.msra.mxu0 0
        %2552 = vmatprep.subr.bf16.mxu0 0
        %2553 = vmatpush1.bf16.msra.mxu0 0
        %2554 = vmatprep.subr.bf16.mxu0 0
        %2555 = vmatpush1.bf16.msra.mxu0 0
        %2556 = vmatprep.subr.bf16.mxu0 0
        %2557 = vmatpush1.bf16.msra.mxu0 0
        %2558 = vmatprep.subr.bf16.mxu0 0
        %2559 = vmatpush1.bf16.msra.mxu0 0
        %2560 = vmatprep.subr.bf16.mxu0 0
        %2561 = vmatpush1.bf16.msra.mxu0 0
        %2562 = vmatprep.subr.bf16.mxu0 0
        %2563 = vmatpush1.bf16.msra.mxu0 0
        %2564 = vmatprep.subr.bf16.mxu0 0
        %2565 = vmatpush1.bf16.msra.mxu0 0
        %2566 = vmatprep.subr.bf16.mxu0 0
        %2567 = vmatpush1.bf16.msra.mxu0 0
        %2568 = vmatprep.subr.bf16.mxu0 0
        %2569 = vmatpush1.bf16.msra.mxu0 0
        %2570 = vmatprep.subr.bf16.mxu0 0
        %2571 = vmatpush1.bf16.msra.mxu0 0
        %2572 = vmatprep.mubr.bf16.mxu0 0
        %2573 = vmatmul.mubr.bf16.gmra.mrb[0].mxu0 %v2538
        %v2574 = vpop.f32.mrb[0].mxu0
        %v2575 = vadd.f32 0.0, %v2574
        %v2576 = vpop.f32.mrb[0].mxu0
        %v2577 = vpop.f32.mrb[0].mxu0
        %v2578 = vadd.f32 0.0, %v2577
        %v2579 = vpop.f32.mrb[0].mxu0
        %2580 = vdwg.mxu0
        %v2582 = vrot.slane %v2575, 7
        %2583 = vrot.lane.b32.xlu0 %v2582, 120
        %v2584 = vpop.permute.xlu0 %2583
        %v2586 = vadd.f32 %v2575, %v2584
        %v2587 = vadd.f32 %v2578, %v2584
        %s2588 = scalar_lea.vmem %s718, 8 [#allocation7]
        %2589 = vst.msk [vmem:[%s2588 - $0x1] sm:$0xfe] %vm2462, %v2586
        %2590 = vst.msk [vmem:[%s2588 + $0x7] sm:$0x1] %vm2464, %v2587
        %s2591 = sand.u32 %s535, 1
        %s2592 = scalar_lea.sflag [#allocation5], %s2591
        %s2593 = sand.u32 %s535, 1
        %s2594 = smul.addr %s2593, 16
        %s2595 = scalar_lea.vmem [#allocation7], %s2594
        // Predicated region
        $region117: #{tpu_custom_call.1} parent=111 // pred_check
          %p2596 = pneg %p545
        $region118: #{tpu_custom_call.1} parent=111 // pred_check_branch
          %2598 = sbr.rel (%p2596) target = $region120
        $region119: #{tpu_custom_call.1} parent=111 // pred_region
          %s2600 = ssub.s32 256, 256
          %2601 = vsyncadd %s2592, %s2600
          %s2602 = smul.addr %s39, 2
          %s2603 = smul.addr %s2602, 128
          %s2604 = scalar_lea.hbm %s23, %s2603
          %s2605 = sshll.u32 %s2595, 4
          %s2606 = int_to_ptr.vmem [resolvable:$true] %s2605
          %2611 = dma.vmem_to_hbm [thread:$0]  %s2606, 256, %s2604, %s2592, 128, 128, 8
        $region120: #{tpu_custom_call.1} parent=111 // pred_fallthru
          _
      $region112: #{tpu_custom_call.1} parent=5 // pred_fallthru
        _
      %p2612 = scmp.le.s32.totalorder 2, %s34
      // Predicated region
      $region121: #{tpu_custom_call.1} parent=5 // pred_check
        %p2613 = pneg %p2612
      $region122: #{tpu_custom_call.1} parent=5 // pred_check_branch
        %2615 = sbr.rel (%p2613) target = $region124
      $region123: #{tpu_custom_call.1} parent=5 // pred_region
        %s2616 = ssub.s32 %s34, 2
        // Predicated region
        $region125: #{tpu_custom_call.1} parent=123 // pred_check
          %p2617 = pneg %p551
        $region126: #{tpu_custom_call.1} parent=123 // pred_check_branch
          %2619 = sbr.rel (%p2617) target = $region128
        $region127: #{tpu_custom_call.1} parent=123 // pred_region
          %s2620 = sand.u32 %s536, 1
          %s2621 = scalar_lea.sflag [#allocation5], %s2620
          %s2622 = sand.u32 %s536, 1
          %s2623 = smul.addr %s2622, 16
          %s2624 = scalar_lea.vmem [#allocation7], %s2623
          %2625 = dma.done %s2621, 256
        $region128: #{tpu_custom_call.1} parent=123 // pred_fallthru
          _
      $region124: #{tpu_custom_call.1} parent=5 // pred_fallthru
        _
    $region6: #{tpu_custom_call.1} parent=1 // loop_footer
      %s38 = sadd.s32 1, %s34
    $region7: #{tpu_custom_call.1} parent=1 // loop_footer_branch
      %33 = sbr.rel target = $region3
    $region8: #{tpu_custom_call.1} parent=1 // loop_exit
      _
    %2626 = vsyncpa [#allocation5], 1
    %s2627 = scalar_lea.sflag [#allocation5], 1
    %2628 = vsyncpa %s2627, 1
    %2629 = vsyncpa [#allocation6], 1
    %s2630 = scalar_lea.sflag [#allocation6], 1
    %2631 = vsyncpa %s2630, 1

</llo_original>
